<compile_context>
chip_gen: v7x
topology: tpu7x:2x2x1
jax: 0.10.0
libtpu: 0.0.40
codegen_flags: <defaults>
</compile_context>

<pallas_src>
import numpy as np
import jax
import jax.numpy as jnp
from jax.experimental import pallas as pl
from jax.experimental.pallas import tpu as pltpu


# ----------------------------------------------------------------------------
# Trace-time operator builders: conv / conv-transpose as flat [K, N] matrices
# over channel-minor flattened images (flat index = (h*W + w)*C + c).
# ----------------------------------------------------------------------------
def _conv2d_flat(w_oihw, b, Hin, Win, stride, pad):
    """PyTorch Conv2d (weight [Co,Ci,kH,kW]) -> (Wflat [Hin*Win*Ci, Ho*Wo*Co], bias, Ho, Wo)."""
    Co, Ci, kH, kW = w_oihw.shape
    Ho = (Hin + 2 * pad - kH) // stride + 1
    Wo = (Win + 2 * pad - kW) // stride + 1
    Wf = np.zeros((Hin * Win * Ci, Ho * Wo * Co), np.float32)
    for ho in range(Ho):
        for ky in range(kH):
            hi = ho * stride + ky - pad
            if not (0 <= hi < Hin):
                continue
            for wo in range(Wo):
                for kx in range(kW):
                    wi = wo * stride + kx - pad
                    if not (0 <= wi < Win):
                        continue
                    r0 = (hi * Win + wi) * Ci
                    c0 = (ho * Wo + wo) * Co
                    Wf[r0:r0 + Ci, c0:c0 + Co] += w_oihw[:, :, ky, kx].T
    bias = np.tile(np.asarray(b, np.float32), Ho * Wo)
    return Wf, bias, Ho, Wo


def _convT2d_flat(w_iohw, b, Hin, Win, stride, pad, out_pad):
    """PyTorch ConvTranspose2d (weight [Ci,Co,kH,kW]) -> flat operator (scatter form)."""
    Ci, Co, kH, kW = w_iohw.shape
    Ho = (Hin - 1) * stride - 2 * pad + kH + out_pad
    Wo = (Win - 1) * stride - 2 * pad + kW + out_pad
    Wf = np.zeros((Hin * Win * Ci, Ho * Wo * Co), np.float32)
    for hi in range(Hin):
        for ky in range(kH):
            ho = hi * stride + ky - pad
            if not (0 <= ho < Ho):
                continue
            for wi in range(Win):
                for kx in range(kW):
                    wo = wi * stride + kx - pad
                    if not (0 <= wo < Wo):
                        continue
                    r0 = (hi * Win + wi) * Ci
                    c0 = (ho * Wo + wo) * Co
                    Wf[r0:r0 + Ci, c0:c0 + Co] += w_iohw[:, :, ky, kx]
    bias = np.tile(np.asarray(b, np.float32), Ho * Wo)
    return Wf, bias, Ho, Wo


def _fold_bn_conv(w_oihw, b, gamma, beta, rmean, rvar, eps=1e-5):
    s = gamma / np.sqrt(rvar + eps)
    t = beta - rmean * s
    return w_oihw * s[:, None, None, None], b * s + t


def _fold_bn_convT(w_iohw, b, gamma, beta, rmean, rvar, eps=1e-5):
    s = gamma / np.sqrt(rvar + eps)
    t = beta - rmean * s
    return w_iohw * s[None, :, None, None], b * s + t


def build_vae_params(raw, seq_enc_w, seq_enc_b, seq_dec_w, seq_dec_b, img_w):
    """Build the 10-layer flat-operator parameter set (weights pre-cast to bf16 ONCE)."""
    f = lambda a: np.asarray(a, np.float32)
    layers = []  # (Wflat f32 [K, N], bias f32 [N], activation)

    # 0) sequence encoder dense surrogate  [L*Cin -> H*W]
    # TODO(synk): DNAEncoder source not provided; approximated by a dense projection.
    layers.append((f(seq_enc_w), f(seq_enc_b), "none"))

    H = W = img_w
    # 1) encoder Conv2d(1->4, k3, s2, p1) + BN (folded) + LeakyReLU
    w, b = _fold_bn_conv(f(raw["enc1_w"]), f(raw["enc1_b"]), *map(f, raw["bn1"]))
    Wf, bf, H, W = _conv2d_flat(w, b, H, W, 2, 1)
    layers.append((Wf, bf, "lrelu"))
    # 2) encoder Conv2d(4->8, k3, s2, p1) + BN (folded) + LeakyReLU
    w, b = _fold_bn_conv(f(raw["enc2_w"]), f(raw["enc2_b"]), *map(f, raw["bn2"]))
    Wf, bf, H, W = _conv2d_flat(w, b, H, W, 2, 1)
    layers.append((Wf, bf, "lrelu"))
    # 3/4) latent_encoder Conv2d(8->8, k1), channel-chunked into mean / logvar halves
    wl, bl = f(raw["latenc_w"]), f(raw["latenc_b"])
    half = wl.shape[0] // 2
    for sl in (slice(0, half), slice(half, 2 * half)):
        Wf, bf, _, _ = _conv2d_flat(wl[sl], bl[sl], H, W, 1, 0)
        layers.append((Wf, bf, "none"))
    # 5) latent_decoder Conv2d(4->8, k1)
    Wf, bf, _, _ = _conv2d_flat(f(raw["latdec_w"]), f(raw["latdec_b"]), H, W, 1, 0)
    layers.append((Wf, bf, "none"))
    # 6) decoder ConvTranspose2d(8->4, k3, s2, p1, op1) + BN (folded) + LeakyReLU
    w, b = _fold_bn_convT(f(raw["dec1_w"]), f(raw["dec1_b"]), *map(f, raw["bn3"]))
    Wf, bf, H, W = _convT2d_flat(w, b, H, W, 2, 1, 1)
    layers.append((Wf, bf, "lrelu"))
    # 7) final ConvTranspose2d(4->4, k3, s2, p1, op1) + BN (folded) + LeakyReLU
    w, b = _fold_bn_convT(f(raw["fin1_w"]), f(raw["fin1_b"]), *map(f, raw["bn4"]))
    Wf, bf, H, W = _convT2d_flat(w, b, H, W, 2, 1, 1)
    layers.append((Wf, bf, "lrelu"))
    # 8) final Conv2d(4->1, k3, p1) + Tanh
    Wf, bf, H, W = _conv2d_flat(f(raw["fin2_w"]), f(raw["fin2_b"]), H, W, 1, 1)
    layers.append((Wf, bf, "tanh"))
    assert (H, W) == (img_w, img_w)

    # 9) sequence decoder dense surrogate  [H*W -> L*Cin]
    # TODO(synk): DNADecoder source not provided; approximated by a dense projection.
    layers.append((f(seq_dec_w), f(seq_dec_b), "none"))

    dims = [(w.shape[0], w.shape[1]) for w, _, _ in layers]
    acts = [a for _, _, a in layers]
    max_n = max(n for _, n in dims)
    bias_np = np.zeros((len(layers), max_n), np.float32)
    for i, (_, bvec, _) in enumerate(layers):
        bias_np[i, :bvec.shape[0]] = bvec

    return {
        "weights": [jnp.asarray(w, dtype=jnp.bfloat16) for w, _, _ in layers],
        "bias_slab": jnp.asarray(bias_np),
        "dims": dims,
        "acts": acts,
        "img_w": img_w,
        "am": img_w // 4,  # seq2img_img_width / 2**len(hidden_dims)
    }


# ----------------------------------------------------------------------------
# The fused forward kernel (one pallas_call, grid over batch blocks)
# ----------------------------------------------------------------------------
def _fused_vae_call(params, x_flat, eps_flat):
    nb, bb, Kin = x_flat.shape
    NL = eps_flat.shape[-1]                        # am*am*4 latent elements
    weights = params["weights"]
    bias = params["bias_slab"]
    dims = params["dims"]
    acts = params["acts"]
    n_w = len(weights)
    Kout = dims[-1][1]
    assert dims[0][0] == Kin and dims[3][1] == NL

    def kernel(*refs):
        x_ref, eps_ref = refs[0], refs[1]
        w_refs = refs[2:2 + n_w]
        b_ref = refs[2 + n_w]
        recon_ref = refs[3 + n_w]
        ml_ref = refs[4 + n_w]

        def dense(a, li):
            n = dims[li][1]
            y = jnp.dot(a.astype(jnp.bfloat16), w_refs[li][...],
                        preferred_element_type=jnp.float32)
            y = y + b_ref[li:li + 1, 0:n]          # f32 bias epilogue
            if acts[li] == "lrelu":
                y = jnp.where(y >= 0.0, y, 0.01 * y)   # nn.LeakyReLU() default slope
            elif acts[li] == "tanh":
                y = jnp.tanh(y)
            return y

        h = dense(x_ref[0], 0)                     # seq encoder (dense surrogate)
        a = dense(h, 1)                            # enc Conv+BN+LReLU
        a = dense(a, 2)                            # enc Conv+BN+LReLU
        mean = dense(a, 3)                         # latent_encoder -> mean channels
        logvar = jnp.clip(dense(a, 4), -30.0, 20.0)  # -> logvar channels (clamped)
        z = mean + jnp.exp(0.5 * logvar) * eps_ref[0]  # dist.sample()
        d = dense(z, 5)                            # latent_decoder (1x1)
        d = dense(d, 6)                            # ConvT+BN+LReLU
        d = dense(d, 7)                            # ConvT+BN+LReLU
        img = dense(d, 8)                          # Conv + Tanh  ([bb, H*W])
        recon_ref[0] = dense(img, 9)               # seq decoder (dense surrogate)
        ml_ref[0] = jnp.concatenate([mean, logvar], axis=-1)   # lane-dense 2*NL slab

    in_specs = (
        [pl.BlockSpec((1, bb, Kin), lambda i: (i, 0, 0)),
         pl.BlockSpec((1, bb, NL), lambda i: (i, 0, 0))]
        + [pl.BlockSpec(w.shape, lambda i: (0, 0)) for w in weights]
        + [pl.BlockSpec(bias.shape, lambda i: (0, 0))]
    )
    out_shape = (
        jax.ShapeDtypeStruct((nb, bb, Kout), jnp.float32),
        jax.ShapeDtypeStruct((nb, bb, 2 * NL), jnp.float32),
    )
    out_specs = (
        pl.BlockSpec((1, bb, Kout), lambda i: (i, 0, 0)),
        pl.BlockSpec((1, bb, 2 * NL), lambda i: (i, 0, 0)),
    )

    flops = 2 * nb * bb * sum(k * n for k, n in dims)
    w_bytes = sum(int(np.prod(w.shape)) for w in weights) * 2
    bytes_accessed = (w_bytes + int(bias.size) * 4 + int(x_flat.size) * 2
                      + int(eps_flat.size) * 4 + nb * bb * (Kout + 2 * NL) * 4)

    return pl.pallas_call(
        kernel,
        out_shape=out_shape,
        grid_spec=pltpu.PrefetchScalarGridSpec(
            num_scalar_prefetch=0,
            grid=(nb,),
            in_specs=in_specs,
            out_specs=out_specs,
        ),
        compiler_params=pltpu.CompilerParams(
            # nb >= 2 when B is even, so v7x's two TensorCores both get a batch block.
            dimension_semantics=("parallel",),
            # ~2.4 MB of bf16 weights (x2 for double-buffering) + tiny activations:
            # comfortably under every generation's VMEM budget (64 MiB on v7x).
            vmem_limit_bytes=32 * 1024 * 1024,
        ),
        cost_estimate=pl.CostEstimate(
            flops=flops,
            transcendentals=nb * bb * (NL + dims[8][1]),
            bytes_accessed=bytes_accessed,
        ),
    )(x_flat, eps_flat, *weights, bias)


# ----------------------------------------------------------------------------
# VanillaVAE forward wrapper
# ----------------------------------------------------------------------------
def vanilla_vae_forward(params, x, eps):
    B, L, Cin = x.shape
    am = params["am"]
    NL = am * am * 4

    # >= 2 parallel batch blocks when possible (v7x megacore); single block otherwise.
    nb = 2 if (B >= 2 and B % 2 == 0) else 1
    bb = B // nb

    x_flat = x.reshape(nb, bb, L * Cin).astype(jnp.bfloat16)
    eps_flat = eps.reshape(nb, bb, NL).astype(jnp.float32)

    recon_flat, ml_flat = _fused_vae_call(params, x_flat, eps_flat)

    recon = recon_flat.reshape(B, L, Cin)
    ml = ml_flat.reshape(B, 2 * NL)
    mean = ml[:, :NL].reshape(B, am, am, 4)
    logvar = ml[:, NL:].reshape(B, am, am, 4)      # clamped logvar (matches dist)
    return recon, mean, logvar


# ----------------------------------------------------------------------------
# Main
# ----------------------------------------------------------------------------
def _bn_raw(key, c):
    k1, k2, k3, k4 = jax.random.split(key, 4)
    gamma = 1.0 + 0.1 * jax.random.normal(k1, (c,), jnp.float32)
    beta = 0.1 * jax.random.normal(k2, (c,), jnp.float32)
    rmean = 0.1 * jax.random.normal(k3, (c,), jnp.float32)
    rvar = 1.0 + 0.1 * jax.random.uniform(k4, (c,), jnp.float32)
    return gamma, beta, rmean, rvar


if __name__ == "__main__":
    # Small analog of the real model: seq [B, 256, 4] instead of [B, 2048, 4],
    # seq2img_img_width=16 instead of 64, hidden_dims=[4, 8], layer_per_block=0.
    B, L, CIN = 2, 256, 4
    W_IMG = 16
    AM = W_IMG // 4  # activation_map_size = 4

    root = jax.random.PRNGKey(0)
    ks = jax.random.split(root, 24)

    def nrm(k, shape, s=0.1):
        return s * jax.random.normal(k, shape, jnp.float32)

    raw = {
        # PyTorch weight layouts: Conv2d [Co,Ci,kH,kW], ConvTranspose2d [Ci,Co,kH,kW]
        "enc1_w": nrm(ks[0], (4, 1, 3, 3)), "enc1_b": nrm(ks[1], (4,)),
        "bn1": _bn_raw(ks[2], 4),
        "enc2_w": nrm(ks[3], (8, 4, 3, 3)), "enc2_b": nrm(ks[4], (8,)),
        "bn2": _bn_raw(ks[5], 8),
        "latenc_w": nrm(ks[6], (8, 8, 1, 1)), "latenc_b": nrm(ks[7], (8,)),
        "latdec_w": nrm(ks[8], (8, 4, 1, 1)), "latdec_b": nrm(ks[9], (8,)),
        "dec1_w": nrm(ks[10], (8, 4, 3, 3)), "dec1_b": nrm(ks[11], (4,)),
        "bn3": _bn_raw(ks[12], 4),
        "fin1_w": nrm(ks[13], (4, 4, 3, 3)), "fin1_b": nrm(ks[14], (4,)),
        "bn4": _bn_raw(ks[15], 4),
        "fin2_w": nrm(ks[16], (1, 4, 3, 3)), "fin2_b": nrm(ks[17], (1,)),
    }

    seq_enc_w = 0.02 * jax.random.normal(ks[18], (L * CIN, W_IMG * W_IMG), jnp.float32)
    seq_enc_b = jnp.zeros((W_IMG * W_IMG,), jnp.float32)
    seq_dec_w = 0.02 * jax.random.normal(ks[19], (W_IMG * W_IMG, L * CIN), jnp.float32)
    seq_dec_b = jnp.zeros((L * CIN,), jnp.float32)

    params = build_vae_params(
        raw,
        np.asarray(seq_enc_w), np.asarray(seq_enc_b),
        np.asarray(seq_dec_w), np.asarray(seq_dec_b),
        W_IMG,
    )

    x = jax.random.normal(ks[20], (B, L, CIN), jnp.float32)
    eps = jax.random.normal(ks[21], (B, AM, AM, 4), jnp.float32)

    fwd = jax.jit(lambda xx, ee: vanilla_vae_forward(params, xx, ee))
    recon, mean, logvar = fwd(x, eps)
    jax.block_until_ready((recon, mean, logvar))

    assert recon.shape == (B, L, CIN)
    assert mean.shape == (B, AM, AM, 4)
    assert logvar.shape == (B, AM, AM, 4)
    assert bool(jnp.all(jnp.isfinite(recon)))
    assert bool(jnp.all(jnp.isfinite(mean)))
    assert bool(jnp.all(jnp.isfinite(logvar)))
    print("KERNEL_OK")
</pallas_src>

<mosaic_0001>
module attributes {stable_mosaic.version = 11 : i64} {
  func.func @kernel(%arg0: i32, %arg1: memref<1x1x1024xbf16, #tpu.memory_space<vmem>>, %arg2: memref<1x1x64xf32, #tpu.memory_space<vmem>>, %arg3: memref<1024x256xbf16, #tpu.memory_space<vmem>>, %arg4: memref<256x256xbf16, #tpu.memory_space<vmem>>, %arg5: memref<256x128xbf16, #tpu.memory_space<vmem>>, %arg6: memref<128x64xbf16, #tpu.memory_space<vmem>>, %arg7: memref<128x64xbf16, #tpu.memory_space<vmem>>, %arg8: memref<64x128xbf16, #tpu.memory_space<vmem>>, %arg9: memref<128x256xbf16, #tpu.memory_space<vmem>>, %arg10: memref<256x1024xbf16, #tpu.memory_space<vmem>>, %arg11: memref<1024x256xbf16, #tpu.memory_space<vmem>>, %arg12: memref<256x1024xbf16, #tpu.memory_space<vmem>>, %arg13: memref<10x1024xf32, #tpu.memory_space<vmem>>, %arg14: memref<1x1x1024xf32, #tpu.memory_space<vmem>>, %arg15: memref<1x1x128xf32, #tpu.memory_space<vmem>>) attributes {dimension_semantics = [#tpu.dimension_semantics<parallel>], iteration_bounds = array<i64: 2>, scalar_prefetch = 0 : i64, scratch_operands = 0 : i64, tpu.core_type = #tpu.core_type<tc>, window_params = [{transform_indices = @transform_0, window_bounds = array<i64: 1, 1, 1024>}, {transform_indices = @transform_1, window_bounds = array<i64: 1, 1, 64>}, {pipeline_mode = #tpu.pipeline_mode<synchronous>, transform_indices = @transform_2, window_bounds = array<i64: 1024, 256>}, {pipeline_mode = #tpu.pipeline_mode<synchronous>, transform_indices = @transform_3, window_bounds = array<i64: 256, 256>}, {pipeline_mode = #tpu.pipeline_mode<synchronous>, transform_indices = @transform_4, window_bounds = array<i64: 256, 128>}, {pipeline_mode = #tpu.pipeline_mode<synchronous>, transform_indices = @transform_5, window_bounds = array<i64: 128, 64>}, {pipeline_mode = #tpu.pipeline_mode<synchronous>, transform_indices = @transform_6, window_bounds = array<i64: 128, 64>}, {pipeline_mode = #tpu.pipeline_mode<synchronous>, transform_indices = @transform_7, window_bounds = array<i64: 64, 128>}, {pipeline_mode = #tpu.pipeline_mode<synchronous>, transform_indices = @transform_8, window_bounds = array<i64: 128, 256>}, {pipeline_mode = #tpu.pipeline_mode<synchronous>, transform_indices = @transform_9, window_bounds = array<i64: 256, 1024>}, {pipeline_mode = #tpu.pipeline_mode<synchronous>, transform_indices = @transform_10, window_bounds = array<i64: 1024, 256>}, {pipeline_mode = #tpu.pipeline_mode<synchronous>, transform_indices = @transform_11, window_bounds = array<i64: 256, 1024>}, {pipeline_mode = #tpu.pipeline_mode<synchronous>, transform_indices = @transform_12, window_bounds = array<i64: 10, 1024>}, {transform_indices = @transform_13, window_bounds = array<i64: 1, 1, 1024>}, {transform_indices = @transform_14, window_bounds = array<i64: 1, 1, 128>}]} {
    %c0 = arith.constant 0 : index
    %c0_0 = arith.constant 0 : index
    %c0_1 = arith.constant 0 : index
    %0 = vector.load %arg1[%c0, %c0_0, %c0_1] : memref<1x1x1024xbf16, #tpu.memory_space<vmem>>, vector<1x1x1024xbf16>
    %1 = vector.shape_cast %0 : vector<1x1x1024xbf16> to vector<1x1024xbf16>
    %c0_2 = arith.constant 0 : index
    %c0_3 = arith.constant 0 : index
    %2 = vector.load %arg3[%c0_2, %c0_3] : memref<1024x256xbf16, #tpu.memory_space<vmem>>, vector<1024x256xbf16>
    %cst = arith.constant dense<0.000000e+00> : vector<1x256xf32>
    %3 = tpu.matmul %1, %2, %cst {dimension_numbers = #tpu.dot_dimension_numbers<[1], [0], [0], [1], [0, 0, 1, 1], [], []>} : vector<1x1024xbf16>, vector<1024x256xbf16>, vector<1x256xf32> -> vector<1x256xf32>
    %c0_4 = arith.constant 0 : index
    %c0_5 = arith.constant 0 : index
    %4 = vector.load %arg13[%c0_4, %c0_5] : memref<10x1024xf32, #tpu.memory_space<vmem>>, vector<1x256xf32>
    %5 = arith.addf %3, %4 : vector<1x256xf32>
    %6 = arith.truncf %5 : vector<1x256xf32> to vector<1x256xbf16>
    %c0_6 = arith.constant 0 : index
    %c0_7 = arith.constant 0 : index
    %7 = vector.load %arg4[%c0_6, %c0_7] : memref<256x256xbf16, #tpu.memory_space<vmem>>, vector<256x256xbf16>
    %cst_8 = arith.constant dense<0.000000e+00> : vector<1x256xf32>
    %8 = tpu.matmul %6, %7, %cst_8 {dimension_numbers = #tpu.dot_dimension_numbers<[1], [0], [0], [1], [0, 0, 1, 1], [], []>} : vector<1x256xbf16>, vector<256x256xbf16>, vector<1x256xf32> -> vector<1x256xf32>
    %c1 = arith.constant 1 : index
    %c0_9 = arith.constant 0 : index
    %9 = vector.load %arg13[%c1, %c0_9] : memref<10x1024xf32, #tpu.memory_space<vmem>>, vector<1x256xf32>
    %10 = arith.addf %8, %9 : vector<1x256xf32>
    %cst_10 = arith.constant 0.000000e+00 : f32
    %11 = vector.broadcast %cst_10 : f32 to vector<1x256xf32>
    %12 = arith.cmpf oge, %10, %11 : vector<1x256xf32>
    %cst_11 = arith.constant 0.00999999977 : f32
    %13 = vector.broadcast %cst_11 : f32 to vector<1x256xf32>
    %14 = arith.mulf %13, %10 : vector<1x256xf32>
    %15 = arith.select %12, %10, %14 : vector<1x256xi1>, vector<1x256xf32>
    %16 = arith.truncf %15 : vector<1x256xf32> to vector<1x256xbf16>
    %c0_12 = arith.constant 0 : index
    %c0_13 = arith.constant 0 : index
    %17 = vector.load %arg5[%c0_12, %c0_13] : memref<256x128xbf16, #tpu.memory_space<vmem>>, vector<256x128xbf16>
    %cst_14 = arith.constant dense<0.000000e+00> : vector<1x128xf32>
    %18 = tpu.matmul %16, %17, %cst_14 {dimension_numbers = #tpu.dot_dimension_numbers<[1], [0], [0], [1], [0, 0, 1, 1], [], []>} : vector<1x256xbf16>, vector<256x128xbf16>, vector<1x128xf32> -> vector<1x128xf32>
    %c2 = arith.constant 2 : index
    %c0_15 = arith.constant 0 : index
    %19 = vector.load %arg13[%c2, %c0_15] : memref<10x1024xf32, #tpu.memory_space<vmem>>, vector<1x128xf32>
    %20 = arith.addf %18, %19 : vector<1x128xf32>
    %cst_16 = arith.constant 0.000000e+00 : f32
    %21 = vector.broadcast %cst_16 : f32 to vector<1x128xf32>
    %22 = arith.cmpf oge, %20, %21 : vector<1x128xf32>
    %cst_17 = arith.constant 0.00999999977 : f32
    %23 = vector.broadcast %cst_17 : f32 to vector<1x128xf32>
    %24 = arith.mulf %23, %20 : vector<1x128xf32>
    %25 = arith.select %22, %20, %24 : vector<1x128xi1>, vector<1x128xf32>
    %26 = arith.truncf %25 : vector<1x128xf32> to vector<1x128xbf16>
    %c0_18 = arith.constant 0 : index
    %c0_19 = arith.constant 0 : index
    %27 = vector.load %arg6[%c0_18, %c0_19] : memref<128x64xbf16, #tpu.memory_space<vmem>>, vector<128x64xbf16>
    %cst_20 = arith.constant dense<0.000000e+00> : vector<1x64xf32>
    %28 = tpu.matmul %26, %27, %cst_20 {dimension_numbers = #tpu.dot_dimension_numbers<[1], [0], [0], [1], [0, 0, 1, 1], [], []>} : vector<1x128xbf16>, vector<128x64xbf16>, vector<1x64xf32> -> vector<1x64xf32>
    %c3 = arith.constant 3 : index
    %c0_21 = arith.constant 0 : index
    %29 = vector.load %arg13[%c3, %c0_21] : memref<10x1024xf32, #tpu.memory_space<vmem>>, vector<1x64xf32>
    %30 = arith.addf %28, %29 : vector<1x64xf32>
    %31 = arith.truncf %25 : vector<1x128xf32> to vector<1x128xbf16>
    %c0_22 = arith.constant 0 : index
    %c0_23 = arith.constant 0 : index
    %32 = vector.load %arg7[%c0_22, %c0_23] : memref<128x64xbf16, #tpu.memory_space<vmem>>, vector<128x64xbf16>
    %cst_24 = arith.constant dense<0.000000e+00> : vector<1x64xf32>
    %33 = tpu.matmul %31, %32, %cst_24 {dimension_numbers = #tpu.dot_dimension_numbers<[1], [0], [0], [1], [0, 0, 1, 1], [], []>} : vector<1x128xbf16>, vector<128x64xbf16>, vector<1x64xf32> -> vector<1x64xf32>
    %c4 = arith.constant 4 : index
    %c0_25 = arith.constant 0 : index
    %34 = vector.load %arg13[%c4, %c0_25] : memref<10x1024xf32, #tpu.memory_space<vmem>>, vector<1x64xf32>
    %35 = arith.addf %33, %34 : vector<1x64xf32>
    %cst_26 = arith.constant -3.000000e+01 : f32
    %cst_27 = arith.constant 2.000000e+01 : f32
    %36 = vector.broadcast %cst_26 : f32 to vector<1x64xf32>
    %37 = arith.maximumf %36, %35 : vector<1x64xf32>
    %38 = vector.broadcast %cst_27 : f32 to vector<1x64xf32>
    %39 = arith.minimumf %38, %37 : vector<1x64xf32>
    %cst_28 = arith.constant 5.000000e-01 : f32
    %40 = vector.broadcast %cst_28 : f32 to vector<1x64xf32>
    %41 = arith.mulf %40, %39 : vector<1x64xf32>
    %42 = math.exp %41 : vector<1x64xf32>
    %c0_29 = arith.constant 0 : index
    %c0_30 = arith.constant 0 : index
    %c0_31 = arith.constant 0 : index
    %43 = vector.load %arg2[%c0_29, %c0_30, %c0_31] : memref<1x1x64xf32, #tpu.memory_space<vmem>>, vector<1x1x64xf32>
    %44 = vector.shape_cast %43 : vector<1x1x64xf32> to vector<1x64xf32>
    %45 = arith.mulf %42, %44 : vector<1x64xf32>
    %46 = arith.addf %30, %45 : vector<1x64xf32>
    %47 = arith.truncf %46 : vector<1x64xf32> to vector<1x64xbf16>
    %c0_32 = arith.constant 0 : index
    %c0_33 = arith.constant 0 : index
    %48 = vector.load %arg8[%c0_32, %c0_33] : memref<64x128xbf16, #tpu.memory_space<vmem>>, vector<64x128xbf16>
    %cst_34 = arith.constant dense<0.000000e+00> : vector<1x128xf32>
    %49 = tpu.matmul %47, %48, %cst_34 {dimension_numbers = #tpu.dot_dimension_numbers<[1], [0], [0], [1], [0, 0, 1, 1], [], []>} : vector<1x64xbf16>, vector<64x128xbf16>, vector<1x128xf32> -> vector<1x128xf32>
    %c5 = arith.constant 5 : index
    %c0_35 = arith.constant 0 : index
    %50 = vector.load %arg13[%c5, %c0_35] : memref<10x1024xf32, #tpu.memory_space<vmem>>, vector<1x128xf32>
    %51 = arith.addf %49, %50 : vector<1x128xf32>
    %52 = arith.truncf %51 : vector<1x128xf32> to vector<1x128xbf16>
    %c0_36 = arith.constant 0 : index
    %c0_37 = arith.constant 0 : index
    %53 = vector.load %arg9[%c0_36, %c0_37] : memref<128x256xbf16, #tpu.memory_space<vmem>>, vector<128x256xbf16>
    %cst_38 = arith.constant dense<0.000000e+00> : vector<1x256xf32>
    %54 = tpu.matmul %52, %53, %cst_38 {dimension_numbers = #tpu.dot_dimension_numbers<[1], [0], [0], [1], [0, 0, 1, 1], [], []>} : vector<1x128xbf16>, vector<128x256xbf16>, vector<1x256xf32> -> vector<1x256xf32>
    %c6 = arith.constant 6 : index
    %c0_39 = arith.constant 0 : index
    %55 = vector.load %arg13[%c6, %c0_39] : memref<10x1024xf32, #tpu.memory_space<vmem>>, vector<1x256xf32>
    %56 = arith.addf %54, %55 : vector<1x256xf32>
    %cst_40 = arith.constant 0.000000e+00 : f32
    %57 = vector.broadcast %cst_40 : f32 to vector<1x256xf32>
    %58 = arith.cmpf oge, %56, %57 : vector<1x256xf32>
    %cst_41 = arith.constant 0.00999999977 : f32
    %59 = vector.broadcast %cst_41 : f32 to vector<1x256xf32>
    %60 = arith.mulf %59, %56 : vector<1x256xf32>
    %61 = arith.select %58, %56, %60 : vector<1x256xi1>, vector<1x256xf32>
    %62 = arith.truncf %61 : vector<1x256xf32> to vector<1x256xbf16>
    %c0_42 = arith.constant 0 : index
    %c0_43 = arith.constant 0 : index
    %63 = vector.load %arg10[%c0_42, %c0_43] : memref<256x1024xbf16, #tpu.memory_space<vmem>>, vector<256x1024xbf16>
    %cst_44 = arith.constant dense<0.000000e+00> : vector<1x1024xf32>
    %64 = tpu.matmul %62, %63, %cst_44 {dimension_numbers = #tpu.dot_dimension_numbers<[1], [0], [0], [1], [0, 0, 1, 1], [], []>} : vector<1x256xbf16>, vector<256x1024xbf16>, vector<1x1024xf32> -> vector<1x1024xf32>
    %c7 = arith.constant 7 : index
    %c0_45 = arith.constant 0 : index
    %65 = vector.load %arg13[%c7, %c0_45] : memref<10x1024xf32, #tpu.memory_space<vmem>>, vector<1x1024xf32>
    %66 = arith.addf %64, %65 : vector<1x1024xf32>
    %cst_46 = arith.constant 0.000000e+00 : f32
    %67 = vector.broadcast %cst_46 : f32 to vector<1x1024xf32>
    %68 = arith.cmpf oge, %66, %67 : vector<1x1024xf32>
    %cst_47 = arith.constant 0.00999999977 : f32
    %69 = vector.broadcast %cst_47 : f32 to vector<1x1024xf32>
    %70 = arith.mulf %69, %66 : vector<1x1024xf32>
    %71 = arith.select %68, %66, %70 : vector<1x1024xi1>, vector<1x1024xf32>
    %72 = arith.truncf %71 : vector<1x1024xf32> to vector<1x1024xbf16>
    %c0_48 = arith.constant 0 : index
    %c0_49 = arith.constant 0 : index
    %73 = vector.load %arg11[%c0_48, %c0_49] : memref<1024x256xbf16, #tpu.memory_space<vmem>>, vector<1024x256xbf16>
    %cst_50 = arith.constant dense<0.000000e+00> : vector<1x256xf32>
    %74 = tpu.matmul %72, %73, %cst_50 {dimension_numbers = #tpu.dot_dimension_numbers<[1], [0], [0], [1], [0, 0, 1, 1], [], []>} : vector<1x1024xbf16>, vector<1024x256xbf16>, vector<1x256xf32> -> vector<1x256xf32>
    %c8 = arith.constant 8 : index
    %c0_51 = arith.constant 0 : index
    %75 = vector.load %arg13[%c8, %c0_51] : memref<10x1024xf32, #tpu.memory_space<vmem>>, vector<1x256xf32>
    %76 = arith.addf %74, %75 : vector<1x256xf32>
    %77 = math.tanh %76 : vector<1x256xf32>
    %78 = arith.truncf %77 : vector<1x256xf32> to vector<1x256xbf16>
    %c0_52 = arith.constant 0 : index
    %c0_53 = arith.constant 0 : index
    %79 = vector.load %arg12[%c0_52, %c0_53] : memref<256x1024xbf16, #tpu.memory_space<vmem>>, vector<256x1024xbf16>
    %cst_54 = arith.constant dense<0.000000e+00> : vector<1x1024xf32>
    %80 = tpu.matmul %78, %79, %cst_54 {dimension_numbers = #tpu.dot_dimension_numbers<[1], [0], [0], [1], [0, 0, 1, 1], [], []>} : vector<1x256xbf16>, vector<256x1024xbf16>, vector<1x1024xf32> -> vector<1x1024xf32>
    %c9 = arith.constant 9 : index
    %c0_55 = arith.constant 0 : index
    %81 = vector.load %arg13[%c9, %c0_55] : memref<10x1024xf32, #tpu.memory_space<vmem>>, vector<1x1024xf32>
    %82 = arith.addf %80, %81 : vector<1x1024xf32>
    %c0_56 = arith.constant 0 : index
    %c0_57 = arith.constant 0 : index
    %c0_58 = arith.constant 0 : index
    %83 = vector.load %arg14[%c0_56, %c0_57, %c0_58] : memref<1x1x1024xf32, #tpu.memory_space<vmem>>, vector<1x1x1024xf32>
    %84 = vector.shape_cast %83 : vector<1x1x1024xf32> to vector<1x1024xf32>
    %85 = vector.shape_cast %82 : vector<1x1024xf32> to vector<1x1x1024xf32>
    tpu.vector_store %arg14[%c0_56, %c0_57, %c0_58], %85 {strides = array<i32>} : memref<1x1x1024xf32, #tpu.memory_space<vmem>>, vector<1x1x1024xf32>,
    %86 = tpu.concatenate %30, %39 in 1 : vector<1x64xf32>, vector<1x64xf32> -> vector<1x128xf32>
    %c0_59 = arith.constant 0 : index
    %c0_60 = arith.constant 0 : index
    %c0_61 = arith.constant 0 : index
    %87 = vector.load %arg15[%c0_59, %c0_60, %c0_61] : memref<1x1x128xf32, #tpu.memory_space<vmem>>, vector<1x1x128xf32>
    %88 = vector.shape_cast %87 : vector<1x1x128xf32> to vector<1x128xf32>
    %89 = vector.shape_cast %86 : vector<1x128xf32> to vector<1x1x128xf32>
    tpu.vector_store %arg15[%c0_59, %c0_60, %c0_61], %89 {strides = array<i32>} : memref<1x1x128xf32, #tpu.memory_space<vmem>>, vector<1x1x128xf32>,
    return
  }
  func.func @transform_0(%arg0: i32) -> (i32, i32, i32) {
    %c0_i32 = arith.constant 0 : i32
    %c0_i32_0 = arith.constant 0 : i32
    %c0_i32_1 = arith.constant 0 : i32
    return %arg0, %c0_i32, %c0_i32_0 : i32, i32, i32
  }
  func.func @transform_1(%arg0: i32) -> (i32, i32, i32) {
    %c0_i32 = arith.constant 0 : i32
    %c0_i32_0 = arith.constant 0 : i32
    %c0_i32_1 = arith.constant 0 : i32
    return %arg0, %c0_i32, %c0_i32_0 : i32, i32, i32
  }
  func.func @transform_2(%arg0: i32) -> (i32, i32) {
    %c0_i32 = arith.constant 0 : i32
    %c0_i32_0 = arith.constant 0 : i32
    %c0_i32_1 = arith.constant 0 : i32
    return %c0_i32, %c0_i32_0 : i32, i32
  }
  func.func @transform_3(%arg0: i32) -> (i32, i32) {
    %c0_i32 = arith.constant 0 : i32
    %c0_i32_0 = arith.constant 0 : i32
    %c0_i32_1 = arith.constant 0 : i32
    return %c0_i32, %c0_i32_0 : i32, i32
  }
  func.func @transform_4(%arg0: i32) -> (i32, i32) {
    %c0_i32 = arith.constant 0 : i32
    %c0_i32_0 = arith.constant 0 : i32
    %c0_i32_1 = arith.constant 0 : i32
    return %c0_i32, %c0_i32_0 : i32, i32
  }
  func.func @transform_5(%arg0: i32) -> (i32, i32) {
    %c0_i32 = arith.constant 0 : i32
    %c0_i32_0 = arith.constant 0 : i32
    %c0_i32_1 = arith.constant 0 : i32
    return %c0_i32, %c0_i32_0 : i32, i32
  }
  func.func @transform_6(%arg0: i32) -> (i32, i32) {
    %c0_i32 = arith.constant 0 : i32
    %c0_i32_0 = arith.constant 0 : i32
    %c0_i32_1 = arith.constant 0 : i32
    return %c0_i32, %c0_i32_0 : i32, i32
  }
  func.func @transform_7(%arg0: i32) -> (i32, i32) {
    %c0_i32 = arith.constant 0 : i32
    %c0_i32_0 = arith.constant 0 : i32
    %c0_i32_1 = arith.constant 0 : i32
    return %c0_i32, %c0_i32_0 : i32, i32
  }
  func.func @transform_8(%arg0: i32) -> (i32, i32) {
    %c0_i32 = arith.constant 0 : i32
    %c0_i32_0 = arith.constant 0 : i32
    %c0_i32_1 = arith.constant 0 : i32
    return %c0_i32, %c0_i32_0 : i32, i32
  }
  func.func @transform_9(%arg0: i32) -> (i32, i32) {
    %c0_i32 = arith.constant 0 : i32
    %c0_i32_0 = arith.constant 0 : i32
    %c0_i32_1 = arith.constant 0 : i32
    return %c0_i32, %c0_i32_0 : i32, i32
  }
  func.func @transform_10(%arg0: i32) -> (i32, i32) {
    %c0_i32 = arith.constant 0 : i32
    %c0_i32_0 = arith.constant 0 : i32
    %c0_i32_1 = arith.constant 0 : i32
    return %c0_i32, %c0_i32_0 : i32, i32
  }
  func.func @transform_11(%arg0: i32) -> (i32, i32) {
    %c0_i32 = arith.constant 0 : i32
    %c0_i32_0 = arith.constant 0 : i32
    %c0_i32_1 = arith.constant 0 : i32
    return %c0_i32, %c0_i32_0 : i32, i32
  }
  func.func @transform_12(%arg0: i32) -> (i32, i32) {
    %c0_i32 = arith.constant 0 : i32
    %c0_i32_0 = arith.constant 0 : i32
    %c0_i32_1 = arith.constant 0 : i32
    return %c0_i32, %c0_i32_0 : i32, i32
  }
  func.func @transform_13(%arg0: i32) -> (i32, i32, i32) {
    %c0_i32 = arith.constant 0 : i32
    %c0_i32_0 = arith.constant 0 : i32
    %c0_i32_1 = arith.constant 0 : i32
    return %arg0, %c0_i32, %c0_i32_0 : i32, i32, i32
  }
  func.func @transform_14(%arg0: i32) -> (i32, i32, i32) {
    %c0_i32 = arith.constant 0 : i32
    %c0_i32_0 = arith.constant 0 : i32
    %c0_i32_1 = arith.constant 0 : i32
    return %arg0, %c0_i32, %c0_i32_0 : i32, i32, i32
  }
}

</mosaic_0001>

<llo_original>
// kernel: _lambda_.1
$region0: #{_lambda_.1}
  #allocation0 [shape = 'u32[]', space=smem, size = 0x4, offset = 0x4, fixed_abs, tag = 'smem constant byte address 0x4 - core index']
  #allocation1 [shape = 'u32[144,128]{1,0:T(1,128)}', space=vmem, size = 0x12000, scoped, tag = 'internal scratch']
  %s0 = inlined_call_operand.vmem [shape: bf16[2,1,1024], index: 0, kind: input, shape index: {}]
  %s1 = inlined_call_operand.vmem [shape: f32[2,1,64], index: 1, kind: input, shape index: {}]
  %s2 = inlined_call_operand.vmem [shape: bf16[1024,256], index: 2, kind: input, shape index: {}]
  %s3 = inlined_call_operand.vmem [shape: bf16[256,256], index: 3, kind: input, shape index: {}]
  %s4 = inlined_call_operand.vmem [shape: bf16[256,128], index: 4, kind: input, shape index: {}]
  %s5 = inlined_call_operand.vmem [shape: bf16[128,64], index: 5, kind: input, shape index: {}]
  %s6 = inlined_call_operand.vmem [shape: bf16[128,64], index: 6, kind: input, shape index: {}]
  %s7 = inlined_call_operand.vmem [shape: bf16[64,128], index: 7, kind: input, shape index: {}]
  %s8 = inlined_call_operand.vmem [shape: bf16[128,256], index: 8, kind: input, shape index: {}]
  %s9 = inlined_call_operand.vmem [shape: bf16[256,1024], index: 9, kind: input, shape index: {}]
  %s10 = inlined_call_operand.vmem [shape: bf16[1024,256], index: 10, kind: input, shape index: {}]
  %s11 = inlined_call_operand.vmem [shape: bf16[256,1024], index: 11, kind: input, shape index: {}]
  %s12 = inlined_call_operand.vmem [shape: f32[10,1024], index: 12, kind: input, shape index: {}]
  %s13 = inlined_call_operand.vmem [shape: f32[2,1,1024], index: 13, kind: output, shape index: {0}]
  %s14 = inlined_call_operand.vmem [shape: f32[2,1,128], index: 14, kind: output, shape index: {1}]
  %15 = xla_tuple %s13, %s14
  %s16 = sld [smem:[#allocation0]]
  $region93: #{_lambda_.1} parent=0
    _
  %s18 = ssub.s32 1, %s16
  %s19 = scalar_select 0, %s18, %s16
  loop: start=0, step=1, limit=4
  $region2: #{_lambda_.1} parent=0 // loop_pre_header
    _
  $region3: #{_lambda_.1} parent=0 // loop_header
    %s21 = sphi 0, %s25
    %p22 = scmp.ge.s32.totalorder %s21, 4
    %s31 = sphi 0, %s33
    %s34 = sphi 0, %s31
    %s35 = sphi 0, %s34
    %s51 = sphi 0, %s35
    %s57 = sphi 0, %s59
    %s60 = sphi 0, %s57
    %s61 = sphi 0, %s60
    %s77 = sphi 0, %s61
    %s81 = sphi 0, %s81
    %s83 = sphi 0, %s81
    %s84 = sphi 0, %s83
    %s98 = sphi 0, %s84
    %s102 = sphi 0, %s102
    %s104 = sphi 0, %s102
    %s105 = sphi 0, %s104
    %s119 = sphi 0, %s105
    %s123 = sphi 0, %s123
    %s125 = sphi 0, %s123
    %s126 = sphi 0, %s125
    %s140 = sphi 0, %s126
    %s144 = sphi 0, %s144
    %s146 = sphi 0, %s144
    %s147 = sphi 0, %s146
    %s161 = sphi 0, %s147
    %s165 = sphi 0, %s165
    %s167 = sphi 0, %s165
    %s168 = sphi 0, %s167
    %s182 = sphi 0, %s168
    %s186 = sphi 0, %s186
    %s188 = sphi 0, %s186
    %s189 = sphi 0, %s188
    %s203 = sphi 0, %s189
    %s207 = sphi 0, %s207
    %s209 = sphi 0, %s207
    %s210 = sphi 0, %s209
    %s224 = sphi 0, %s210
    %s228 = sphi 0, %s228
    %s230 = sphi 0, %s228
    %s231 = sphi 0, %s230
    %s245 = sphi 0, %s231
    %s249 = sphi 0, %s249
    %s251 = sphi 0, %s249
    %s252 = sphi 0, %s251
    %s266 = sphi 0, %s252
    %s270 = sphi 0, %s270
    %s272 = sphi 0, %s270
    %s273 = sphi 0, %s272
    %s287 = sphi 0, %s273
    %s291 = sphi 0, %s291
    %s293 = sphi 0, %s291
    %s294 = sphi 0, %s293
    %s308 = sphi 0, %s294
    %s314 = sphi 0, %s316
    %s317 = sphi 0, %s314
    %s318 = sphi 0, %s317
    %s334 = sphi 0, %s318
    %s340 = sphi 0, %s342
    %s343 = sphi 0, %s340
    %s344 = sphi 0, %s343
    %s360 = sphi 0, %s344
  $region4: #{_lambda_.1} parent=0 // loop_header_branch
    %24 = sbr.rel (%p22) target = $region8
  $region5: #{_lambda_.1} parent=0 // loop_body
    %s26 = ssub.s32 %s21, 1
    %s27 = ssub.s32 %s21, 2
    %s28 = sadd.s32 %s21, 1
    %s29 = ssub.s32 %s21, %s28
    %p30 = scmp.eq.s32.totalorder %s29, 0
    %s32 = sadd.s32 %s31, 1
    %s33 = scalar_select %p30, %s31, %s32
    %p36 = pneg %p30
    %p37 = scmp.eq.s32.totalorder %s21, 1
    %p38 = por %p36, %p37
    %p39 = scmp.ne.s32.totalorder %s31, %s34
    %p40 = scmp.eq.s32.totalorder %s21, 0
    %p41 = por %p39, %p40
    %p42 = scmp.ne.s32.totalorder %s31, %s34
    %p43 = scmp.eq.s32.totalorder %s26, 1
    %p44 = por %p42, %p43
    %p45 = scmp.ne.s32.totalorder %s34, %s35
    %p46 = scmp.eq.s32.totalorder %s26, 0
    %p47 = por %p45, %p46
    %p48 = scmp.ne.s32.totalorder %s34, %s35
    %p49 = scmp.eq.s32.totalorder %s27, 1
    %p50 = por %p48, %p49
    %p52 = scmp.ne.s32.totalorder %s35, %s51
    %p53 = scmp.eq.s32.totalorder %s27, 0
    %p54 = por %p52, %p53
    %s55 = ssub.s32 %s21, %s28
    %p56 = scmp.eq.s32.totalorder %s55, 0
    %s58 = sadd.s32 %s57, 1
    %s59 = scalar_select %p56, %s57, %s58
    %p62 = pneg %p56
    %p63 = scmp.eq.s32.totalorder %s21, 1
    %p64 = por %p62, %p63
    %p65 = scmp.ne.s32.totalorder %s57, %s60
    %p66 = scmp.eq.s32.totalorder %s21, 0
    %p67 = por %p65, %p66
    %p68 = scmp.ne.s32.totalorder %s57, %s60
    %p69 = scmp.eq.s32.totalorder %s26, 1
    %p70 = por %p68, %p69
    %p71 = scmp.ne.s32.totalorder %s60, %s61
    %p72 = scmp.eq.s32.totalorder %s26, 0
    %p73 = por %p71, %p72
    %p74 = scmp.ne.s32.totalorder %s60, %s61
    %p75 = scmp.eq.s32.totalorder %s27, 1
    %p76 = por %p74, %p75
    %p78 = scmp.ne.s32.totalorder %s61, %s77
    %p79 = scmp.eq.s32.totalorder %s27, 0
    %p80 = por %p78, %p79
    %s82 = sadd.s32 %s81, 1
    %p85 = scmp.eq.s32.totalorder %s21, 1
    %p86 = scmp.ne.s32.totalorder %s81, %s83
    %p87 = scmp.eq.s32.totalorder %s21, 0
    %p88 = por %p86, %p87
    %p89 = scmp.ne.s32.totalorder %s81, %s83
    %p90 = scmp.eq.s32.totalorder %s26, 1
    %p91 = por %p89, %p90
    %p92 = scmp.ne.s32.totalorder %s83, %s84
    %p93 = scmp.eq.s32.totalorder %s26, 0
    %p94 = por %p92, %p93
    %p95 = scmp.ne.s32.totalorder %s83, %s84
    %p96 = scmp.eq.s32.totalorder %s27, 1
    %p97 = por %p95, %p96
    %p99 = scmp.ne.s32.totalorder %s84, %s98
    %p100 = scmp.eq.s32.totalorder %s27, 0
    %p101 = por %p99, %p100
    %s103 = sadd.s32 %s102, 1
    %p106 = scmp.eq.s32.totalorder %s21, 1
    %p107 = scmp.ne.s32.totalorder %s102, %s104
    %p108 = scmp.eq.s32.totalorder %s21, 0
    %p109 = por %p107, %p108
    %p110 = scmp.ne.s32.totalorder %s102, %s104
    %p111 = scmp.eq.s32.totalorder %s26, 1
    %p112 = por %p110, %p111
    %p113 = scmp.ne.s32.totalorder %s104, %s105
    %p114 = scmp.eq.s32.totalorder %s26, 0
    %p115 = por %p113, %p114
    %p116 = scmp.ne.s32.totalorder %s104, %s105
    %p117 = scmp.eq.s32.totalorder %s27, 1
    %p118 = por %p116, %p117
    %p120 = scmp.ne.s32.totalorder %s105, %s119
    %p121 = scmp.eq.s32.totalorder %s27, 0
    %p122 = por %p120, %p121
    %s124 = sadd.s32 %s123, 1
    %p127 = scmp.eq.s32.totalorder %s21, 1
    %p128 = scmp.ne.s32.totalorder %s123, %s125
    %p129 = scmp.eq.s32.totalorder %s21, 0
    %p130 = por %p128, %p129
    %p131 = scmp.ne.s32.totalorder %s123, %s125
    %p132 = scmp.eq.s32.totalorder %s26, 1
    %p133 = por %p131, %p132
    %p134 = scmp.ne.s32.totalorder %s125, %s126
    %p135 = scmp.eq.s32.totalorder %s26, 0
    %p136 = por %p134, %p135
    %p137 = scmp.ne.s32.totalorder %s125, %s126
    %p138 = scmp.eq.s32.totalorder %s27, 1
    %p139 = por %p137, %p138
    %p141 = scmp.ne.s32.totalorder %s126, %s140
    %p142 = scmp.eq.s32.totalorder %s27, 0
    %p143 = por %p141, %p142
    %s145 = sadd.s32 %s144, 1
    %p148 = scmp.eq.s32.totalorder %s21, 1
    %p149 = scmp.ne.s32.totalorder %s144, %s146
    %p150 = scmp.eq.s32.totalorder %s21, 0
    %p151 = por %p149, %p150
    %p152 = scmp.ne.s32.totalorder %s144, %s146
    %p153 = scmp.eq.s32.totalorder %s26, 1
    %p154 = por %p152, %p153
    %p155 = scmp.ne.s32.totalorder %s146, %s147
    %p156 = scmp.eq.s32.totalorder %s26, 0
    %p157 = por %p155, %p156
    %p158 = scmp.ne.s32.totalorder %s146, %s147
    %p159 = scmp.eq.s32.totalorder %s27, 1
    %p160 = por %p158, %p159
    %p162 = scmp.ne.s32.totalorder %s147, %s161
    %p163 = scmp.eq.s32.totalorder %s27, 0
    %p164 = por %p162, %p163
    %s166 = sadd.s32 %s165, 1
    %p169 = scmp.eq.s32.totalorder %s21, 1
    %p170 = scmp.ne.s32.totalorder %s165, %s167
    %p171 = scmp.eq.s32.totalorder %s21, 0
    %p172 = por %p170, %p171
    %p173 = scmp.ne.s32.totalorder %s165, %s167
    %p174 = scmp.eq.s32.totalorder %s26, 1
    %p175 = por %p173, %p174
    %p176 = scmp.ne.s32.totalorder %s167, %s168
    %p177 = scmp.eq.s32.totalorder %s26, 0
    %p178 = por %p176, %p177
    %p179 = scmp.ne.s32.totalorder %s167, %s168
    %p180 = scmp.eq.s32.totalorder %s27, 1
    %p181 = por %p179, %p180
    %p183 = scmp.ne.s32.totalorder %s168, %s182
    %p184 = scmp.eq.s32.totalorder %s27, 0
    %p185 = por %p183, %p184
    %s187 = sadd.s32 %s186, 1
    %p190 = scmp.eq.s32.totalorder %s21, 1
    %p191 = scmp.ne.s32.totalorder %s186, %s188
    %p192 = scmp.eq.s32.totalorder %s21, 0
    %p193 = por %p191, %p192
    %p194 = scmp.ne.s32.totalorder %s186, %s188
    %p195 = scmp.eq.s32.totalorder %s26, 1
    %p196 = por %p194, %p195
    %p197 = scmp.ne.s32.totalorder %s188, %s189
    %p198 = scmp.eq.s32.totalorder %s26, 0
    %p199 = por %p197, %p198
    %p200 = scmp.ne.s32.totalorder %s188, %s189
    %p201 = scmp.eq.s32.totalorder %s27, 1
    %p202 = por %p200, %p201
    %p204 = scmp.ne.s32.totalorder %s189, %s203
    %p205 = scmp.eq.s32.totalorder %s27, 0
    %p206 = por %p204, %p205
    %s208 = sadd.s32 %s207, 1
    %p211 = scmp.eq.s32.totalorder %s21, 1
    %p212 = scmp.ne.s32.totalorder %s207, %s209
    %p213 = scmp.eq.s32.totalorder %s21, 0
    %p214 = por %p212, %p213
    %p215 = scmp.ne.s32.totalorder %s207, %s209
    %p216 = scmp.eq.s32.totalorder %s26, 1
    %p217 = por %p215, %p216
    %p218 = scmp.ne.s32.totalorder %s209, %s210
    %p219 = scmp.eq.s32.totalorder %s26, 0
    %p220 = por %p218, %p219
    %p221 = scmp.ne.s32.totalorder %s209, %s210
    %p222 = scmp.eq.s32.totalorder %s27, 1
    %p223 = por %p221, %p222
    %p225 = scmp.ne.s32.totalorder %s210, %s224
    %p226 = scmp.eq.s32.totalorder %s27, 0
    %p227 = por %p225, %p226
    %s229 = sadd.s32 %s228, 1
    %p232 = scmp.eq.s32.totalorder %s21, 1
    %p233 = scmp.ne.s32.totalorder %s228, %s230
    %p234 = scmp.eq.s32.totalorder %s21, 0
    %p235 = por %p233, %p234
    %p236 = scmp.ne.s32.totalorder %s228, %s230
    %p237 = scmp.eq.s32.totalorder %s26, 1
    %p238 = por %p236, %p237
    %p239 = scmp.ne.s32.totalorder %s230, %s231
    %p240 = scmp.eq.s32.totalorder %s26, 0
    %p241 = por %p239, %p240
    %p242 = scmp.ne.s32.totalorder %s230, %s231
    %p243 = scmp.eq.s32.totalorder %s27, 1
    %p244 = por %p242, %p243
    %p246 = scmp.ne.s32.totalorder %s231, %s245
    %p247 = scmp.eq.s32.totalorder %s27, 0
    %p248 = por %p246, %p247
    %s250 = sadd.s32 %s249, 1
    %p253 = scmp.eq.s32.totalorder %s21, 1
    %p254 = scmp.ne.s32.totalorder %s249, %s251
    %p255 = scmp.eq.s32.totalorder %s21, 0
    %p256 = por %p254, %p255
    %p257 = scmp.ne.s32.totalorder %s249, %s251
    %p258 = scmp.eq.s32.totalorder %s26, 1
    %p259 = por %p257, %p258
    %p260 = scmp.ne.s32.totalorder %s251, %s252
    %p261 = scmp.eq.s32.totalorder %s26, 0
    %p262 = por %p260, %p261
    %p263 = scmp.ne.s32.totalorder %s251, %s252
    %p264 = scmp.eq.s32.totalorder %s27, 1
    %p265 = por %p263, %p264
    %p267 = scmp.ne.s32.totalorder %s252, %s266
    %p268 = scmp.eq.s32.totalorder %s27, 0
    %p269 = por %p267, %p268
    %s271 = sadd.s32 %s270, 1
    %p274 = scmp.eq.s32.totalorder %s21, 1
    %p275 = scmp.ne.s32.totalorder %s270, %s272
    %p276 = scmp.eq.s32.totalorder %s21, 0
    %p277 = por %p275, %p276
    %p278 = scmp.ne.s32.totalorder %s270, %s272
    %p279 = scmp.eq.s32.totalorder %s26, 1
    %p280 = por %p278, %p279
    %p281 = scmp.ne.s32.totalorder %s272, %s273
    %p282 = scmp.eq.s32.totalorder %s26, 0
    %p283 = por %p281, %p282
    %p284 = scmp.ne.s32.totalorder %s272, %s273
    %p285 = scmp.eq.s32.totalorder %s27, 1
    %p286 = por %p284, %p285
    %p288 = scmp.ne.s32.totalorder %s273, %s287
    %p289 = scmp.eq.s32.totalorder %s27, 0
    %p290 = por %p288, %p289
    %s292 = sadd.s32 %s291, 1
    %p295 = scmp.eq.s32.totalorder %s21, 1
    %p296 = scmp.ne.s32.totalorder %s291, %s293
    %p297 = scmp.eq.s32.totalorder %s21, 0
    %p298 = por %p296, %p297
    %p299 = scmp.ne.s32.totalorder %s291, %s293
    %p300 = scmp.eq.s32.totalorder %s26, 1
    %p301 = por %p299, %p300
    %p302 = scmp.ne.s32.totalorder %s293, %s294
    %p303 = scmp.eq.s32.totalorder %s26, 0
    %p304 = por %p302, %p303
    %p305 = scmp.ne.s32.totalorder %s293, %s294
    %p306 = scmp.eq.s32.totalorder %s27, 1
    %p307 = por %p305, %p306
    %p309 = scmp.ne.s32.totalorder %s294, %s308
    %p310 = scmp.eq.s32.totalorder %s27, 0
    %p311 = por %p309, %p310
    %s312 = ssub.s32 %s21, %s28
    %p313 = scmp.eq.s32.totalorder %s312, 0
    %s315 = sadd.s32 %s314, 1
    %s316 = scalar_select %p313, %s314, %s315
    %p319 = pneg %p313
    %p320 = scmp.eq.s32.totalorder %s21, 1
    %p321 = por %p319, %p320
    %p322 = scmp.ne.s32.totalorder %s314, %s317
    %p323 = scmp.eq.s32.totalorder %s21, 0
    %p324 = por %p322, %p323
    %p325 = scmp.ne.s32.totalorder %s314, %s317
    %p326 = scmp.eq.s32.totalorder %s26, 1
    %p327 = por %p325, %p326
    %p328 = scmp.ne.s32.totalorder %s317, %s318
    %p329 = scmp.eq.s32.totalorder %s26, 0
    %p330 = por %p328, %p329
    %p331 = scmp.ne.s32.totalorder %s317, %s318
    %p332 = scmp.eq.s32.totalorder %s27, 1
    %p333 = por %p331, %p332
    %p335 = scmp.ne.s32.totalorder %s318, %s334
    %p336 = scmp.eq.s32.totalorder %s27, 0
    %p337 = por %p335, %p336
    %s338 = ssub.s32 %s21, %s28
    %p339 = scmp.eq.s32.totalorder %s338, 0
    %s341 = sadd.s32 %s340, 1
    %s342 = scalar_select %p339, %s340, %s341
    %p345 = pneg %p339
    %p346 = scmp.eq.s32.totalorder %s21, 1
    %p347 = por %p345, %p346
    %p348 = scmp.ne.s32.totalorder %s340, %s343
    %p349 = scmp.eq.s32.totalorder %s21, 0
    %p350 = por %p348, %p349
    %p351 = scmp.ne.s32.totalorder %s340, %s343
    %p352 = scmp.eq.s32.totalorder %s26, 1
    %p353 = por %p351, %p352
    %p354 = scmp.ne.s32.totalorder %s343, %s344
    %p355 = scmp.eq.s32.totalorder %s26, 0
    %p356 = por %p354, %p355
    %p357 = scmp.ne.s32.totalorder %s343, %s344
    %p358 = scmp.eq.s32.totalorder %s27, 1
    %p359 = por %p357, %p358
    %p361 = scmp.ne.s32.totalorder %s344, %s360
    %p362 = scmp.eq.s32.totalorder %s27, 0
    %p363 = por %p361, %p362
    %p364 = scmp.le.s32.totalorder 1, %s21
    %p365 = scmp.lt.s32.totalorder %s21, 3
    %p366 = pnand %p364, %p365
    %p367 = pneg %p366
    // Predicated region
    $region9: #{_lambda_.1} parent=5 // pred_check
      _
    $region10: #{_lambda_.1} parent=5 // pred_check_branch
      %369 = sbr.rel (%p366) target = $region12
    $region11: #{_lambda_.1} parent=5 // pred_region
      %s370 = ssub.s32 %s21, 1
      // Predicated region
      $region13: #{_lambda_.1} parent=11 // pred_check
        %p371 = pneg %p94
      $region14: #{_lambda_.1} parent=11 // pred_check_branch
        %373 = sbr.rel (%p371) target = $region16
      $region15: #{_lambda_.1} parent=11 // pred_region
        _
      $region16: #{_lambda_.1} parent=11 // pred_fallthru
        _
      // Predicated region
      $region17: #{_lambda_.1} parent=11 // pred_check
        %p374 = pneg %p115
      $region18: #{_lambda_.1} parent=11 // pred_check_branch
        %376 = sbr.rel (%p374) target = $region20
      $region19: #{_lambda_.1} parent=11 // pred_region
        _
      $region20: #{_lambda_.1} parent=11 // pred_fallthru
        _
      // Predicated region
      $region21: #{_lambda_.1} parent=11 // pred_check
        %p377 = pneg %p136
      $region22: #{_lambda_.1} parent=11 // pred_check_branch
        %379 = sbr.rel (%p377) target = $region24
      $region23: #{_lambda_.1} parent=11 // pred_region
        _
      $region24: #{_lambda_.1} parent=11 // pred_fallthru
        _
      // Predicated region
      $region25: #{_lambda_.1} parent=11 // pred_check
        %p380 = pneg %p157
      $region26: #{_lambda_.1} parent=11 // pred_check_branch
        %382 = sbr.rel (%p380) target = $region28
      $region27: #{_lambda_.1} parent=11 // pred_region
        _
      $region28: #{_lambda_.1} parent=11 // pred_fallthru
        _
      // Predicated region
      $region29: #{_lambda_.1} parent=11 // pred_check
        %p383 = pneg %p178
      $region30: #{_lambda_.1} parent=11 // pred_check_branch
        %385 = sbr.rel (%p383) target = $region32
      $region31: #{_lambda_.1} parent=11 // pred_region
        _
      $region32: #{_lambda_.1} parent=11 // pred_fallthru
        _
      // Predicated region
      $region33: #{_lambda_.1} parent=11 // pred_check
        %p386 = pneg %p199
      $region34: #{_lambda_.1} parent=11 // pred_check_branch
        %388 = sbr.rel (%p386) target = $region36
      $region35: #{_lambda_.1} parent=11 // pred_region
        _
      $region36: #{_lambda_.1} parent=11 // pred_fallthru
        _
      // Predicated region
      $region37: #{_lambda_.1} parent=11 // pred_check
        %p389 = pneg %p220
      $region38: #{_lambda_.1} parent=11 // pred_check_branch
        %391 = sbr.rel (%p389) target = $region40
      $region39: #{_lambda_.1} parent=11 // pred_region
        _
      $region40: #{_lambda_.1} parent=11 // pred_fallthru
        _
      // Predicated region
      $region41: #{_lambda_.1} parent=11 // pred_check
        %p392 = pneg %p241
      $region42: #{_lambda_.1} parent=11 // pred_check_branch
        %394 = sbr.rel (%p392) target = $region44
      $region43: #{_lambda_.1} parent=11 // pred_region
        _
      $region44: #{_lambda_.1} parent=11 // pred_fallthru
        _
      // Predicated region
      $region45: #{_lambda_.1} parent=11 // pred_check
        %p395 = pneg %p262
      $region46: #{_lambda_.1} parent=11 // pred_check_branch
        %397 = sbr.rel (%p395) target = $region48
      $region47: #{_lambda_.1} parent=11 // pred_region
        _
      $region48: #{_lambda_.1} parent=11 // pred_fallthru
        _
      // Predicated region
      $region49: #{_lambda_.1} parent=11 // pred_check
        %p398 = pneg %p283
      $region50: #{_lambda_.1} parent=11 // pred_check_branch
        %400 = sbr.rel (%p398) target = $region52
      $region51: #{_lambda_.1} parent=11 // pred_region
        _
      $region52: #{_lambda_.1} parent=11 // pred_fallthru
        _
      // Predicated region
      $region53: #{_lambda_.1} parent=11 // pred_check
        %p401 = pneg %p304
      $region54: #{_lambda_.1} parent=11 // pred_check_branch
        %403 = sbr.rel (%p401) target = $region56
      $region55: #{_lambda_.1} parent=11 // pred_region
        _
      $region56: #{_lambda_.1} parent=11 // pred_fallthru
        _
    $region12: #{_lambda_.1} parent=5 // pred_fallthru
      _
    %p404 = scmp.lt.s32.totalorder %s21, 2
    // Predicated region
    $region57: #{_lambda_.1} parent=5 // pred_check
      %p405 = pneg %p404
    $region58: #{_lambda_.1} parent=5 // pred_check_branch
      %407 = sbr.rel (%p405) target = $region60
    $region59: #{_lambda_.1} parent=5 // pred_region
      // Predicated region
      $region61: #{_lambda_.1} parent=59 // pred_check
        %p408 = pneg %p41
      $region62: #{_lambda_.1} parent=59 // pred_check_branch
        %410 = sbr.rel (%p408) target = $region64
      $region63: #{_lambda_.1} parent=59 // pred_region
        %p411 = scmp.lt.s32.totalorder %s21, 1
        %s412 = scalar_select %p411, %s21, 1
        %s413 = smul.addr %s412, 8
        %s414 = scalar_lea.vmem %s0, %s413
      $region64: #{_lambda_.1} parent=59 // pred_fallthru
        _
      // Predicated region
      $region65: #{_lambda_.1} parent=59 // pred_check
        %p415 = pneg %p67
      $region66: #{_lambda_.1} parent=59 // pred_check_branch
        %417 = sbr.rel (%p415) target = $region68
      $region67: #{_lambda_.1} parent=59 // pred_region
        %p418 = scmp.lt.s32.totalorder %s21, 1
        %s419 = scalar_select %p418, %s21, 1
        %s420 = scalar_lea.vmem %s1, %s419
      $region68: #{_lambda_.1} parent=59 // pred_fallthru
        _
    $region60: #{_lambda_.1} parent=5 // pred_fallthru
      _
    %p421 = scmp.le.s32.totalorder 1, %s21
    %p422 = scmp.lt.s32.totalorder %s21, 3
    %p423 = pnand %p421, %p422
    %p424 = pneg %p423
    // Predicated region
    $region69: #{_lambda_.1} parent=5 // pred_check
      _
    $region70: #{_lambda_.1} parent=5 // pred_check_branch
      %426 = sbr.rel (%p423) target = $region72
    $region71: #{_lambda_.1} parent=5 // pred_region
      %s427 = ssub.s32 %s21, 1
      %p428 = scmp.lt.s32.totalorder %s26, 1
      %s429 = scalar_select %p428, %s26, 1
      %s430 = smul.addr %s429, 8
      %s431 = scalar_lea.vmem %s0, %s430
      %p432 = pneg %p47
      %p433 = pneg %p44
      %p434 = scmp.lt.s32.totalorder %s26, 1
      %s435 = scalar_select %p434, %s26, 1
      %s436 = scalar_lea.vmem %s1, %s435
      %p437 = pneg %p73
      %p438 = pneg %p70
      %p439 = pneg %p94
      %p440 = pneg %p91
      %p441 = pneg %p115
      %p442 = pneg %p112
      %p443 = pneg %p136
      %p444 = pneg %p133
      %p445 = pneg %p157
      %p446 = pneg %p154
      %p447 = pneg %p178
      %p448 = pneg %p175
      %p449 = pneg %p199
      %p450 = pneg %p196
      %p451 = pneg %p220
      %p452 = pneg %p217
      %p453 = pneg %p241
      %p454 = pneg %p238
      %p455 = pneg %p262
      %p456 = pneg %p259
      %p457 = pneg %p283
      %p458 = pneg %p280
      %p459 = pneg %p304
      %p460 = pneg %p301
      %p461 = pneg %p330
      %p462 = pneg %p327
      %p463 = scmp.lt.s32.totalorder %s26, 1
      %s464 = scalar_select %p463, %s26, 1
      %s465 = smul.addr %s464, 8
      %s466 = scalar_lea.vmem %s13, %s465
      %p467 = pneg %p356
      %p468 = pneg %p353
      %p469 = scmp.lt.s32.totalorder %s26, 1
      %s470 = scalar_select %p469, %s26, 1
      %s471 = scalar_lea.vmem %s14, %s470
      %p472 = scmp.lt.s32.totalorder %s26, 1
      %s473 = scalar_select %p472, %s26, 1
      %s474 = smul.addr %s473, 8
      %s475 = scalar_lea.vmem %s0, %s474
      %p476 = scmp.lt.s32.totalorder %s26, 1
      %s477 = scalar_select %p476, %s26, 1
      %s478 = scalar_lea.vmem %s1, %s477
      %p479 = scmp.lt.s32.totalorder %s26, 1
      %s480 = scalar_select %p479, %s26, 1
      %s481 = smul.addr %s480, 8
      %s482 = scalar_lea.vmem %s13, %s481
      %p483 = scmp.lt.s32.totalorder %s26, 1
      %s484 = scalar_select %p483, %s26, 1
      %s485 = scalar_lea.vmem %s14, %s484
      %v487 = vld [vmem:[%s475] sm:$0xff]
      %v488 = vld [vmem:[%s2] sm:$0xff]
      %v489 = vld [vmem:[%s2 + $0x8] sm:$0xff]
      %v490 = vld [vmem:[%s2 + $0x10] sm:$0xff]
      %v491 = vld [vmem:[%s2 + $0x18] sm:$0xff]
      %v492 = vld [vmem:[%s2 + $0x20] sm:$0xff]
      %v493 = vld [vmem:[%s2 + $0x28] sm:$0xff]
      %v494 = vld [vmem:[%s2 + $0x30] sm:$0xff]
      %v495 = vld [vmem:[%s2 + $0x38] sm:$0xff]
      %v496 = vld [vmem:[%s2 + $0x40] sm:$0xff]
      %v497 = vld [vmem:[%s2 + $0x48] sm:$0xff]
      %v498 = vld [vmem:[%s2 + $0x50] sm:$0xff]
      %v499 = vld [vmem:[%s2 + $0x58] sm:$0xff]
      %v500 = vld [vmem:[%s2 + $0x60] sm:$0xff]
      %v501 = vld [vmem:[%s2 + $0x68] sm:$0xff]
      %v502 = vld [vmem:[%s2 + $0x70] sm:$0xff]
      %v503 = vld [vmem:[%s2 + $0x78] sm:$0xff]
      %v504 = vld [vmem:[%s2 + $0x80] sm:$0xff]
      %v505 = vld [vmem:[%s2 + $0x88] sm:$0xff]
      %v506 = vld [vmem:[%s2 + $0x90] sm:$0xff]
      %v507 = vld [vmem:[%s2 + $0x98] sm:$0xff]
      %v508 = vld [vmem:[%s2 + $0xa0] sm:$0xff]
      %v509 = vld [vmem:[%s2 + $0xa8] sm:$0xff]
      %v510 = vld [vmem:[%s2 + $0xb0] sm:$0xff]
      %v511 = vld [vmem:[%s2 + $0xb8] sm:$0xff]
      %v512 = vld [vmem:[%s2 + $0xc0] sm:$0xff]
      %v513 = vld [vmem:[%s2 + $0xc8] sm:$0xff]
      %v514 = vld [vmem:[%s2 + $0xd0] sm:$0xff]
      %v515 = vld [vmem:[%s2 + $0xd8] sm:$0xff]
      %v516 = vld [vmem:[%s2 + $0xe0] sm:$0xff]
      %v517 = vld [vmem:[%s2 + $0xe8] sm:$0xff]
      %v518 = vld [vmem:[%s2 + $0xf0] sm:$0xff]
      %v519 = vld [vmem:[%s2 + $0xf8] sm:$0xff]
      %v520 = vld [vmem:[%s2 + $0x100] sm:$0xff]
      %v521 = vld [vmem:[%s2 + $0x108] sm:$0xff]
      %v522 = vld [vmem:[%s2 + $0x110] sm:$0xff]
      %v523 = vld [vmem:[%s2 + $0x118] sm:$0xff]
      %v524 = vld [vmem:[%s2 + $0x120] sm:$0xff]
      %v525 = vld [vmem:[%s2 + $0x128] sm:$0xff]
      %v526 = vld [vmem:[%s2 + $0x130] sm:$0xff]
      %v527 = vld [vmem:[%s2 + $0x138] sm:$0xff]
      %v528 = vld [vmem:[%s2 + $0x140] sm:$0xff]
      %v529 = vld [vmem:[%s2 + $0x148] sm:$0xff]
      %v530 = vld [vmem:[%s2 + $0x150] sm:$0xff]
      %v531 = vld [vmem:[%s2 + $0x158] sm:$0xff]
      %v532 = vld [vmem:[%s2 + $0x160] sm:$0xff]
      %v533 = vld [vmem:[%s2 + $0x168] sm:$0xff]
      %v534 = vld [vmem:[%s2 + $0x170] sm:$0xff]
      %v535 = vld [vmem:[%s2 + $0x178] sm:$0xff]
      %v536 = vld [vmem:[%s2 + $0x180] sm:$0xff]
      %v537 = vld [vmem:[%s2 + $0x188] sm:$0xff]
      %v538 = vld [vmem:[%s2 + $0x190] sm:$0xff]
      %v539 = vld [vmem:[%s2 + $0x198] sm:$0xff]
      %v540 = vld [vmem:[%s2 + $0x1a0] sm:$0xff]
      %v541 = vld [vmem:[%s2 + $0x1a8] sm:$0xff]
      %v542 = vld [vmem:[%s2 + $0x1b0] sm:$0xff]
      %v543 = vld [vmem:[%s2 + $0x1b8] sm:$0xff]
      %v544 = vld [vmem:[%s2 + $0x1c0] sm:$0xff]
      %v545 = vld [vmem:[%s2 + $0x1c8] sm:$0xff]
      %v546 = vld [vmem:[%s2 + $0x1d0] sm:$0xff]
      %v547 = vld [vmem:[%s2 + $0x1d8] sm:$0xff]
      %v548 = vld [vmem:[%s2 + $0x1e0] sm:$0xff]
      %v549 = vld [vmem:[%s2 + $0x1e8] sm:$0xff]
      %v550 = vld [vmem:[%s2 + $0x1f0] sm:$0xff]
      %v551 = vld [vmem:[%s2 + $0x1f8] sm:$0xff]
      %v552 = vld [vmem:[%s2 + $0x200] sm:$0xff]
      %v553 = vld [vmem:[%s2 + $0x208] sm:$0xff]
      %v554 = vld [vmem:[%s2 + $0x210] sm:$0xff]
      %v555 = vld [vmem:[%s2 + $0x218] sm:$0xff]
      %v556 = vld [vmem:[%s2 + $0x220] sm:$0xff]
      %v557 = vld [vmem:[%s2 + $0x228] sm:$0xff]
      %v558 = vld [vmem:[%s2 + $0x230] sm:$0xff]
      %v559 = vld [vmem:[%s2 + $0x238] sm:$0xff]
      %v560 = vld [vmem:[%s2 + $0x240] sm:$0xff]
      %v561 = vld [vmem:[%s2 + $0x248] sm:$0xff]
      %v562 = vld [vmem:[%s2 + $0x250] sm:$0xff]
      %v563 = vld [vmem:[%s2 + $0x258] sm:$0xff]
      %v564 = vld [vmem:[%s2 + $0x260] sm:$0xff]
      %v565 = vld [vmem:[%s2 + $0x268] sm:$0xff]
      %v566 = vld [vmem:[%s2 + $0x270] sm:$0xff]
      %v567 = vld [vmem:[%s2 + $0x278] sm:$0xff]
      %v568 = vld [vmem:[%s2 + $0x280] sm:$0xff]
      %v569 = vld [vmem:[%s2 + $0x288] sm:$0xff]
      %v570 = vld [vmem:[%s2 + $0x290] sm:$0xff]
      %v571 = vld [vmem:[%s2 + $0x298] sm:$0xff]
      %v572 = vld [vmem:[%s2 + $0x2a0] sm:$0xff]
      %v573 = vld [vmem:[%s2 + $0x2a8] sm:$0xff]
      %v574 = vld [vmem:[%s2 + $0x2b0] sm:$0xff]
      %v575 = vld [vmem:[%s2 + $0x2b8] sm:$0xff]
      %v576 = vld [vmem:[%s2 + $0x2c0] sm:$0xff]
      %v577 = vld [vmem:[%s2 + $0x2c8] sm:$0xff]
      %v578 = vld [vmem:[%s2 + $0x2d0] sm:$0xff]
      %v579 = vld [vmem:[%s2 + $0x2d8] sm:$0xff]
      %v580 = vld [vmem:[%s2 + $0x2e0] sm:$0xff]
      %v581 = vld [vmem:[%s2 + $0x2e8] sm:$0xff]
      %v582 = vld [vmem:[%s2 + $0x2f0] sm:$0xff]
      %v583 = vld [vmem:[%s2 + $0x2f8] sm:$0xff]
      %v584 = vld [vmem:[%s2 + $0x300] sm:$0xff]
      %v585 = vld [vmem:[%s2 + $0x308] sm:$0xff]
      %v586 = vld [vmem:[%s2 + $0x310] sm:$0xff]
      %v587 = vld [vmem:[%s2 + $0x318] sm:$0xff]
      %v588 = vld [vmem:[%s2 + $0x320] sm:$0xff]
      %v589 = vld [vmem:[%s2 + $0x328] sm:$0xff]
      %v590 = vld [vmem:[%s2 + $0x330] sm:$0xff]
      %v591 = vld [vmem:[%s2 + $0x338] sm:$0xff]
      %v592 = vld [vmem:[%s2 + $0x340] sm:$0xff]
      %v593 = vld [vmem:[%s2 + $0x348] sm:$0xff]
      %v594 = vld [vmem:[%s2 + $0x350] sm:$0xff]
      %v595 = vld [vmem:[%s2 + $0x358] sm:$0xff]
      %v596 = vld [vmem:[%s2 + $0x360] sm:$0xff]
      %v597 = vld [vmem:[%s2 + $0x368] sm:$0xff]
      %v598 = vld [vmem:[%s2 + $0x370] sm:$0xff]
      %v599 = vld [vmem:[%s2 + $0x378] sm:$0xff]
      %v600 = vld [vmem:[%s2 + $0x380] sm:$0xff]
      %v601 = vld [vmem:[%s2 + $0x388] sm:$0xff]
      %v602 = vld [vmem:[%s2 + $0x390] sm:$0xff]
      %v603 = vld [vmem:[%s2 + $0x398] sm:$0xff]
      %v604 = vld [vmem:[%s2 + $0x3a0] sm:$0xff]
      %v605 = vld [vmem:[%s2 + $0x3a8] sm:$0xff]
      %v606 = vld [vmem:[%s2 + $0x3b0] sm:$0xff]
      %v607 = vld [vmem:[%s2 + $0x3b8] sm:$0xff]
      %v608 = vld [vmem:[%s2 + $0x3c0] sm:$0xff]
      %v609 = vld [vmem:[%s2 + $0x3c8] sm:$0xff]
      %v610 = vld [vmem:[%s2 + $0x3d0] sm:$0xff]
      %v611 = vld [vmem:[%s2 + $0x3d8] sm:$0xff]
      %v612 = vld [vmem:[%s2 + $0x3e0] sm:$0xff]
      %v613 = vld [vmem:[%s2 + $0x3e8] sm:$0xff]
      %v614 = vld [vmem:[%s2 + $0x3f0] sm:$0xff]
      %v615 = vld [vmem:[%s2 + $0x3f8] sm:$0xff]
      %v616 = vld [vmem:[%s12] ss:$8 sm:$0x3]
      %v618 = vcombine.high %v487, %v487
      %v620 = vunpack.c.l.s4 1966171168
      %v621 = vunpack.c.0.s8 %v620
      %v622 = vlaneseq
      %v623 = vshrl.u32 %v622, 7
      %v624 = vsub.s32 %v621, %v623
      %v625 = vrot.slane %v487, %v624
      %v627 = vunpack.c.l.s4 1966171168
      %v628 = vunpack.c.0.s8 %v627
      %v629 = vlaneseq
      %v630 = vshrl.u32 %v629, 7
      %v631 = vsub.s32 %v628, %v630
      %v632 = vrot.slane %v618, %v631
      %v633 = vcombine.high %v625, %v625
      %v634 = vcombine.high %v632, %v632
      %v636 = vunpack.c.l.s4 1966171168
      %v637 = vunpack.c.0.s8 %v636
      %v638 = vlaneseq
      %v639 = vshrl.u32 %v638, 7
      %v640 = vsub.s32 %v637, %v639
      %v641 = vrot.slane %v625, %v640
      %v643 = vunpack.c.l.s4 1966171168
      %v644 = vunpack.c.0.s8 %v643
      %v645 = vlaneseq
      %v646 = vshrl.u32 %v645, 7
      %v647 = vsub.s32 %v644, %v646
      %v648 = vrot.slane %v632, %v647
      %v650 = vunpack.c.l.s4 1966171168
      %v651 = vunpack.c.0.s8 %v650
      %v652 = vlaneseq
      %v653 = vshrl.u32 %v652, 7
      %v654 = vsub.s32 %v651, %v653
      %v655 = vrot.slane %v633, %v654
      %v657 = vunpack.c.l.s4 1966171168
      %v658 = vunpack.c.0.s8 %v657
      %v659 = vlaneseq
      %v660 = vshrl.u32 %v659, 7
      %v661 = vsub.s32 %v658, %v660
      %v662 = vrot.slane %v634, %v661
      %v663 = vcombine.high %v641, %v641
      %v664 = vcombine.high %v648, %v648
      %v665 = vcombine.high %v655, %v655
      %v666 = vcombine.high %v662, %v662
      %v803 = vunpack.c.l.b16 %v488
      %v804 = vunpack.c.h.b16 %v488
      %v805 = vunpack.c.l.b16 %v489
      %v806 = vunpack.c.h.b16 %v489
      %v807 = vunpack.c.l.b16 %v490
      %v808 = vunpack.c.h.b16 %v490
      %v809 = vunpack.c.l.b16 %v491
      %v810 = vunpack.c.h.b16 %v491
      %v811 = vunpack.c.l.b16 %v492
      %v812 = vunpack.c.h.b16 %v492
      %v813 = vunpack.c.l.b16 %v493
      %v814 = vunpack.c.h.b16 %v493
      %v815 = vunpack.c.l.b16 %v494
      %v816 = vunpack.c.h.b16 %v494
      %v817 = vunpack.c.l.b16 %v495
      %v818 = vunpack.c.h.b16 %v495
      %v819 = vunpack.c.l.b16 %v496
      %v820 = vunpack.c.h.b16 %v496
      %v821 = vunpack.c.l.b16 %v497
      %v822 = vunpack.c.h.b16 %v497
      %v823 = vunpack.c.l.b16 %v498
      %v824 = vunpack.c.h.b16 %v498
      %v825 = vunpack.c.l.b16 %v499
      %v826 = vunpack.c.h.b16 %v499
      %v827 = vunpack.c.l.b16 %v500
      %v828 = vunpack.c.h.b16 %v500
      %v829 = vunpack.c.l.b16 %v501
      %v830 = vunpack.c.h.b16 %v501
      %v831 = vunpack.c.l.b16 %v502
      %v832 = vunpack.c.h.b16 %v502
      %v833 = vunpack.c.l.b16 %v503
      %v834 = vunpack.c.h.b16 %v503
      %v835 = vunpack.c.l.b16 %v504
      %v836 = vunpack.c.h.b16 %v504
      %v837 = vunpack.c.l.b16 %v505
      %v838 = vunpack.c.h.b16 %v505
      %v839 = vunpack.c.l.b16 %v506
      %v840 = vunpack.c.h.b16 %v506
      %v841 = vunpack.c.l.b16 %v507
      %v842 = vunpack.c.h.b16 %v507
      %v843 = vunpack.c.l.b16 %v508
      %v844 = vunpack.c.h.b16 %v508
      %v845 = vunpack.c.l.b16 %v509
      %v846 = vunpack.c.h.b16 %v509
      %v847 = vunpack.c.l.b16 %v510
      %v848 = vunpack.c.h.b16 %v510
      %v849 = vunpack.c.l.b16 %v511
      %v850 = vunpack.c.h.b16 %v511
      %v851 = vunpack.c.l.b16 %v512
      %v852 = vunpack.c.h.b16 %v512
      %v853 = vunpack.c.l.b16 %v513
      %v854 = vunpack.c.h.b16 %v513
      %v855 = vunpack.c.l.b16 %v514
      %v856 = vunpack.c.h.b16 %v514
      %v857 = vunpack.c.l.b16 %v515
      %v858 = vunpack.c.h.b16 %v515
      %v859 = vunpack.c.l.b16 %v516
      %v860 = vunpack.c.h.b16 %v516
      %v861 = vunpack.c.l.b16 %v517
      %v862 = vunpack.c.h.b16 %v517
      %v863 = vunpack.c.l.b16 %v518
      %v864 = vunpack.c.h.b16 %v518
      %v865 = vunpack.c.l.b16 %v519
      %v866 = vunpack.c.h.b16 %v519
      %v867 = vunpack.c.l.b16 %v520
      %v868 = vunpack.c.h.b16 %v520
      %v869 = vunpack.c.l.b16 %v521
      %v870 = vunpack.c.h.b16 %v521
      %v871 = vunpack.c.l.b16 %v522
      %v872 = vunpack.c.h.b16 %v522
      %v873 = vunpack.c.l.b16 %v523
      %v874 = vunpack.c.h.b16 %v523
      %v875 = vunpack.c.l.b16 %v524
      %v876 = vunpack.c.h.b16 %v524
      %v877 = vunpack.c.l.b16 %v525
      %v878 = vunpack.c.h.b16 %v525
      %v879 = vunpack.c.l.b16 %v526
      %v880 = vunpack.c.h.b16 %v526
      %v881 = vunpack.c.l.b16 %v527
      %v882 = vunpack.c.h.b16 %v527
      %v883 = vunpack.c.l.b16 %v528
      %v884 = vunpack.c.h.b16 %v528
      %v885 = vunpack.c.l.b16 %v529
      %v886 = vunpack.c.h.b16 %v529
      %v887 = vunpack.c.l.b16 %v530
      %v888 = vunpack.c.h.b16 %v530
      %v889 = vunpack.c.l.b16 %v531
      %v890 = vunpack.c.h.b16 %v531
      %v891 = vunpack.c.l.b16 %v532
      %v892 = vunpack.c.h.b16 %v532
      %v893 = vunpack.c.l.b16 %v533
      %v894 = vunpack.c.h.b16 %v533
      %v895 = vunpack.c.l.b16 %v534
      %v896 = vunpack.c.h.b16 %v534
      %v897 = vunpack.c.l.b16 %v535
      %v898 = vunpack.c.h.b16 %v535
      %v899 = vunpack.c.l.b16 %v536
      %v900 = vunpack.c.h.b16 %v536
      %v901 = vunpack.c.l.b16 %v537
      %v902 = vunpack.c.h.b16 %v537
      %v903 = vunpack.c.l.b16 %v538
      %v904 = vunpack.c.h.b16 %v538
      %v905 = vunpack.c.l.b16 %v539
      %v906 = vunpack.c.h.b16 %v539
      %v907 = vunpack.c.l.b16 %v540
      %v908 = vunpack.c.h.b16 %v540
      %v909 = vunpack.c.l.b16 %v541
      %v910 = vunpack.c.h.b16 %v541
      %v911 = vunpack.c.l.b16 %v542
      %v912 = vunpack.c.h.b16 %v542
      %v913 = vunpack.c.l.b16 %v543
      %v914 = vunpack.c.h.b16 %v543
      %v915 = vunpack.c.l.b16 %v544
      %v916 = vunpack.c.h.b16 %v544
      %v917 = vunpack.c.l.b16 %v545
      %v918 = vunpack.c.h.b16 %v545
      %v919 = vunpack.c.l.b16 %v546
      %v920 = vunpack.c.h.b16 %v546
      %v921 = vunpack.c.l.b16 %v547
      %v922 = vunpack.c.h.b16 %v547
      %v923 = vunpack.c.l.b16 %v548
      %v924 = vunpack.c.h.b16 %v548
      %v925 = vunpack.c.l.b16 %v549
      %v926 = vunpack.c.h.b16 %v549
      %v927 = vunpack.c.l.b16 %v550
      %v928 = vunpack.c.h.b16 %v550
      %v929 = vunpack.c.l.b16 %v551
      %v930 = vunpack.c.h.b16 %v551
      %v931 = vunpack.c.l.b16 %v552
      %v932 = vunpack.c.h.b16 %v552
      %v933 = vunpack.c.l.b16 %v553
      %v934 = vunpack.c.h.b16 %v553
      %v935 = vunpack.c.l.b16 %v554
      %v936 = vunpack.c.h.b16 %v554
      %v937 = vunpack.c.l.b16 %v555
      %v938 = vunpack.c.h.b16 %v555
      %v939 = vunpack.c.l.b16 %v556
      %v940 = vunpack.c.h.b16 %v556
      %v941 = vunpack.c.l.b16 %v557
      %v942 = vunpack.c.h.b16 %v557
      %v943 = vunpack.c.l.b16 %v558
      %v944 = vunpack.c.h.b16 %v558
      %v945 = vunpack.c.l.b16 %v559
      %v946 = vunpack.c.h.b16 %v559
      %v947 = vunpack.c.l.b16 %v560
      %v948 = vunpack.c.h.b16 %v560
      %v949 = vunpack.c.l.b16 %v561
      %v950 = vunpack.c.h.b16 %v561
      %v951 = vunpack.c.l.b16 %v562
      %v952 = vunpack.c.h.b16 %v562
      %v953 = vunpack.c.l.b16 %v563
      %v954 = vunpack.c.h.b16 %v563
      %v955 = vunpack.c.l.b16 %v564
      %v956 = vunpack.c.h.b16 %v564
      %v957 = vunpack.c.l.b16 %v565
      %v958 = vunpack.c.h.b16 %v565
      %v959 = vunpack.c.l.b16 %v566
      %v960 = vunpack.c.h.b16 %v566
      %v961 = vunpack.c.l.b16 %v567
      %v962 = vunpack.c.h.b16 %v567
      %v963 = vunpack.c.l.b16 %v568
      %v964 = vunpack.c.h.b16 %v568
      %v965 = vunpack.c.l.b16 %v569
      %v966 = vunpack.c.h.b16 %v569
      %v967 = vunpack.c.l.b16 %v570
      %v968 = vunpack.c.h.b16 %v570
      %v969 = vunpack.c.l.b16 %v571
      %v970 = vunpack.c.h.b16 %v571
      %v971 = vunpack.c.l.b16 %v572
      %v972 = vunpack.c.h.b16 %v572
      %v973 = vunpack.c.l.b16 %v573
      %v974 = vunpack.c.h.b16 %v573
      %v975 = vunpack.c.l.b16 %v574
      %v976 = vunpack.c.h.b16 %v574
      %v977 = vunpack.c.l.b16 %v575
      %v978 = vunpack.c.h.b16 %v575
      %v979 = vunpack.c.l.b16 %v576
      %v980 = vunpack.c.h.b16 %v576
      %v981 = vunpack.c.l.b16 %v577
      %v982 = vunpack.c.h.b16 %v577
      %v983 = vunpack.c.l.b16 %v578
      %v984 = vunpack.c.h.b16 %v578
      %v985 = vunpack.c.l.b16 %v579
      %v986 = vunpack.c.h.b16 %v579
      %v987 = vunpack.c.l.b16 %v580
      %v988 = vunpack.c.h.b16 %v580
      %v989 = vunpack.c.l.b16 %v581
      %v990 = vunpack.c.h.b16 %v581
      %v991 = vunpack.c.l.b16 %v582
      %v992 = vunpack.c.h.b16 %v582
      %v993 = vunpack.c.l.b16 %v583
      %v994 = vunpack.c.h.b16 %v583
      %v995 = vunpack.c.l.b16 %v584
      %v996 = vunpack.c.h.b16 %v584
      %v997 = vunpack.c.l.b16 %v585
      %v998 = vunpack.c.h.b16 %v585
      %v999 = vunpack.c.l.b16 %v586
      %v1000 = vunpack.c.h.b16 %v586
      %v1001 = vunpack.c.l.b16 %v587
      %v1002 = vunpack.c.h.b16 %v587
      %v1003 = vunpack.c.l.b16 %v588
      %v1004 = vunpack.c.h.b16 %v588
      %v1005 = vunpack.c.l.b16 %v589
      %v1006 = vunpack.c.h.b16 %v589
      %v1007 = vunpack.c.l.b16 %v590
      %v1008 = vunpack.c.h.b16 %v590
      %v1009 = vunpack.c.l.b16 %v591
      %v1010 = vunpack.c.h.b16 %v591
      %v1011 = vunpack.c.l.b16 %v592
      %v1012 = vunpack.c.h.b16 %v592
      %v1013 = vunpack.c.l.b16 %v593
      %v1014 = vunpack.c.h.b16 %v593
      %v1015 = vunpack.c.l.b16 %v594
      %v1016 = vunpack.c.h.b16 %v594
      %v1017 = vunpack.c.l.b16 %v595
      %v1018 = vunpack.c.h.b16 %v595
      %v1019 = vunpack.c.l.b16 %v596
      %v1020 = vunpack.c.h.b16 %v596
      %v1021 = vunpack.c.l.b16 %v597
      %v1022 = vunpack.c.h.b16 %v597
      %v1023 = vunpack.c.l.b16 %v598
      %v1024 = vunpack.c.h.b16 %v598
      %v1025 = vunpack.c.l.b16 %v599
      %v1026 = vunpack.c.h.b16 %v599
      %v1027 = vunpack.c.l.b16 %v600
      %v1028 = vunpack.c.h.b16 %v600
      %v1029 = vunpack.c.l.b16 %v601
      %v1030 = vunpack.c.h.b16 %v601
      %v1031 = vunpack.c.l.b16 %v602
      %v1032 = vunpack.c.h.b16 %v602
      %v1033 = vunpack.c.l.b16 %v603
      %v1034 = vunpack.c.h.b16 %v603
      %v1035 = vunpack.c.l.b16 %v604
      %v1036 = vunpack.c.h.b16 %v604
      %v1037 = vunpack.c.l.b16 %v605
      %v1038 = vunpack.c.h.b16 %v605
      %v1039 = vunpack.c.l.b16 %v606
      %v1040 = vunpack.c.h.b16 %v606
      %v1041 = vunpack.c.l.b16 %v607
      %v1042 = vunpack.c.h.b16 %v607
      %v1043 = vunpack.c.l.b16 %v608
      %v1044 = vunpack.c.h.b16 %v608
      %v1045 = vunpack.c.l.b16 %v609
      %v1046 = vunpack.c.h.b16 %v609
      %v1047 = vunpack.c.l.b16 %v610
      %v1048 = vunpack.c.h.b16 %v610
      %v1049 = vunpack.c.l.b16 %v611
      %v1050 = vunpack.c.h.b16 %v611
      %v1051 = vunpack.c.l.b16 %v612
      %v1052 = vunpack.c.h.b16 %v612
      %v1053 = vunpack.c.l.b16 %v613
      %v1054 = vunpack.c.h.b16 %v613
      %v1055 = vunpack.c.l.b16 %v614
      %v1056 = vunpack.c.h.b16 %v614
      %v1057 = vunpack.c.l.b16 %v615
      %v1058 = vunpack.c.h.b16 %v615
      %v1059 = vpack.c.b16 %v805, %v803
      %v1060 = vpack.c.b16 %v806, %v804
      %v1061 = vpack.c.b16 %v809, %v807
      %v1062 = vpack.c.b16 %v810, %v808
      %v1063 = vpack.c.b16 %v813, %v811
      %v1064 = vpack.c.b16 %v814, %v812
      %v1065 = vpack.c.b16 %v817, %v815
      %v1066 = vpack.c.b16 %v818, %v816
      %v1067 = vpack.c.b16 %v821, %v819
      %v1068 = vpack.c.b16 %v822, %v820
      %v1069 = vpack.c.b16 %v825, %v823
      %v1070 = vpack.c.b16 %v826, %v824
      %v1071 = vpack.c.b16 %v829, %v827
      %v1072 = vpack.c.b16 %v830, %v828
      %v1073 = vpack.c.b16 %v833, %v831
      %v1074 = vpack.c.b16 %v834, %v832
      %v1075 = vpack.c.b16 %v837, %v835
      %v1076 = vpack.c.b16 %v838, %v836
      %v1077 = vpack.c.b16 %v841, %v839
      %v1078 = vpack.c.b16 %v842, %v840
      %v1079 = vpack.c.b16 %v845, %v843
      %v1080 = vpack.c.b16 %v846, %v844
      %v1081 = vpack.c.b16 %v849, %v847
      %v1082 = vpack.c.b16 %v850, %v848
      %v1083 = vpack.c.b16 %v853, %v851
      %v1084 = vpack.c.b16 %v854, %v852
      %v1085 = vpack.c.b16 %v857, %v855
      %v1086 = vpack.c.b16 %v858, %v856
      %v1087 = vpack.c.b16 %v861, %v859
      %v1088 = vpack.c.b16 %v862, %v860
      %v1089 = vpack.c.b16 %v865, %v863
      %v1090 = vpack.c.b16 %v866, %v864
      %v1091 = vpack.c.b16 %v869, %v867
      %v1092 = vpack.c.b16 %v870, %v868
      %v1093 = vpack.c.b16 %v873, %v871
      %v1094 = vpack.c.b16 %v874, %v872
      %v1095 = vpack.c.b16 %v877, %v875
      %v1096 = vpack.c.b16 %v878, %v876
      %v1097 = vpack.c.b16 %v881, %v879
      %v1098 = vpack.c.b16 %v882, %v880
      %v1099 = vpack.c.b16 %v885, %v883
      %v1100 = vpack.c.b16 %v886, %v884
      %v1101 = vpack.c.b16 %v889, %v887
      %v1102 = vpack.c.b16 %v890, %v888
      %v1103 = vpack.c.b16 %v893, %v891
      %v1104 = vpack.c.b16 %v894, %v892
      %v1105 = vpack.c.b16 %v897, %v895
      %v1106 = vpack.c.b16 %v898, %v896
      %v1107 = vpack.c.b16 %v901, %v899
      %v1108 = vpack.c.b16 %v902, %v900
      %v1109 = vpack.c.b16 %v905, %v903
      %v1110 = vpack.c.b16 %v906, %v904
      %v1111 = vpack.c.b16 %v909, %v907
      %v1112 = vpack.c.b16 %v910, %v908
      %v1113 = vpack.c.b16 %v913, %v911
      %v1114 = vpack.c.b16 %v914, %v912
      %v1115 = vpack.c.b16 %v917, %v915
      %v1116 = vpack.c.b16 %v918, %v916
      %v1117 = vpack.c.b16 %v921, %v919
      %v1118 = vpack.c.b16 %v922, %v920
      %v1119 = vpack.c.b16 %v925, %v923
      %v1120 = vpack.c.b16 %v926, %v924
      %v1121 = vpack.c.b16 %v929, %v927
      %v1122 = vpack.c.b16 %v930, %v928
      %v1123 = vpack.c.b16 %v933, %v931
      %v1124 = vpack.c.b16 %v934, %v932
      %v1125 = vpack.c.b16 %v937, %v935
      %v1126 = vpack.c.b16 %v938, %v936
      %v1127 = vpack.c.b16 %v941, %v939
      %v1128 = vpack.c.b16 %v942, %v940
      %v1129 = vpack.c.b16 %v945, %v943
      %v1130 = vpack.c.b16 %v946, %v944
      %v1131 = vpack.c.b16 %v949, %v947
      %v1132 = vpack.c.b16 %v950, %v948
      %v1133 = vpack.c.b16 %v953, %v951
      %v1134 = vpack.c.b16 %v954, %v952
      %v1135 = vpack.c.b16 %v957, %v955
      %v1136 = vpack.c.b16 %v958, %v956
      %v1137 = vpack.c.b16 %v961, %v959
      %v1138 = vpack.c.b16 %v962, %v960
      %v1139 = vpack.c.b16 %v965, %v963
      %v1140 = vpack.c.b16 %v966, %v964
      %v1141 = vpack.c.b16 %v969, %v967
      %v1142 = vpack.c.b16 %v970, %v968
      %v1143 = vpack.c.b16 %v973, %v971
      %v1144 = vpack.c.b16 %v974, %v972
      %v1145 = vpack.c.b16 %v977, %v975
      %v1146 = vpack.c.b16 %v978, %v976
      %v1147 = vpack.c.b16 %v981, %v979
      %v1148 = vpack.c.b16 %v982, %v980
      %v1149 = vpack.c.b16 %v985, %v983
      %v1150 = vpack.c.b16 %v986, %v984
      %v1151 = vpack.c.b16 %v989, %v987
      %v1152 = vpack.c.b16 %v990, %v988
      %v1153 = vpack.c.b16 %v993, %v991
      %v1154 = vpack.c.b16 %v994, %v992
      %v1155 = vpack.c.b16 %v997, %v995
      %v1156 = vpack.c.b16 %v998, %v996
      %v1157 = vpack.c.b16 %v1001, %v999
      %v1158 = vpack.c.b16 %v1002, %v1000
      %v1159 = vpack.c.b16 %v1005, %v1003
      %v1160 = vpack.c.b16 %v1006, %v1004
      %v1161 = vpack.c.b16 %v1009, %v1007
      %v1162 = vpack.c.b16 %v1010, %v1008
      %v1163 = vpack.c.b16 %v1013, %v1011
      %v1164 = vpack.c.b16 %v1014, %v1012
      %v1165 = vpack.c.b16 %v1017, %v1015
      %v1166 = vpack.c.b16 %v1018, %v1016
      %v1167 = vpack.c.b16 %v1021, %v1019
      %v1168 = vpack.c.b16 %v1022, %v1020
      %v1169 = vpack.c.b16 %v1025, %v1023
      %v1170 = vpack.c.b16 %v1026, %v1024
      %v1171 = vpack.c.b16 %v1029, %v1027
      %v1172 = vpack.c.b16 %v1030, %v1028
      %v1173 = vpack.c.b16 %v1033, %v1031
      %v1174 = vpack.c.b16 %v1034, %v1032
      %v1175 = vpack.c.b16 %v1037, %v1035
      %v1176 = vpack.c.b16 %v1038, %v1036
      %v1177 = vpack.c.b16 %v1041, %v1039
      %v1178 = vpack.c.b16 %v1042, %v1040
      %v1179 = vpack.c.b16 %v1045, %v1043
      %v1180 = vpack.c.b16 %v1046, %v1044
      %v1181 = vpack.c.b16 %v1049, %v1047
      %v1182 = vpack.c.b16 %v1050, %v1048
      %v1183 = vpack.c.b16 %v1053, %v1051
      %v1184 = vpack.c.b16 %v1054, %v1052
      %v1185 = vpack.c.b16 %v1057, %v1055
      %v1186 = vpack.c.b16 %v1058, %v1056
      %v1316 = vlaneseq
      %v1317 = vshrl.u32 %v1316, 7
      %v1318 = vsub.s32 0, %v1317
      %v1319 = vrot.slane %v616, %v1318
      %v1320 = vlaneseq
      %v1321 = vshrl.u32 %v1320, 7
      %v1322 = vsub.s32 1, %v1321
      %v1323 = vrot.slane %v616, %v1322
      %1326 = vmatprep.subr.bf16.mxu0 %v1060
      %1327 = vmatpush1.bf16.msra.mxu0 %v1059
      %1328 = vmatprep.subr.bf16.mxu0 %v1062
      %1329 = vmatpush1.bf16.msra.mxu0 %v1061
      %1330 = vmatprep.subr.bf16.mxu0 %v1064
      %1331 = vmatpush1.bf16.msra.mxu0 %v1063
      %1332 = vmatprep.subr.bf16.mxu0 %v1066
      %1333 = vmatpush1.bf16.msra.mxu0 %v1065
      %1334 = vmatprep.subr.bf16.mxu0 %v1068
      %1335 = vmatpush1.bf16.msra.mxu0 %v1067
      %1336 = vmatprep.subr.bf16.mxu0 %v1070
      %1337 = vmatpush1.bf16.msra.mxu0 %v1069
      %1338 = vmatprep.subr.bf16.mxu0 %v1072
      %1339 = vmatpush1.bf16.msra.mxu0 %v1071
      %1340 = vmatprep.subr.bf16.mxu0 %v1074
      %1341 = vmatpush1.bf16.msra.mxu0 %v1073
      %1342 = vmatprep.subr.bf16.mxu0 %v1076
      %1343 = vmatpush1.bf16.msra.mxu0 %v1075
      %1344 = vmatprep.subr.bf16.mxu0 %v1078
      %1345 = vmatpush1.bf16.msra.mxu0 %v1077
      %1346 = vmatprep.subr.bf16.mxu0 %v1080
      %1347 = vmatpush1.bf16.msra.mxu0 %v1079
      %1348 = vmatprep.subr.bf16.mxu0 %v1082
      %1349 = vmatpush1.bf16.msra.mxu0 %v1081
      %1350 = vmatprep.subr.bf16.mxu0 %v1084
      %1351 = vmatpush1.bf16.msra.mxu0 %v1083
      %1352 = vmatprep.subr.bf16.mxu0 %v1086
      %1353 = vmatpush1.bf16.msra.mxu0 %v1085
      %1354 = vmatprep.subr.bf16.mxu0 %v1088
      %1355 = vmatpush1.bf16.msra.mxu0 %v1087
      %1356 = vmatprep.subr.bf16.mxu0 %v1090
      %1357 = vmatpush1.bf16.msra.mxu0 %v1089
      %1358 = vmatprep.mubr.bf16.mxu0 %v655
      %1359 = vmatmul.mubr.bf16.gmra.mrb[0].mxu0 %v641
      %v1360 = vpop.f32.mrb[0].mxu0
      %v1361 = vadd.f32 %v1319, %v1360
      %v1362 = vpop.f32.mrb[0].mxu0
      %v1363 = vadd.f32 %v1323, %v1362
      %v1364 = vpop.f32.mrb[0].mxu0
      %v1365 = vpop.f32.mrb[0].mxu0
      %1366 = vdwg.mxu0
      %1367 = vmatprep.subr.bf16.mxu0 %v1092
      %1368 = vmatpush1.bf16.msra.mxu0 %v1091
      %1369 = vmatprep.subr.bf16.mxu0 %v1094
      %1370 = vmatpush1.bf16.msra.mxu0 %v1093
      %1371 = vmatprep.subr.bf16.mxu0 %v1096
      %1372 = vmatpush1.bf16.msra.mxu0 %v1095
      %1373 = vmatprep.subr.bf16.mxu0 %v1098
      %1374 = vmatpush1.bf16.msra.mxu0 %v1097
      %1375 = vmatprep.subr.bf16.mxu0 %v1100
      %1376 = vmatpush1.bf16.msra.mxu0 %v1099
      %1377 = vmatprep.subr.bf16.mxu0 %v1102
      %1378 = vmatpush1.bf16.msra.mxu0 %v1101
      %1379 = vmatprep.subr.bf16.mxu0 %v1104
      %1380 = vmatpush1.bf16.msra.mxu0 %v1103
      %1381 = vmatprep.subr.bf16.mxu0 %v1106
      %1382 = vmatpush1.bf16.msra.mxu0 %v1105
      %1383 = vmatprep.subr.bf16.mxu0 %v1108
      %1384 = vmatpush1.bf16.msra.mxu0 %v1107
      %1385 = vmatprep.subr.bf16.mxu0 %v1110
      %1386 = vmatpush1.bf16.msra.mxu0 %v1109
      %1387 = vmatprep.subr.bf16.mxu0 %v1112
      %1388 = vmatpush1.bf16.msra.mxu0 %v1111
      %1389 = vmatprep.subr.bf16.mxu0 %v1114
      %1390 = vmatpush1.bf16.msra.mxu0 %v1113
      %1391 = vmatprep.subr.bf16.mxu0 %v1116
      %1392 = vmatpush1.bf16.msra.mxu0 %v1115
      %1393 = vmatprep.subr.bf16.mxu0 %v1118
      %1394 = vmatpush1.bf16.msra.mxu0 %v1117
      %1395 = vmatprep.subr.bf16.mxu0 %v1120
      %1396 = vmatpush1.bf16.msra.mxu0 %v1119
      %1397 = vmatprep.subr.bf16.mxu0 %v1122
      %1398 = vmatpush1.bf16.msra.mxu0 %v1121
      %1399 = vmatprep.mubr.bf16.mxu0 %v665
      %1400 = vmatmul.mubr.bf16.gmra.mrb[0].mxu0 %v663
      %v1401 = vpop.f32.mrb[0].mxu0
      %v1402 = vadd.f32 %v1361, %v1401
      %v1403 = vpop.f32.mrb[0].mxu0
      %v1404 = vadd.f32 %v1363, %v1403
      %v1405 = vpop.f32.mrb[0].mxu0
      %v1406 = vpop.f32.mrb[0].mxu0
      %1407 = vdwg.mxu0
      %1408 = vmatprep.subr.bf16.mxu0 %v1124
      %1409 = vmatpush1.bf16.msra.mxu0 %v1123
      %1410 = vmatprep.subr.bf16.mxu0 %v1126
      %1411 = vmatpush1.bf16.msra.mxu0 %v1125
      %1412 = vmatprep.subr.bf16.mxu0 %v1128
      %1413 = vmatpush1.bf16.msra.mxu0 %v1127
      %1414 = vmatprep.subr.bf16.mxu0 %v1130
      %1415 = vmatpush1.bf16.msra.mxu0 %v1129
      %1416 = vmatprep.subr.bf16.mxu0 %v1132
      %1417 = vmatpush1.bf16.msra.mxu0 %v1131
      %1418 = vmatprep.subr.bf16.mxu0 %v1134
      %1419 = vmatpush1.bf16.msra.mxu0 %v1133
      %1420 = vmatprep.subr.bf16.mxu0 %v1136
      %1421 = vmatpush1.bf16.msra.mxu0 %v1135
      %1422 = vmatprep.subr.bf16.mxu0 %v1138
      %1423 = vmatpush1.bf16.msra.mxu0 %v1137
      %1424 = vmatprep.subr.bf16.mxu0 %v1140
      %1425 = vmatpush1.bf16.msra.mxu0 %v1139
      %1426 = vmatprep.subr.bf16.mxu0 %v1142
      %1427 = vmatpush1.bf16.msra.mxu0 %v1141
      %1428 = vmatprep.subr.bf16.mxu0 %v1144
      %1429 = vmatpush1.bf16.msra.mxu0 %v1143
      %1430 = vmatprep.subr.bf16.mxu0 %v1146
      %1431 = vmatpush1.bf16.msra.mxu0 %v1145
      %1432 = vmatprep.subr.bf16.mxu0 %v1148
      %1433 = vmatpush1.bf16.msra.mxu0 %v1147
      %1434 = vmatprep.subr.bf16.mxu0 %v1150
      %1435 = vmatpush1.bf16.msra.mxu0 %v1149
      %1436 = vmatprep.subr.bf16.mxu0 %v1152
      %1437 = vmatpush1.bf16.msra.mxu0 %v1151
      %1438 = vmatprep.subr.bf16.mxu0 %v1154
      %1439 = vmatpush1.bf16.msra.mxu0 %v1153
      %1440 = vmatprep.mubr.bf16.mxu0 %v662
      %1441 = vmatmul.mubr.bf16.gmra.mrb[0].mxu0 %v648
      %v1442 = vpop.f32.mrb[0].mxu0
      %v1443 = vadd.f32 %v1402, %v1442
      %v1444 = vpop.f32.mrb[0].mxu0
      %v1445 = vadd.f32 %v1404, %v1444
      %v1446 = vpop.f32.mrb[0].mxu0
      %v1447 = vpop.f32.mrb[0].mxu0
      %1448 = vdwg.mxu0
      %1449 = vmatprep.subr.bf16.mxu0 %v1156
      %1450 = vmatpush1.bf16.msra.mxu0 %v1155
      %1451 = vmatprep.subr.bf16.mxu0 %v1158
      %1452 = vmatpush1.bf16.msra.mxu0 %v1157
      %1453 = vmatprep.subr.bf16.mxu0 %v1160
      %1454 = vmatpush1.bf16.msra.mxu0 %v1159
      %1455 = vmatprep.subr.bf16.mxu0 %v1162
      %1456 = vmatpush1.bf16.msra.mxu0 %v1161
      %1457 = vmatprep.subr.bf16.mxu0 %v1164
      %1458 = vmatpush1.bf16.msra.mxu0 %v1163
      %1459 = vmatprep.subr.bf16.mxu0 %v1166
      %1460 = vmatpush1.bf16.msra.mxu0 %v1165
      %1461 = vmatprep.subr.bf16.mxu0 %v1168
      %1462 = vmatpush1.bf16.msra.mxu0 %v1167
      %1463 = vmatprep.subr.bf16.mxu0 %v1170
      %1464 = vmatpush1.bf16.msra.mxu0 %v1169
      %1465 = vmatprep.subr.bf16.mxu0 %v1172
      %1466 = vmatpush1.bf16.msra.mxu0 %v1171
      %1467 = vmatprep.subr.bf16.mxu0 %v1174
      %1468 = vmatpush1.bf16.msra.mxu0 %v1173
      %1469 = vmatprep.subr.bf16.mxu0 %v1176
      %1470 = vmatpush1.bf16.msra.mxu0 %v1175
      %1471 = vmatprep.subr.bf16.mxu0 %v1178
      %1472 = vmatpush1.bf16.msra.mxu0 %v1177
      %1473 = vmatprep.subr.bf16.mxu0 %v1180
      %1474 = vmatpush1.bf16.msra.mxu0 %v1179
      %1475 = vmatprep.subr.bf16.mxu0 %v1182
      %1476 = vmatpush1.bf16.msra.mxu0 %v1181
      %1477 = vmatprep.subr.bf16.mxu0 %v1184
      %1478 = vmatpush1.bf16.msra.mxu0 %v1183
      %1479 = vmatprep.subr.bf16.mxu0 %v1186
      %1480 = vmatpush1.bf16.msra.mxu0 %v1185
      %1481 = vmatprep.mubr.bf16.mxu0 %v666
      %1482 = vmatmul.mubr.bf16.gmra.mrb[0].mxu0 %v664
      %v1483 = vpop.f32.mrb[0].mxu0
      %v1484 = vadd.f32 %v1443, %v1483
      %v1485 = vpop.f32.mrb[0].mxu0
      %v1486 = vadd.f32 %v1445, %v1485
      %v1487 = vpop.f32.mrb[0].mxu0
      %v1488 = vpop.f32.mrb[0].mxu0
      %1489 = vdwg.mxu0
      %v1490 = vpack.c.bf16 %v1484, %v1484
      %v1491 = vpack.c.bf16 %v1486, %v1486
      %v1492 = vld [vmem:[%s3] sm:$0xff]
      %v1493 = vld [vmem:[%s3 + $0x8] sm:$0xff]
      %v1494 = vld [vmem:[%s3 + $0x10] sm:$0xff]
      %v1495 = vld [vmem:[%s3 + $0x18] sm:$0xff]
      %v1496 = vld [vmem:[%s3 + $0x20] sm:$0xff]
      %v1497 = vld [vmem:[%s3 + $0x28] sm:$0xff]
      %v1498 = vld [vmem:[%s3 + $0x30] sm:$0xff]
      %v1499 = vld [vmem:[%s3 + $0x38] sm:$0xff]
      %v1500 = vld [vmem:[%s3 + $0x40] sm:$0xff]
      %v1501 = vld [vmem:[%s3 + $0x48] sm:$0xff]
      %v1502 = vld [vmem:[%s3 + $0x50] sm:$0xff]
      %v1503 = vld [vmem:[%s3 + $0x58] sm:$0xff]
      %v1504 = vld [vmem:[%s3 + $0x60] sm:$0xff]
      %v1505 = vld [vmem:[%s3 + $0x68] sm:$0xff]
      %v1506 = vld [vmem:[%s3 + $0x70] sm:$0xff]
      %v1507 = vld [vmem:[%s3 + $0x78] sm:$0xff]
      %v1508 = vld [vmem:[%s3 + $0x80] sm:$0xff]
      %v1509 = vld [vmem:[%s3 + $0x88] sm:$0xff]
      %v1510 = vld [vmem:[%s3 + $0x90] sm:$0xff]
      %v1511 = vld [vmem:[%s3 + $0x98] sm:$0xff]
      %v1512 = vld [vmem:[%s3 + $0xa0] sm:$0xff]
      %v1513 = vld [vmem:[%s3 + $0xa8] sm:$0xff]
      %v1514 = vld [vmem:[%s3 + $0xb0] sm:$0xff]
      %v1515 = vld [vmem:[%s3 + $0xb8] sm:$0xff]
      %v1516 = vld [vmem:[%s3 + $0xc0] sm:$0xff]
      %v1517 = vld [vmem:[%s3 + $0xc8] sm:$0xff]
      %v1518 = vld [vmem:[%s3 + $0xd0] sm:$0xff]
      %v1519 = vld [vmem:[%s3 + $0xd8] sm:$0xff]
      %v1520 = vld [vmem:[%s3 + $0xe0] sm:$0xff]
      %v1521 = vld [vmem:[%s3 + $0xe8] sm:$0xff]
      %v1522 = vld [vmem:[%s3 + $0xf0] sm:$0xff]
      %v1523 = vld [vmem:[%s3 + $0xf8] sm:$0xff]
      %s1524 = scalar_lea.vmem %s12, 1
      %v1525 = vld [vmem:[%s1524] ss:$8 sm:$0x3]
      %v1558 = vunpack.c.l.b16 %v1492
      %v1559 = vunpack.c.h.b16 %v1492
      %v1560 = vunpack.c.l.b16 %v1493
      %v1561 = vunpack.c.h.b16 %v1493
      %v1562 = vunpack.c.l.b16 %v1494
      %v1563 = vunpack.c.h.b16 %v1494
      %v1564 = vunpack.c.l.b16 %v1495
      %v1565 = vunpack.c.h.b16 %v1495
      %v1566 = vunpack.c.l.b16 %v1496
      %v1567 = vunpack.c.h.b16 %v1496
      %v1568 = vunpack.c.l.b16 %v1497
      %v1569 = vunpack.c.h.b16 %v1497
      %v1570 = vunpack.c.l.b16 %v1498
      %v1571 = vunpack.c.h.b16 %v1498
      %v1572 = vunpack.c.l.b16 %v1499
      %v1573 = vunpack.c.h.b16 %v1499
      %v1574 = vunpack.c.l.b16 %v1500
      %v1575 = vunpack.c.h.b16 %v1500
      %v1576 = vunpack.c.l.b16 %v1501
      %v1577 = vunpack.c.h.b16 %v1501
      %v1578 = vunpack.c.l.b16 %v1502
      %v1579 = vunpack.c.h.b16 %v1502
      %v1580 = vunpack.c.l.b16 %v1503
      %v1581 = vunpack.c.h.b16 %v1503
      %v1582 = vunpack.c.l.b16 %v1504
      %v1583 = vunpack.c.h.b16 %v1504
      %v1584 = vunpack.c.l.b16 %v1505
      %v1585 = vunpack.c.h.b16 %v1505
      %v1586 = vunpack.c.l.b16 %v1506
      %v1587 = vunpack.c.h.b16 %v1506
      %v1588 = vunpack.c.l.b16 %v1507
      %v1589 = vunpack.c.h.b16 %v1507
      %v1590 = vunpack.c.l.b16 %v1508
      %v1591 = vunpack.c.h.b16 %v1508
      %v1592 = vunpack.c.l.b16 %v1509
      %v1593 = vunpack.c.h.b16 %v1509
      %v1594 = vunpack.c.l.b16 %v1510
      %v1595 = vunpack.c.h.b16 %v1510
      %v1596 = vunpack.c.l.b16 %v1511
      %v1597 = vunpack.c.h.b16 %v1511
      %v1598 = vunpack.c.l.b16 %v1512
      %v1599 = vunpack.c.h.b16 %v1512
      %v1600 = vunpack.c.l.b16 %v1513
      %v1601 = vunpack.c.h.b16 %v1513
      %v1602 = vunpack.c.l.b16 %v1514
      %v1603 = vunpack.c.h.b16 %v1514
      %v1604 = vunpack.c.l.b16 %v1515
      %v1605 = vunpack.c.h.b16 %v1515
      %v1606 = vunpack.c.l.b16 %v1516
      %v1607 = vunpack.c.h.b16 %v1516
      %v1608 = vunpack.c.l.b16 %v1517
      %v1609 = vunpack.c.h.b16 %v1517
      %v1610 = vunpack.c.l.b16 %v1518
      %v1611 = vunpack.c.h.b16 %v1518
      %v1612 = vunpack.c.l.b16 %v1519
      %v1613 = vunpack.c.h.b16 %v1519
      %v1614 = vunpack.c.l.b16 %v1520
      %v1615 = vunpack.c.h.b16 %v1520
      %v1616 = vunpack.c.l.b16 %v1521
      %v1617 = vunpack.c.h.b16 %v1521
      %v1618 = vunpack.c.l.b16 %v1522
      %v1619 = vunpack.c.h.b16 %v1522
      %v1620 = vunpack.c.l.b16 %v1523
      %v1621 = vunpack.c.h.b16 %v1523
      %v1622 = vpack.c.b16 %v1560, %v1558
      %v1623 = vpack.c.b16 %v1561, %v1559
      %v1624 = vpack.c.b16 %v1564, %v1562
      %v1625 = vpack.c.b16 %v1565, %v1563
      %v1626 = vpack.c.b16 %v1568, %v1566
      %v1627 = vpack.c.b16 %v1569, %v1567
      %v1628 = vpack.c.b16 %v1572, %v1570
      %v1629 = vpack.c.b16 %v1573, %v1571
      %v1630 = vpack.c.b16 %v1576, %v1574
      %v1631 = vpack.c.b16 %v1577, %v1575
      %v1632 = vpack.c.b16 %v1580, %v1578
      %v1633 = vpack.c.b16 %v1581, %v1579
      %v1634 = vpack.c.b16 %v1584, %v1582
      %v1635 = vpack.c.b16 %v1585, %v1583
      %v1636 = vpack.c.b16 %v1588, %v1586
      %v1637 = vpack.c.b16 %v1589, %v1587
      %v1638 = vpack.c.b16 %v1592, %v1590
      %v1639 = vpack.c.b16 %v1593, %v1591
      %v1640 = vpack.c.b16 %v1596, %v1594
      %v1641 = vpack.c.b16 %v1597, %v1595
      %v1642 = vpack.c.b16 %v1600, %v1598
      %v1643 = vpack.c.b16 %v1601, %v1599
      %v1644 = vpack.c.b16 %v1604, %v1602
      %v1645 = vpack.c.b16 %v1605, %v1603
      %v1646 = vpack.c.b16 %v1608, %v1606
      %v1647 = vpack.c.b16 %v1609, %v1607
      %v1648 = vpack.c.b16 %v1612, %v1610
      %v1649 = vpack.c.b16 %v1613, %v1611
      %v1650 = vpack.c.b16 %v1616, %v1614
      %v1651 = vpack.c.b16 %v1617, %v1615
      %v1652 = vpack.c.b16 %v1620, %v1618
      %v1653 = vpack.c.b16 %v1621, %v1619
      %v1687 = vlaneseq
      %v1688 = vshrl.u32 %v1687, 7
      %v1689 = vsub.s32 0, %v1688
      %v1690 = vrot.slane %v1525, %v1689
      %v1691 = vlaneseq
      %v1692 = vshrl.u32 %v1691, 7
      %v1693 = vsub.s32 1, %v1692
      %v1694 = vrot.slane %v1525, %v1693
      %1697 = vmatprep.subr.bf16.mxu0 %v1623
      %1698 = vmatpush1.bf16.msra.mxu0 %v1622
      %1699 = vmatprep.subr.bf16.mxu0 %v1625
      %1700 = vmatpush1.bf16.msra.mxu0 %v1624
      %1701 = vmatprep.subr.bf16.mxu0 %v1627
      %1702 = vmatpush1.bf16.msra.mxu0 %v1626
      %1703 = vmatprep.subr.bf16.mxu0 %v1629
      %1704 = vmatpush1.bf16.msra.mxu0 %v1628
      %1705 = vmatprep.subr.bf16.mxu0 %v1631
      %1706 = vmatpush1.bf16.msra.mxu0 %v1630
      %1707 = vmatprep.subr.bf16.mxu0 %v1633
      %1708 = vmatpush1.bf16.msra.mxu0 %v1632
      %1709 = vmatprep.subr.bf16.mxu0 %v1635
      %1710 = vmatpush1.bf16.msra.mxu0 %v1634
      %1711 = vmatprep.subr.bf16.mxu0 %v1637
      %1712 = vmatpush1.bf16.msra.mxu0 %v1636
      %1713 = vmatprep.subr.bf16.mxu0 %v1639
      %1714 = vmatpush1.bf16.msra.mxu0 %v1638
      %1715 = vmatprep.subr.bf16.mxu0 %v1641
      %1716 = vmatpush1.bf16.msra.mxu0 %v1640
      %1717 = vmatprep.subr.bf16.mxu0 %v1643
      %1718 = vmatpush1.bf16.msra.mxu0 %v1642
      %1719 = vmatprep.subr.bf16.mxu0 %v1645
      %1720 = vmatpush1.bf16.msra.mxu0 %v1644
      %1721 = vmatprep.subr.bf16.mxu0 %v1647
      %1722 = vmatpush1.bf16.msra.mxu0 %v1646
      %1723 = vmatprep.subr.bf16.mxu0 %v1649
      %1724 = vmatpush1.bf16.msra.mxu0 %v1648
      %1725 = vmatprep.subr.bf16.mxu0 %v1651
      %1726 = vmatpush1.bf16.msra.mxu0 %v1650
      %1727 = vmatprep.subr.bf16.mxu0 %v1653
      %1728 = vmatpush1.bf16.msra.mxu0 %v1652
      %1729 = vmatprep.mubr.bf16.mxu0 %v1491
      %1730 = vmatmul.mubr.bf16.gmra.mrb[0].mxu0 %v1490
      %v1731 = vpop.f32.mrb[0].mxu0
      %v1732 = vadd.f32 %v1690, %v1731
      %v1733 = vpop.f32.mrb[0].mxu0
      %v1734 = vadd.f32 %v1694, %v1733
      %v1735 = vpop.f32.mrb[0].mxu0
      %v1736 = vpop.f32.mrb[0].mxu0
      %1737 = vdwg.mxu0
      %vm1738 = vcmp.ge.f32.partialorder %v1732, 0.0
      %vm1739 = vcmp.ge.f32.partialorder %v1734, 0.0
      %v1740 = vmul.f32 %v1732, 0.01
      %v1741 = vmul.f32 %v1734, 0.01
      %v1742 = vsel %vm1738, %v1732, %v1740
      %v1743 = vsel %vm1739, %v1734, %v1741
      %v1744 = vpack.c.bf16 %v1742, %v1742
      %v1745 = vpack.c.bf16 %v1743, %v1743
      %v1746 = vld [vmem:[%s4] sm:$0xf]
      %v1747 = vld [vmem:[%s4 + $0x4] sm:$0xf]
      %v1748 = vld [vmem:[%s4 + $0x8] sm:$0xf]
      %v1749 = vld [vmem:[%s4 + $0xc] sm:$0xf]
      %v1750 = vld [vmem:[%s4 + $0x10] sm:$0xf]
      %v1751 = vld [vmem:[%s4 + $0x14] sm:$0xf]
      %v1752 = vld [vmem:[%s4 + $0x18] sm:$0xf]
      %v1753 = vld [vmem:[%s4 + $0x1c] sm:$0xf]
      %v1754 = vld [vmem:[%s4 + $0x20] sm:$0xf]
      %v1755 = vld [vmem:[%s4 + $0x24] sm:$0xf]
      %v1756 = vld [vmem:[%s4 + $0x28] sm:$0xf]
      %v1757 = vld [vmem:[%s4 + $0x2c] sm:$0xf]
      %v1758 = vld [vmem:[%s4 + $0x30] sm:$0xf]
      %v1759 = vld [vmem:[%s4 + $0x34] sm:$0xf]
      %v1760 = vld [vmem:[%s4 + $0x38] sm:$0xf]
      %v1761 = vld [vmem:[%s4 + $0x3c] sm:$0xf]
      %v1762 = vld [vmem:[%s4 + $0x40] sm:$0xf]
      %v1763 = vld [vmem:[%s4 + $0x44] sm:$0xf]
      %v1764 = vld [vmem:[%s4 + $0x48] sm:$0xf]
      %v1765 = vld [vmem:[%s4 + $0x4c] sm:$0xf]
      %v1766 = vld [vmem:[%s4 + $0x50] sm:$0xf]
      %v1767 = vld [vmem:[%s4 + $0x54] sm:$0xf]
      %v1768 = vld [vmem:[%s4 + $0x58] sm:$0xf]
      %v1769 = vld [vmem:[%s4 + $0x5c] sm:$0xf]
      %v1770 = vld [vmem:[%s4 + $0x60] sm:$0xf]
      %v1771 = vld [vmem:[%s4 + $0x64] sm:$0xf]
      %v1772 = vld [vmem:[%s4 + $0x68] sm:$0xf]
      %v1773 = vld [vmem:[%s4 + $0x6c] sm:$0xf]
      %v1774 = vld [vmem:[%s4 + $0x70] sm:$0xf]
      %v1775 = vld [vmem:[%s4 + $0x74] sm:$0xf]
      %v1776 = vld [vmem:[%s4 + $0x78] sm:$0xf]
      %v1777 = vld [vmem:[%s4 + $0x7c] sm:$0xf]
      %v1778 = vld [vmem:[%s12 + $0x2] ss:$0 sm:$0xff]
      %v1811 = vunpack.c.l.b16 %v1746
      %v1812 = vunpack.c.l.b16 %v1747
      %v1813 = vunpack.c.l.b16 %v1748
      %v1814 = vunpack.c.l.b16 %v1749
      %v1815 = vunpack.c.l.b16 %v1750
      %v1816 = vunpack.c.l.b16 %v1751
      %v1817 = vunpack.c.l.b16 %v1752
      %v1818 = vunpack.c.l.b16 %v1753
      %v1819 = vunpack.c.l.b16 %v1754
      %v1820 = vunpack.c.l.b16 %v1755
      %v1821 = vunpack.c.l.b16 %v1756
      %v1822 = vunpack.c.l.b16 %v1757
      %v1823 = vunpack.c.l.b16 %v1758
      %v1824 = vunpack.c.l.b16 %v1759
      %v1825 = vunpack.c.l.b16 %v1760
      %v1826 = vunpack.c.l.b16 %v1761
      %v1827 = vunpack.c.l.b16 %v1762
      %v1828 = vunpack.c.l.b16 %v1763
      %v1829 = vunpack.c.l.b16 %v1764
      %v1830 = vunpack.c.l.b16 %v1765
      %v1831 = vunpack.c.l.b16 %v1766
      %v1832 = vunpack.c.l.b16 %v1767
      %v1833 = vunpack.c.l.b16 %v1768
      %v1834 = vunpack.c.l.b16 %v1769
      %v1835 = vunpack.c.l.b16 %v1770
      %v1836 = vunpack.c.l.b16 %v1771
      %v1837 = vunpack.c.l.b16 %v1772
      %v1838 = vunpack.c.l.b16 %v1773
      %v1839 = vunpack.c.l.b16 %v1774
      %v1840 = vunpack.c.l.b16 %v1775
      %v1841 = vunpack.c.l.b16 %v1776
      %v1842 = vunpack.c.l.b16 %v1777
      %v1843 = vpack.c.b16 %v1812, %v1811
      %v1844 = vpack.c.b16 %v1814, %v1813
      %v1845 = vpack.c.b16 %v1816, %v1815
      %v1846 = vpack.c.b16 %v1818, %v1817
      %v1847 = vpack.c.b16 %v1820, %v1819
      %v1848 = vpack.c.b16 %v1822, %v1821
      %v1849 = vpack.c.b16 %v1824, %v1823
      %v1850 = vpack.c.b16 %v1826, %v1825
      %v1851 = vpack.c.b16 %v1828, %v1827
      %v1852 = vpack.c.b16 %v1830, %v1829
      %v1853 = vpack.c.b16 %v1832, %v1831
      %v1854 = vpack.c.b16 %v1834, %v1833
      %v1855 = vpack.c.b16 %v1836, %v1835
      %v1856 = vpack.c.b16 %v1838, %v1837
      %v1857 = vpack.c.b16 %v1840, %v1839
      %v1858 = vpack.c.b16 %v1842, %v1841
      %1875 = vmatprep.subr.bf16.mxu0 0
      %1876 = vmatpush1.bf16.msra.mxu0 %v1843
      %1877 = vmatprep.subr.bf16.mxu0 0
      %1878 = vmatpush1.bf16.msra.mxu0 %v1844
      %1879 = vmatprep.subr.bf16.mxu0 0
      %1880 = vmatpush1.bf16.msra.mxu0 %v1845
      %1881 = vmatprep.subr.bf16.mxu0 0
      %1882 = vmatpush1.bf16.msra.mxu0 %v1846
      %1883 = vmatprep.subr.bf16.mxu0 0
      %1884 = vmatpush1.bf16.msra.mxu0 %v1847
      %1885 = vmatprep.subr.bf16.mxu0 0
      %1886 = vmatpush1.bf16.msra.mxu0 %v1848
      %1887 = vmatprep.subr.bf16.mxu0 0
      %1888 = vmatpush1.bf16.msra.mxu0 %v1849
      %1889 = vmatprep.subr.bf16.mxu0 0
      %1890 = vmatpush1.bf16.msra.mxu0 %v1850
      %1891 = vmatprep.subr.bf16.mxu0 0
      %1892 = vmatpush1.bf16.msra.mxu0 %v1851
      %1893 = vmatprep.subr.bf16.mxu0 0
      %1894 = vmatpush1.bf16.msra.mxu0 %v1852
      %1895 = vmatprep.subr.bf16.mxu0 0
      %1896 = vmatpush1.bf16.msra.mxu0 %v1853
      %1897 = vmatprep.subr.bf16.mxu0 0
      %1898 = vmatpush1.bf16.msra.mxu0 %v1854
      %1899 = vmatprep.subr.bf16.mxu0 0
      %1900 = vmatpush1.bf16.msra.mxu0 %v1855
      %1901 = vmatprep.subr.bf16.mxu0 0
      %1902 = vmatpush1.bf16.msra.mxu0 %v1856
      %1903 = vmatprep.subr.bf16.mxu0 0
      %1904 = vmatpush1.bf16.msra.mxu0 %v1857
      %1905 = vmatprep.subr.bf16.mxu0 0
      %1906 = vmatpush1.bf16.msra.mxu0 %v1858
      %1907 = vmatprep.mubr.bf16.mxu0 %v1745
      %1908 = vmatmul.mubr.bf16.gmra.mrb[0].mxu0 %v1744
      %v1909 = vpop.f32.mrb[0].mxu0
      %v1910 = vadd.f32 %v1778, %v1909
      %v1911 = vpop.f32.mrb[0].mxu0
      %v1912 = vpop.f32.mrb[0].mxu0
      %v1913 = vpop.f32.mrb[0].mxu0
      %1914 = vdwg.mxu0
      %vm1915 = vcmp.ge.f32.partialorder %v1910, 0.0
      %v1916 = vmul.f32 %v1910, 0.01
      %v1917 = vsel %vm1915, %v1910, %v1916
      %v1918 = vpack.c.bf16 %v1917, %v1917
      %v1919 = vld [vmem:[%s5] sm:$0xf]
      %v1920 = vld [vmem:[%s5 + $0x4] sm:$0xf]
      %v1921 = vld [vmem:[%s5 + $0x8] sm:$0xf]
      %v1922 = vld [vmem:[%s5 + $0xc] sm:$0xf]
      %v1923 = vld [vmem:[%s5 + $0x10] sm:$0xf]
      %v1924 = vld [vmem:[%s5 + $0x14] sm:$0xf]
      %v1925 = vld [vmem:[%s5 + $0x18] sm:$0xf]
      %v1926 = vld [vmem:[%s5 + $0x1c] sm:$0xf]
      %v1927 = vld [vmem:[%s5 + $0x20] sm:$0xf]
      %v1928 = vld [vmem:[%s5 + $0x24] sm:$0xf]
      %v1929 = vld [vmem:[%s5 + $0x28] sm:$0xf]
      %v1930 = vld [vmem:[%s5 + $0x2c] sm:$0xf]
      %v1931 = vld [vmem:[%s5 + $0x30] sm:$0xf]
      %v1932 = vld [vmem:[%s5 + $0x34] sm:$0xf]
      %v1933 = vld [vmem:[%s5 + $0x38] sm:$0xf]
      %v1934 = vld [vmem:[%s5 + $0x3c] sm:$0xf]
      %v1935 = vld [vmem:[%s12 + $0x3] ss:$0 sm:$0xff]
      %v1952 = vunpack.c.l.b16 %v1919
      %v1953 = vunpack.c.l.b16 %v1920
      %v1954 = vunpack.c.l.b16 %v1921
      %v1955 = vunpack.c.l.b16 %v1922
      %v1956 = vunpack.c.l.b16 %v1923
      %v1957 = vunpack.c.l.b16 %v1924
      %v1958 = vunpack.c.l.b16 %v1925
      %v1959 = vunpack.c.l.b16 %v1926
      %v1960 = vunpack.c.l.b16 %v1927
      %v1961 = vunpack.c.l.b16 %v1928
      %v1962 = vunpack.c.l.b16 %v1929
      %v1963 = vunpack.c.l.b16 %v1930
      %v1964 = vunpack.c.l.b16 %v1931
      %v1965 = vunpack.c.l.b16 %v1932
      %v1966 = vunpack.c.l.b16 %v1933
      %v1967 = vunpack.c.l.b16 %v1934
      %v1968 = vpack.c.b16 %v1953, %v1952
      %v1969 = vpack.c.b16 %v1955, %v1954
      %v1970 = vpack.c.b16 %v1957, %v1956
      %v1971 = vpack.c.b16 %v1959, %v1958
      %v1972 = vpack.c.b16 %v1961, %v1960
      %v1973 = vpack.c.b16 %v1963, %v1962
      %v1974 = vpack.c.b16 %v1965, %v1964
      %v1975 = vpack.c.b16 %v1967, %v1966
      %1984 = vmatprep.subr.bf16.mxu0 0
      %1985 = vmatpush1.bf16.msra.mxu0 %v1968
      %1986 = vmatprep.subr.bf16.mxu0 0
      %1987 = vmatpush1.bf16.msra.mxu0 %v1969
      %1988 = vmatprep.subr.bf16.mxu0 0
      %1989 = vmatpush1.bf16.msra.mxu0 %v1970
      %1990 = vmatprep.subr.bf16.mxu0 0
      %1991 = vmatpush1.bf16.msra.mxu0 %v1971
      %1992 = vmatprep.subr.bf16.mxu0 0
      %1993 = vmatpush1.bf16.msra.mxu0 %v1972
      %1994 = vmatprep.subr.bf16.mxu0 0
      %1995 = vmatpush1.bf16.msra.mxu0 %v1973
      %1996 = vmatprep.subr.bf16.mxu0 0
      %1997 = vmatpush1.bf16.msra.mxu0 %v1974
      %1998 = vmatprep.subr.bf16.mxu0 0
      %1999 = vmatpush1.bf16.msra.mxu0 %v1975
      %2000 = vmatprep.subr.bf16.mxu0 0
      %2001 = vmatpush1.bf16.msra.mxu0 0
      %2002 = vmatprep.subr.bf16.mxu0 0
      %2003 = vmatpush1.bf16.msra.mxu0 0
      %2004 = vmatprep.subr.bf16.mxu0 0
      %2005 = vmatpush1.bf16.msra.mxu0 0
      %2006 = vmatprep.subr.bf16.mxu0 0
      %2007 = vmatpush1.bf16.msra.mxu0 0
      %2008 = vmatprep.subr.bf16.mxu0 0
      %2009 = vmatpush1.bf16.msra.mxu0 0
      %2010 = vmatprep.subr.bf16.mxu0 0
      %2011 = vmatpush1.bf16.msra.mxu0 0
      %2012 = vmatprep.subr.bf16.mxu0 0
      %2013 = vmatpush1.bf16.msra.mxu0 0
      %2014 = vmatprep.subr.bf16.mxu0 0
      %2015 = vmatpush1.bf16.msra.mxu0 0
      %2016 = vmatprep.mubr.bf16.mxu0 0
      %2017 = vmatmul.mubr.bf16.gmra.mrb[0].mxu0 %v1918
      %v2018 = vpop.f32.mrb[0].mxu0
      %v2019 = vadd.f32 %v1935, %v2018
      %v2020 = vpop.f32.mrb[0].mxu0
      %v2021 = vpop.f32.mrb[0].mxu0
      %v2022 = vpop.f32.mrb[0].mxu0
      %2023 = vdwg.mxu0
      %v2024 = vld [vmem:[%s6] sm:$0xf]
      %v2025 = vld [vmem:[%s6 + $0x4] sm:$0xf]
      %v2026 = vld [vmem:[%s6 + $0x8] sm:$0xf]
      %v2027 = vld [vmem:[%s6 + $0xc] sm:$0xf]
      %v2028 = vld [vmem:[%s6 + $0x10] sm:$0xf]
      %v2029 = vld [vmem:[%s6 + $0x14] sm:$0xf]
      %v2030 = vld [vmem:[%s6 + $0x18] sm:$0xf]
      %v2031 = vld [vmem:[%s6 + $0x1c] sm:$0xf]
      %v2032 = vld [vmem:[%s6 + $0x20] sm:$0xf]
      %v2033 = vld [vmem:[%s6 + $0x24] sm:$0xf]
      %v2034 = vld [vmem:[%s6 + $0x28] sm:$0xf]
      %v2035 = vld [vmem:[%s6 + $0x2c] sm:$0xf]
      %v2036 = vld [vmem:[%s6 + $0x30] sm:$0xf]
      %v2037 = vld [vmem:[%s6 + $0x34] sm:$0xf]
      %v2038 = vld [vmem:[%s6 + $0x38] sm:$0xf]
      %v2039 = vld [vmem:[%s6 + $0x3c] sm:$0xf]
      %v2040 = vld [vmem:[%s12 + $0x4] ss:$0 sm:$0xff]
      %v2057 = vunpack.c.l.b16 %v2024
      %v2058 = vunpack.c.l.b16 %v2025
      %v2059 = vunpack.c.l.b16 %v2026
      %v2060 = vunpack.c.l.b16 %v2027
      %v2061 = vunpack.c.l.b16 %v2028
      %v2062 = vunpack.c.l.b16 %v2029
      %v2063 = vunpack.c.l.b16 %v2030
      %v2064 = vunpack.c.l.b16 %v2031
      %v2065 = vunpack.c.l.b16 %v2032
      %v2066 = vunpack.c.l.b16 %v2033
      %v2067 = vunpack.c.l.b16 %v2034
      %v2068 = vunpack.c.l.b16 %v2035
      %v2069 = vunpack.c.l.b16 %v2036
      %v2070 = vunpack.c.l.b16 %v2037
      %v2071 = vunpack.c.l.b16 %v2038
      %v2072 = vunpack.c.l.b16 %v2039
      %v2073 = vpack.c.b16 %v2058, %v2057
      %v2074 = vpack.c.b16 %v2060, %v2059
      %v2075 = vpack.c.b16 %v2062, %v2061
      %v2076 = vpack.c.b16 %v2064, %v2063
      %v2077 = vpack.c.b16 %v2066, %v2065
      %v2078 = vpack.c.b16 %v2068, %v2067
      %v2079 = vpack.c.b16 %v2070, %v2069
      %v2080 = vpack.c.b16 %v2072, %v2071
      %2089 = vmatprep.subr.bf16.mxu0 0
      %2090 = vmatpush1.bf16.msra.mxu0 %v2073
      %2091 = vmatprep.subr.bf16.mxu0 0
      %2092 = vmatpush1.bf16.msra.mxu0 %v2074
      %2093 = vmatprep.subr.bf16.mxu0 0
      %2094 = vmatpush1.bf16.msra.mxu0 %v2075
      %2095 = vmatprep.subr.bf16.mxu0 0
      %2096 = vmatpush1.bf16.msra.mxu0 %v2076
      %2097 = vmatprep.subr.bf16.mxu0 0
      %2098 = vmatpush1.bf16.msra.mxu0 %v2077
      %2099 = vmatprep.subr.bf16.mxu0 0
      %2100 = vmatpush1.bf16.msra.mxu0 %v2078
      %2101 = vmatprep.subr.bf16.mxu0 0
      %2102 = vmatpush1.bf16.msra.mxu0 %v2079
      %2103 = vmatprep.subr.bf16.mxu0 0
      %2104 = vmatpush1.bf16.msra.mxu0 %v2080
      %2105 = vmatprep.subr.bf16.mxu0 0
      %2106 = vmatpush1.bf16.msra.mxu0 0
      %2107 = vmatprep.subr.bf16.mxu0 0
      %2108 = vmatpush1.bf16.msra.mxu0 0
      %2109 = vmatprep.subr.bf16.mxu0 0
      %2110 = vmatpush1.bf16.msra.mxu0 0
      %2111 = vmatprep.subr.bf16.mxu0 0
      %2112 = vmatpush1.bf16.msra.mxu0 0
      %2113 = vmatprep.subr.bf16.mxu0 0
      %2114 = vmatpush1.bf16.msra.mxu0 0
      %2115 = vmatprep.subr.bf16.mxu0 0
      %2116 = vmatpush1.bf16.msra.mxu0 0
      %2117 = vmatprep.subr.bf16.mxu0 0
      %2118 = vmatpush1.bf16.msra.mxu0 0
      %2119 = vmatprep.subr.bf16.mxu0 0
      %2120 = vmatpush1.bf16.msra.mxu0 0
      %2121 = vmatprep.mubr.bf16.mxu0 0
      %2122 = vmatmul.mubr.bf16.gmra.mrb[0].mxu0 %v1918
      %v2123 = vpop.f32.mrb[0].mxu0
      %v2124 = vadd.f32 %v2040, %v2123
      %v2125 = vpop.f32.mrb[0].mxu0
      %v2126 = vpop.f32.mrb[0].mxu0
      %v2127 = vpop.f32.mrb[0].mxu0
      %2128 = vdwg.mxu0
      %v2129 = vmax.f32 %v2124, -30.0
      %v2130 = vmin.f32 %v2129, 20.0
      %v2131 = vmul.f32 %v2130, 0.5
      %v2132 = vmul.f32 %v2131, 1.442695
      %v2133 = vpow.pop %v2132
      %v2134 = vld [vmem:[%s478] sm:$0x1]
      %v2135 = vmul.f32 %v2133, %v2134
      %v2136 = vadd.f32 %v2019, %v2135
      %v2137 = vpack.c.bf16 %v2136, %v2136
      %v2138 = vld [vmem:[%s7] sm:$0xf]
      %v2139 = vld [vmem:[%s7 + $0x4] sm:$0xf]
      %v2140 = vld [vmem:[%s7 + $0x8] sm:$0xf]
      %v2141 = vld [vmem:[%s7 + $0xc] sm:$0xf]
      %v2142 = vld [vmem:[%s7 + $0x10] sm:$0xf]
      %v2143 = vld [vmem:[%s7 + $0x14] sm:$0xf]
      %v2144 = vld [vmem:[%s7 + $0x18] sm:$0xf]
      %v2145 = vld [vmem:[%s7 + $0x1c] sm:$0xf]
      %v2146 = vld [vmem:[%s12 + $0x5] ss:$0 sm:$0xff]
      %v2155 = vunpack.c.l.b16 %v2138
      %v2156 = vunpack.c.l.b16 %v2139
      %v2157 = vunpack.c.l.b16 %v2140
      %v2158 = vunpack.c.l.b16 %v2141
      %v2159 = vunpack.c.l.b16 %v2142
      %v2160 = vunpack.c.l.b16 %v2143
      %v2161 = vunpack.c.l.b16 %v2144
      %v2162 = vunpack.c.l.b16 %v2145
      %v2163 = vpack.c.b16 %v2156, %v2155
      %v2164 = vpack.c.b16 %v2158, %v2157
      %v2165 = vpack.c.b16 %v2160, %v2159
      %v2166 = vpack.c.b16 %v2162, %v2161
      %vm2171 = vcmask 523264
      %v2173 = vsel %vm2171, %v2137, 0
      %2175 = vmatprep.subr.bf16.mxu0 0
      %2176 = vmatpush1.bf16.msra.mxu0 %v2163
      %2177 = vmatprep.subr.bf16.mxu0 0
      %2178 = vmatpush1.bf16.msra.mxu0 %v2164
      %2179 = vmatprep.subr.bf16.mxu0 0
      %2180 = vmatpush1.bf16.msra.mxu0 %v2165
      %2181 = vmatprep.subr.bf16.mxu0 0
      %2182 = vmatpush1.bf16.msra.mxu0 %v2166
      %2183 = vmatprep.subr.bf16.mxu0 0
      %2184 = vmatpush1.bf16.msra.mxu0 0
      %2185 = vmatprep.subr.bf16.mxu0 0
      %2186 = vmatpush1.bf16.msra.mxu0 0
      %2187 = vmatprep.subr.bf16.mxu0 0
      %2188 = vmatpush1.bf16.msra.mxu0 0
      %2189 = vmatprep.subr.bf16.mxu0 0
      %2190 = vmatpush1.bf16.msra.mxu0 0
      %2191 = vmatprep.subr.bf16.mxu0 0
      %2192 = vmatpush1.bf16.msra.mxu0 0
      %2193 = vmatprep.subr.bf16.mxu0 0
      %2194 = vmatpush1.bf16.msra.mxu0 0
      %2195 = vmatprep.subr.bf16.mxu0 0
      %2196 = vmatpush1.bf16.msra.mxu0 0
      %2197 = vmatprep.subr.bf16.mxu0 0
      %2198 = vmatpush1.bf16.msra.mxu0 0
      %2199 = vmatprep.subr.bf16.mxu0 0
      %2200 = vmatpush1.bf16.msra.mxu0 0
      %2201 = vmatprep.subr.bf16.mxu0 0
      %2202 = vmatpush1.bf16.msra.mxu0 0
      %2203 = vmatprep.subr.bf16.mxu0 0
      %2204 = vmatpush1.bf16.msra.mxu0 0
      %2205 = vmatprep.subr.bf16.mxu0 0
      %2206 = vmatpush1.bf16.msra.mxu0 0
      %2207 = vmatprep.mubr.bf16.mxu0 0
      %2208 = vmatmul.mubr.bf16.gmra.mrb[0].mxu0 %v2173
      %v2209 = vpop.f32.mrb[0].mxu0
      %v2210 = vadd.f32 %v2146, %v2209
      %v2211 = vpop.f32.mrb[0].mxu0
      %v2212 = vpop.f32.mrb[0].mxu0
      %v2213 = vpop.f32.mrb[0].mxu0
      %2214 = vdwg.mxu0
      %v2215 = vpack.c.bf16 %v2210, %v2210
      %v2216 = vld [vmem:[%s8] sm:$0xff]
      %v2217 = vld [vmem:[%s8 + $0x8] sm:$0xff]
      %v2218 = vld [vmem:[%s8 + $0x10] sm:$0xff]
      %v2219 = vld [vmem:[%s8 + $0x18] sm:$0xff]
      %v2220 = vld [vmem:[%s8 + $0x20] sm:$0xff]
      %v2221 = vld [vmem:[%s8 + $0x28] sm:$0xff]
      %v2222 = vld [vmem:[%s8 + $0x30] sm:$0xff]
      %v2223 = vld [vmem:[%s8 + $0x38] sm:$0xff]
      %v2224 = vld [vmem:[%s8 + $0x40] sm:$0xff]
      %v2225 = vld [vmem:[%s8 + $0x48] sm:$0xff]
      %v2226 = vld [vmem:[%s8 + $0x50] sm:$0xff]
      %v2227 = vld [vmem:[%s8 + $0x58] sm:$0xff]
      %v2228 = vld [vmem:[%s8 + $0x60] sm:$0xff]
      %v2229 = vld [vmem:[%s8 + $0x68] sm:$0xff]
      %v2230 = vld [vmem:[%s8 + $0x70] sm:$0xff]
      %v2231 = vld [vmem:[%s8 + $0x78] sm:$0xff]
      %s2232 = scalar_lea.vmem %s12, 6
      %v2233 = vld [vmem:[%s2232] ss:$8 sm:$0x3]
      %v2250 = vunpack.c.l.b16 %v2216
      %v2251 = vunpack.c.h.b16 %v2216
      %v2252 = vunpack.c.l.b16 %v2217
      %v2253 = vunpack.c.h.b16 %v2217
      %v2254 = vunpack.c.l.b16 %v2218
      %v2255 = vunpack.c.h.b16 %v2218
      %v2256 = vunpack.c.l.b16 %v2219
      %v2257 = vunpack.c.h.b16 %v2219
      %v2258 = vunpack.c.l.b16 %v2220
      %v2259 = vunpack.c.h.b16 %v2220
      %v2260 = vunpack.c.l.b16 %v2221
      %v2261 = vunpack.c.h.b16 %v2221
      %v2262 = vunpack.c.l.b16 %v2222
      %v2263 = vunpack.c.h.b16 %v2222
      %v2264 = vunpack.c.l.b16 %v2223
      %v2265 = vunpack.c.h.b16 %v2223
      %v2266 = vunpack.c.l.b16 %v2224
      %v2267 = vunpack.c.h.b16 %v2224
      %v2268 = vunpack.c.l.b16 %v2225
      %v2269 = vunpack.c.h.b16 %v2225
      %v2270 = vunpack.c.l.b16 %v2226
      %v2271 = vunpack.c.h.b16 %v2226
      %v2272 = vunpack.c.l.b16 %v2227
      %v2273 = vunpack.c.h.b16 %v2227
      %v2274 = vunpack.c.l.b16 %v2228
      %v2275 = vunpack.c.h.b16 %v2228
      %v2276 = vunpack.c.l.b16 %v2229
      %v2277 = vunpack.c.h.b16 %v2229
      %v2278 = vunpack.c.l.b16 %v2230
      %v2279 = vunpack.c.h.b16 %v2230
      %v2280 = vunpack.c.l.b16 %v2231
      %v2281 = vunpack.c.h.b16 %v2231
      %v2282 = vpack.c.b16 %v2252, %v2250
      %v2283 = vpack.c.b16 %v2253, %v2251
      %v2284 = vpack.c.b16 %v2256, %v2254
      %v2285 = vpack.c.b16 %v2257, %v2255
      %v2286 = vpack.c.b16 %v2260, %v2258
      %v2287 = vpack.c.b16 %v2261, %v2259
      %v2288 = vpack.c.b16 %v2264, %v2262
      %v2289 = vpack.c.b16 %v2265, %v2263
      %v2290 = vpack.c.b16 %v2268, %v2266
      %v2291 = vpack.c.b16 %v2269, %v2267
      %v2292 = vpack.c.b16 %v2272, %v2270
      %v2293 = vpack.c.b16 %v2273, %v2271
      %v2294 = vpack.c.b16 %v2276, %v2274
      %v2295 = vpack.c.b16 %v2277, %v2275
      %v2296 = vpack.c.b16 %v2280, %v2278
      %v2297 = vpack.c.b16 %v2281, %v2279
      %v2315 = vlaneseq
      %v2316 = vshrl.u32 %v2315, 7
      %v2317 = vsub.s32 0, %v2316
      %v2318 = vrot.slane %v2233, %v2317
      %v2319 = vlaneseq
      %v2320 = vshrl.u32 %v2319, 7
      %v2321 = vsub.s32 1, %v2320
      %v2322 = vrot.slane %v2233, %v2321
      %2325 = vmatprep.subr.bf16.mxu0 %v2283
      %2326 = vmatpush1.bf16.msra.mxu0 %v2282
      %2327 = vmatprep.subr.bf16.mxu0 %v2285
      %2328 = vmatpush1.bf16.msra.mxu0 %v2284
      %2329 = vmatprep.subr.bf16.mxu0 %v2287
      %2330 = vmatpush1.bf16.msra.mxu0 %v2286
      %2331 = vmatprep.subr.bf16.mxu0 %v2289
      %2332 = vmatpush1.bf16.msra.mxu0 %v2288
      %2333 = vmatprep.subr.bf16.mxu0 %v2291
      %2334 = vmatpush1.bf16.msra.mxu0 %v2290
      %2335 = vmatprep.subr.bf16.mxu0 %v2293
      %2336 = vmatpush1.bf16.msra.mxu0 %v2292
      %2337 = vmatprep.subr.bf16.mxu0 %v2295
      %2338 = vmatpush1.bf16.msra.mxu0 %v2294
      %2339 = vmatprep.subr.bf16.mxu0 %v2297
      %2340 = vmatpush1.bf16.msra.mxu0 %v2296
      %2341 = vmatprep.subr.bf16.mxu0 0
      %2342 = vmatpush1.bf16.msra.mxu0 0
      %2343 = vmatprep.subr.bf16.mxu0 0
      %2344 = vmatpush1.bf16.msra.mxu0 0
      %2345 = vmatprep.subr.bf16.mxu0 0
      %2346 = vmatpush1.bf16.msra.mxu0 0
      %2347 = vmatprep.subr.bf16.mxu0 0
      %2348 = vmatpush1.bf16.msra.mxu0 0
      %2349 = vmatprep.subr.bf16.mxu0 0
      %2350 = vmatpush1.bf16.msra.mxu0 0
      %2351 = vmatprep.subr.bf16.mxu0 0
      %2352 = vmatpush1.bf16.msra.mxu0 0
      %2353 = vmatprep.subr.bf16.mxu0 0
      %2354 = vmatpush1.bf16.msra.mxu0 0
      %2355 = vmatprep.subr.bf16.mxu0 0
      %2356 = vmatpush1.bf16.msra.mxu0 0
      %2357 = vmatprep.mubr.bf16.mxu0 0
      %2358 = vmatmul.mubr.bf16.gmra.mrb[0].mxu0 %v2215
      %v2359 = vpop.f32.mrb[0].mxu0
      %v2360 = vadd.f32 %v2318, %v2359
      %v2361 = vpop.f32.mrb[0].mxu0
      %v2362 = vadd.f32 %v2322, %v2361
      %v2363 = vpop.f32.mrb[0].mxu0
      %v2364 = vpop.f32.mrb[0].mxu0
      %2365 = vdwg.mxu0
      %vm2366 = vcmp.ge.f32.partialorder %v2360, 0.0
      %vm2367 = vcmp.ge.f32.partialorder %v2362, 0.0
      %v2368 = vmul.f32 %v2360, 0.01
      %v2369 = vmul.f32 %v2362, 0.01
      %v2370 = vsel %vm2366, %v2360, %v2368
      %v2371 = vsel %vm2367, %v2362, %v2369
      %v2372 = vpack.c.bf16 %v2370, %v2370
      %v2373 = vpack.c.bf16 %v2371, %v2371
      %v2374 = vld [vmem:[%s9] sm:$0xff]
      %v2375 = vld [vmem:[%s9 + $0x8] sm:$0xff]
      %v2376 = vld [vmem:[%s9 + $0x10] sm:$0xff]
      %v2377 = vld [vmem:[%s9 + $0x18] sm:$0xff]
      %v2378 = vld [vmem:[%s9 + $0x20] sm:$0xff]
      %v2379 = vld [vmem:[%s9 + $0x28] sm:$0xff]
      %v2380 = vld [vmem:[%s9 + $0x30] sm:$0xff]
      %v2381 = vld [vmem:[%s9 + $0x38] sm:$0xff]
      %v2382 = vld [vmem:[%s9 + $0x40] sm:$0xff]
      %v2383 = vld [vmem:[%s9 + $0x48] sm:$0xff]
      %v2384 = vld [vmem:[%s9 + $0x50] sm:$0xff]
      %v2385 = vld [vmem:[%s9 + $0x58] sm:$0xff]
      %v2386 = vld [vmem:[%s9 + $0x60] sm:$0xff]
      %v2387 = vld [vmem:[%s9 + $0x68] sm:$0xff]
      %v2388 = vld [vmem:[%s9 + $0x70] sm:$0xff]
      %v2389 = vld [vmem:[%s9 + $0x78] sm:$0xff]
      %v2390 = vld [vmem:[%s9 + $0x80] sm:$0xff]
      %v2391 = vld [vmem:[%s9 + $0x88] sm:$0xff]
      %v2392 = vld [vmem:[%s9 + $0x90] sm:$0xff]
      %v2393 = vld [vmem:[%s9 + $0x98] sm:$0xff]
      %v2394 = vld [vmem:[%s9 + $0xa0] sm:$0xff]
      %v2395 = vld [vmem:[%s9 + $0xa8] sm:$0xff]
      %v2396 = vld [vmem:[%s9 + $0xb0] sm:$0xff]
      %v2397 = vld [vmem:[%s9 + $0xb8] sm:$0xff]
      %v2398 = vld [vmem:[%s9 + $0xc0] sm:$0xff]
      %v2399 = vld [vmem:[%s9 + $0xc8] sm:$0xff]
      %v2400 = vld [vmem:[%s9 + $0xd0] sm:$0xff]
      %v2401 = vld [vmem:[%s9 + $0xd8] sm:$0xff]
      %v2402 = vld [vmem:[%s9 + $0xe0] sm:$0xff]
      %v2403 = vld [vmem:[%s9 + $0xe8] sm:$0xff]
      %v2404 = vld [vmem:[%s9 + $0xf0] sm:$0xff]
      %v2405 = vld [vmem:[%s9 + $0xf8] sm:$0xff]
      %v2406 = vld [vmem:[%s9 + $0x100] sm:$0xff]
      %v2407 = vld [vmem:[%s9 + $0x108] sm:$0xff]
      %v2408 = vld [vmem:[%s9 + $0x110] sm:$0xff]
      %v2409 = vld [vmem:[%s9 + $0x118] sm:$0xff]
      %v2410 = vld [vmem:[%s9 + $0x120] sm:$0xff]
      %v2411 = vld [vmem:[%s9 + $0x128] sm:$0xff]
      %v2412 = vld [vmem:[%s9 + $0x130] sm:$0xff]
      %v2413 = vld [vmem:[%s9 + $0x138] sm:$0xff]
      %v2414 = vld [vmem:[%s9 + $0x140] sm:$0xff]
      %v2415 = vld [vmem:[%s9 + $0x148] sm:$0xff]
      %v2416 = vld [vmem:[%s9 + $0x150] sm:$0xff]
      %v2417 = vld [vmem:[%s9 + $0x158] sm:$0xff]
      %v2418 = vld [vmem:[%s9 + $0x160] sm:$0xff]
      %v2419 = vld [vmem:[%s9 + $0x168] sm:$0xff]
      %v2420 = vld [vmem:[%s9 + $0x170] sm:$0xff]
      %v2421 = vld [vmem:[%s9 + $0x178] sm:$0xff]
      %v2422 = vld [vmem:[%s9 + $0x180] sm:$0xff]
      %v2423 = vld [vmem:[%s9 + $0x188] sm:$0xff]
      %v2424 = vld [vmem:[%s9 + $0x190] sm:$0xff]
      %v2425 = vld [vmem:[%s9 + $0x198] sm:$0xff]
      %v2426 = vld [vmem:[%s9 + $0x1a0] sm:$0xff]
      %v2427 = vld [vmem:[%s9 + $0x1a8] sm:$0xff]
      %v2428 = vld [vmem:[%s9 + $0x1b0] sm:$0xff]
      %v2429 = vld [vmem:[%s9 + $0x1b8] sm:$0xff]
      %v2430 = vld [vmem:[%s9 + $0x1c0] sm:$0xff]
      %v2431 = vld [vmem:[%s9 + $0x1c8] sm:$0xff]
      %v2432 = vld [vmem:[%s9 + $0x1d0] sm:$0xff]
      %v2433 = vld [vmem:[%s9 + $0x1d8] sm:$0xff]
      %v2434 = vld [vmem:[%s9 + $0x1e0] sm:$0xff]
      %v2435 = vld [vmem:[%s9 + $0x1e8] sm:$0xff]
      %v2436 = vld [vmem:[%s9 + $0x1f0] sm:$0xff]
      %v2437 = vld [vmem:[%s9 + $0x1f8] sm:$0xff]
      %v2438 = vld [vmem:[%s9 + $0x200] sm:$0xff]
      %v2439 = vld [vmem:[%s9 + $0x208] sm:$0xff]
      %v2440 = vld [vmem:[%s9 + $0x210] sm:$0xff]
      %v2441 = vld [vmem:[%s9 + $0x218] sm:$0xff]
      %v2442 = vld [vmem:[%s9 + $0x220] sm:$0xff]
      %v2443 = vld [vmem:[%s9 + $0x228] sm:$0xff]
      %v2444 = vld [vmem:[%s9 + $0x230] sm:$0xff]
      %v2445 = vld [vmem:[%s9 + $0x238] sm:$0xff]
      %v2446 = vld [vmem:[%s9 + $0x240] sm:$0xff]
      %v2447 = vld [vmem:[%s9 + $0x248] sm:$0xff]
      %v2448 = vld [vmem:[%s9 + $0x250] sm:$0xff]
      %v2449 = vld [vmem:[%s9 + $0x258] sm:$0xff]
      %v2450 = vld [vmem:[%s9 + $0x260] sm:$0xff]
      %v2451 = vld [vmem:[%s9 + $0x268] sm:$0xff]
      %v2452 = vld [vmem:[%s9 + $0x270] sm:$0xff]
      %v2453 = vld [vmem:[%s9 + $0x278] sm:$0xff]
      %v2454 = vld [vmem:[%s9 + $0x280] sm:$0xff]
      %v2455 = vld [vmem:[%s9 + $0x288] sm:$0xff]
      %v2456 = vld [vmem:[%s9 + $0x290] sm:$0xff]
      %v2457 = vld [vmem:[%s9 + $0x298] sm:$0xff]
      %v2458 = vld [vmem:[%s9 + $0x2a0] sm:$0xff]
      %v2459 = vld [vmem:[%s9 + $0x2a8] sm:$0xff]
      %v2460 = vld [vmem:[%s9 + $0x2b0] sm:$0xff]
      %v2461 = vld [vmem:[%s9 + $0x2b8] sm:$0xff]
      %v2462 = vld [vmem:[%s9 + $0x2c0] sm:$0xff]
      %v2463 = vld [vmem:[%s9 + $0x2c8] sm:$0xff]
      %v2464 = vld [vmem:[%s9 + $0x2d0] sm:$0xff]
      %v2465 = vld [vmem:[%s9 + $0x2d8] sm:$0xff]
      %v2466 = vld [vmem:[%s9 + $0x2e0] sm:$0xff]
      %v2467 = vld [vmem:[%s9 + $0x2e8] sm:$0xff]
      %v2468 = vld [vmem:[%s9 + $0x2f0] sm:$0xff]
      %v2469 = vld [vmem:[%s9 + $0x2f8] sm:$0xff]
      %v2470 = vld [vmem:[%s9 + $0x300] sm:$0xff]
      %v2471 = vld [vmem:[%s9 + $0x308] sm:$0xff]
      %v2472 = vld [vmem:[%s9 + $0x310] sm:$0xff]
      %v2473 = vld [vmem:[%s9 + $0x318] sm:$0xff]
      %v2474 = vld [vmem:[%s9 + $0x320] sm:$0xff]
      %v2475 = vld [vmem:[%s9 + $0x328] sm:$0xff]
      %v2476 = vld [vmem:[%s9 + $0x330] sm:$0xff]
      %v2477 = vld [vmem:[%s9 + $0x338] sm:$0xff]
      %v2478 = vld [vmem:[%s9 + $0x340] sm:$0xff]
      %v2479 = vld [vmem:[%s9 + $0x348] sm:$0xff]
      %v2480 = vld [vmem:[%s9 + $0x350] sm:$0xff]
      %v2481 = vld [vmem:[%s9 + $0x358] sm:$0xff]
      %v2482 = vld [vmem:[%s9 + $0x360] sm:$0xff]
      %v2483 = vld [vmem:[%s9 + $0x368] sm:$0xff]
      %v2484 = vld [vmem:[%s9 + $0x370] sm:$0xff]
      %v2485 = vld [vmem:[%s9 + $0x378] sm:$0xff]
      %v2486 = vld [vmem:[%s9 + $0x380] sm:$0xff]
      %v2487 = vld [vmem:[%s9 + $0x388] sm:$0xff]
      %v2488 = vld [vmem:[%s9 + $0x390] sm:$0xff]
      %v2489 = vld [vmem:[%s9 + $0x398] sm:$0xff]
      %v2490 = vld [vmem:[%s9 + $0x3a0] sm:$0xff]
      %v2491 = vld [vmem:[%s9 + $0x3a8] sm:$0xff]
      %v2492 = vld [vmem:[%s9 + $0x3b0] sm:$0xff]
      %v2493 = vld [vmem:[%s9 + $0x3b8] sm:$0xff]
      %v2494 = vld [vmem:[%s9 + $0x3c0] sm:$0xff]
      %v2495 = vld [vmem:[%s9 + $0x3c8] sm:$0xff]
      %v2496 = vld [vmem:[%s9 + $0x3d0] sm:$0xff]
      %v2497 = vld [vmem:[%s9 + $0x3d8] sm:$0xff]
      %v2498 = vld [vmem:[%s9 + $0x3e0] sm:$0xff]
      %v2499 = vld [vmem:[%s9 + $0x3e8] sm:$0xff]
      %v2500 = vld [vmem:[%s9 + $0x3f0] sm:$0xff]
      %v2501 = vld [vmem:[%s9 + $0x3f8] sm:$0xff]
      %s2502 = scalar_lea.vmem %s12, 7
      %v2503 = vld [vmem:[%s2502] ss:$8 sm:$0xf]
      %v2504 = vld [vmem:[%s2502] ss:$8 sm:$0xf0]
      %v2505 = vor.u32 %v2503, %v2504
      %v2634 = vunpack.c.l.b16 %v2374
      %v2635 = vunpack.c.h.b16 %v2374
      %v2636 = vunpack.c.l.b16 %v2375
      %v2637 = vunpack.c.h.b16 %v2375
      %v2638 = vunpack.c.l.b16 %v2376
      %v2639 = vunpack.c.h.b16 %v2376
      %v2640 = vunpack.c.l.b16 %v2377
      %v2641 = vunpack.c.h.b16 %v2377
      %v2642 = vunpack.c.l.b16 %v2378
      %v2643 = vunpack.c.h.b16 %v2378
      %v2644 = vunpack.c.l.b16 %v2379
      %v2645 = vunpack.c.h.b16 %v2379
      %v2646 = vunpack.c.l.b16 %v2380
      %v2647 = vunpack.c.h.b16 %v2380
      %v2648 = vunpack.c.l.b16 %v2381
      %v2649 = vunpack.c.h.b16 %v2381
      %v2650 = vunpack.c.l.b16 %v2382
      %v2651 = vunpack.c.h.b16 %v2382
      %v2652 = vunpack.c.l.b16 %v2383
      %v2653 = vunpack.c.h.b16 %v2383
      %v2654 = vunpack.c.l.b16 %v2384
      %v2655 = vunpack.c.h.b16 %v2384
      %v2656 = vunpack.c.l.b16 %v2385
      %v2657 = vunpack.c.h.b16 %v2385
      %v2658 = vunpack.c.l.b16 %v2386
      %v2659 = vunpack.c.h.b16 %v2386
      %v2660 = vunpack.c.l.b16 %v2387
      %v2661 = vunpack.c.h.b16 %v2387
      %v2662 = vunpack.c.l.b16 %v2388
      %v2663 = vunpack.c.h.b16 %v2388
      %v2664 = vunpack.c.l.b16 %v2389
      %v2665 = vunpack.c.h.b16 %v2389
      %v2666 = vunpack.c.l.b16 %v2390
      %v2667 = vunpack.c.h.b16 %v2390
      %v2668 = vunpack.c.l.b16 %v2391
      %v2669 = vunpack.c.h.b16 %v2391
      %v2670 = vunpack.c.l.b16 %v2392
      %v2671 = vunpack.c.h.b16 %v2392
      %v2672 = vunpack.c.l.b16 %v2393
      %v2673 = vunpack.c.h.b16 %v2393
      %v2674 = vunpack.c.l.b16 %v2394
      %v2675 = vunpack.c.h.b16 %v2394
      %v2676 = vunpack.c.l.b16 %v2395
      %v2677 = vunpack.c.h.b16 %v2395
      %v2678 = vunpack.c.l.b16 %v2396
      %v2679 = vunpack.c.h.b16 %v2396
      %v2680 = vunpack.c.l.b16 %v2397
      %v2681 = vunpack.c.h.b16 %v2397
      %v2682 = vunpack.c.l.b16 %v2398
      %v2683 = vunpack.c.h.b16 %v2398
      %v2684 = vunpack.c.l.b16 %v2399
      %v2685 = vunpack.c.h.b16 %v2399
      %v2686 = vunpack.c.l.b16 %v2400
      %v2687 = vunpack.c.h.b16 %v2400
      %v2688 = vunpack.c.l.b16 %v2401
      %v2689 = vunpack.c.h.b16 %v2401
      %v2690 = vunpack.c.l.b16 %v2402
      %v2691 = vunpack.c.h.b16 %v2402
      %v2692 = vunpack.c.l.b16 %v2403
      %v2693 = vunpack.c.h.b16 %v2403
      %v2694 = vunpack.c.l.b16 %v2404
      %v2695 = vunpack.c.h.b16 %v2404
      %v2696 = vunpack.c.l.b16 %v2405
      %v2697 = vunpack.c.h.b16 %v2405
      %v2698 = vunpack.c.l.b16 %v2406
      %v2699 = vunpack.c.h.b16 %v2406
      %v2700 = vunpack.c.l.b16 %v2407
      %v2701 = vunpack.c.h.b16 %v2407
      %v2702 = vunpack.c.l.b16 %v2408
      %v2703 = vunpack.c.h.b16 %v2408
      %v2704 = vunpack.c.l.b16 %v2409
      %v2705 = vunpack.c.h.b16 %v2409
      %v2706 = vunpack.c.l.b16 %v2410
      %v2707 = vunpack.c.h.b16 %v2410
      %v2708 = vunpack.c.l.b16 %v2411
      %v2709 = vunpack.c.h.b16 %v2411
      %v2710 = vunpack.c.l.b16 %v2412
      %v2711 = vunpack.c.h.b16 %v2412
      %v2712 = vunpack.c.l.b16 %v2413
      %v2713 = vunpack.c.h.b16 %v2413
      %v2714 = vunpack.c.l.b16 %v2414
      %v2715 = vunpack.c.h.b16 %v2414
      %v2716 = vunpack.c.l.b16 %v2415
      %v2717 = vunpack.c.h.b16 %v2415
      %v2718 = vunpack.c.l.b16 %v2416
      %v2719 = vunpack.c.h.b16 %v2416
      %v2720 = vunpack.c.l.b16 %v2417
      %v2721 = vunpack.c.h.b16 %v2417
      %v2722 = vunpack.c.l.b16 %v2418
      %v2723 = vunpack.c.h.b16 %v2418
      %v2724 = vunpack.c.l.b16 %v2419
      %v2725 = vunpack.c.h.b16 %v2419
      %v2726 = vunpack.c.l.b16 %v2420
      %v2727 = vunpack.c.h.b16 %v2420
      %v2728 = vunpack.c.l.b16 %v2421
      %v2729 = vunpack.c.h.b16 %v2421
      %v2730 = vunpack.c.l.b16 %v2422
      %v2731 = vunpack.c.h.b16 %v2422
      %v2732 = vunpack.c.l.b16 %v2423
      %v2733 = vunpack.c.h.b16 %v2423
      %v2734 = vunpack.c.l.b16 %v2424
      %v2735 = vunpack.c.h.b16 %v2424
      %v2736 = vunpack.c.l.b16 %v2425
      %v2737 = vunpack.c.h.b16 %v2425
      %v2738 = vunpack.c.l.b16 %v2426
      %v2739 = vunpack.c.h.b16 %v2426
      %v2740 = vunpack.c.l.b16 %v2427
      %v2741 = vunpack.c.h.b16 %v2427
      %v2742 = vunpack.c.l.b16 %v2428
      %v2743 = vunpack.c.h.b16 %v2428
      %v2744 = vunpack.c.l.b16 %v2429
      %v2745 = vunpack.c.h.b16 %v2429
      %v2746 = vunpack.c.l.b16 %v2430
      %v2747 = vunpack.c.h.b16 %v2430
      %v2748 = vunpack.c.l.b16 %v2431
      %v2749 = vunpack.c.h.b16 %v2431
      %v2750 = vunpack.c.l.b16 %v2432
      %v2751 = vunpack.c.h.b16 %v2432
      %v2752 = vunpack.c.l.b16 %v2433
      %v2753 = vunpack.c.h.b16 %v2433
      %v2754 = vunpack.c.l.b16 %v2434
      %v2755 = vunpack.c.h.b16 %v2434
      %v2756 = vunpack.c.l.b16 %v2435
      %v2757 = vunpack.c.h.b16 %v2435
      %v2758 = vunpack.c.l.b16 %v2436
      %v2759 = vunpack.c.h.b16 %v2436
      %v2760 = vunpack.c.l.b16 %v2437
      %v2761 = vunpack.c.h.b16 %v2437
      %v2762 = vunpack.c.l.b16 %v2438
      %v2763 = vunpack.c.h.b16 %v2438
      %v2764 = vunpack.c.l.b16 %v2439
      %v2765 = vunpack.c.h.b16 %v2439
      %v2766 = vunpack.c.l.b16 %v2440
      %v2767 = vunpack.c.h.b16 %v2440
      %v2768 = vunpack.c.l.b16 %v2441
      %v2769 = vunpack.c.h.b16 %v2441
      %v2770 = vunpack.c.l.b16 %v2442
      %v2771 = vunpack.c.h.b16 %v2442
      %v2772 = vunpack.c.l.b16 %v2443
      %v2773 = vunpack.c.h.b16 %v2443
      %v2774 = vunpack.c.l.b16 %v2444
      %v2775 = vunpack.c.h.b16 %v2444
      %v2776 = vunpack.c.l.b16 %v2445
      %v2777 = vunpack.c.h.b16 %v2445
      %v2778 = vunpack.c.l.b16 %v2446
      %v2779 = vunpack.c.h.b16 %v2446
      %v2780 = vunpack.c.l.b16 %v2447
      %v2781 = vunpack.c.h.b16 %v2447
      %v2782 = vunpack.c.l.b16 %v2448
      %v2783 = vunpack.c.h.b16 %v2448
      %v2784 = vunpack.c.l.b16 %v2449
      %v2785 = vunpack.c.h.b16 %v2449
      %v2786 = vunpack.c.l.b16 %v2450
      %v2787 = vunpack.c.h.b16 %v2450
      %v2788 = vunpack.c.l.b16 %v2451
      %v2789 = vunpack.c.h.b16 %v2451
      %v2790 = vunpack.c.l.b16 %v2452
      %v2791 = vunpack.c.h.b16 %v2452
      %v2792 = vunpack.c.l.b16 %v2453
      %v2793 = vunpack.c.h.b16 %v2453
      %v2794 = vunpack.c.l.b16 %v2454
      %v2795 = vunpack.c.h.b16 %v2454
      %v2796 = vunpack.c.l.b16 %v2455
      %v2797 = vunpack.c.h.b16 %v2455
      %v2798 = vunpack.c.l.b16 %v2456
      %v2799 = vunpack.c.h.b16 %v2456
      %v2800 = vunpack.c.l.b16 %v2457
      %v2801 = vunpack.c.h.b16 %v2457
      %v2802 = vunpack.c.l.b16 %v2458
      %v2803 = vunpack.c.h.b16 %v2458
      %v2804 = vunpack.c.l.b16 %v2459
      %v2805 = vunpack.c.h.b16 %v2459
      %v2806 = vunpack.c.l.b16 %v2460
      %v2807 = vunpack.c.h.b16 %v2460
      %v2808 = vunpack.c.l.b16 %v2461
      %v2809 = vunpack.c.h.b16 %v2461
      %v2810 = vunpack.c.l.b16 %v2462
      %v2811 = vunpack.c.h.b16 %v2462
      %v2812 = vunpack.c.l.b16 %v2463
      %v2813 = vunpack.c.h.b16 %v2463
      %v2814 = vunpack.c.l.b16 %v2464
      %v2815 = vunpack.c.h.b16 %v2464
      %v2816 = vunpack.c.l.b16 %v2465
      %v2817 = vunpack.c.h.b16 %v2465
      %v2818 = vunpack.c.l.b16 %v2466
      %v2819 = vunpack.c.h.b16 %v2466
      %v2820 = vunpack.c.l.b16 %v2467
      %v2821 = vunpack.c.h.b16 %v2467
      %v2822 = vunpack.c.l.b16 %v2468
      %v2823 = vunpack.c.h.b16 %v2468
      %v2824 = vunpack.c.l.b16 %v2469
      %v2825 = vunpack.c.h.b16 %v2469
      %v2826 = vunpack.c.l.b16 %v2470
      %v2827 = vunpack.c.h.b16 %v2470
      %v2828 = vunpack.c.l.b16 %v2471
      %v2829 = vunpack.c.h.b16 %v2471
      %v2830 = vunpack.c.l.b16 %v2472
      %v2831 = vunpack.c.h.b16 %v2472
      %v2832 = vunpack.c.l.b16 %v2473
      %v2833 = vunpack.c.h.b16 %v2473
      %v2834 = vunpack.c.l.b16 %v2474
      %v2835 = vunpack.c.h.b16 %v2474
      %v2836 = vunpack.c.l.b16 %v2475
      %v2837 = vunpack.c.h.b16 %v2475
      %v2838 = vunpack.c.l.b16 %v2476
      %v2839 = vunpack.c.h.b16 %v2476
      %v2840 = vunpack.c.l.b16 %v2477
      %v2841 = vunpack.c.h.b16 %v2477
      %v2842 = vunpack.c.l.b16 %v2478
      %v2843 = vunpack.c.h.b16 %v2478
      %v2844 = vunpack.c.l.b16 %v2479
      %v2845 = vunpack.c.h.b16 %v2479
      %v2846 = vunpack.c.l.b16 %v2480
      %v2847 = vunpack.c.h.b16 %v2480
      %v2848 = vunpack.c.l.b16 %v2481
      %v2849 = vunpack.c.h.b16 %v2481
      %v2850 = vunpack.c.l.b16 %v2482
      %v2851 = vunpack.c.h.b16 %v2482
      %v2852 = vunpack.c.l.b16 %v2483
      %v2853 = vunpack.c.h.b16 %v2483
      %v2854 = vunpack.c.l.b16 %v2484
      %v2855 = vunpack.c.h.b16 %v2484
      %v2856 = vunpack.c.l.b16 %v2485
      %v2857 = vunpack.c.h.b16 %v2485
      %v2858 = vunpack.c.l.b16 %v2486
      %v2859 = vunpack.c.h.b16 %v2486
      %v2860 = vunpack.c.l.b16 %v2487
      %v2861 = vunpack.c.h.b16 %v2487
      %v2862 = vunpack.c.l.b16 %v2488
      %v2863 = vunpack.c.h.b16 %v2488
      %v2864 = vunpack.c.l.b16 %v2489
      %v2865 = vunpack.c.h.b16 %v2489
      %v2866 = vunpack.c.l.b16 %v2490
      %v2867 = vunpack.c.h.b16 %v2490
      %v2868 = vunpack.c.l.b16 %v2491
      %v2869 = vunpack.c.h.b16 %v2491
      %v2870 = vunpack.c.l.b16 %v2492
      %v2871 = vunpack.c.h.b16 %v2492
      %v2872 = vunpack.c.l.b16 %v2493
      %v2873 = vunpack.c.h.b16 %v2493
      %v2874 = vunpack.c.l.b16 %v2494
      %v2875 = vunpack.c.h.b16 %v2494
      %v2876 = vunpack.c.l.b16 %v2495
      %v2877 = vunpack.c.h.b16 %v2495
      %v2878 = vunpack.c.l.b16 %v2496
      %v2879 = vunpack.c.h.b16 %v2496
      %v2880 = vunpack.c.l.b16 %v2497
      %v2881 = vunpack.c.h.b16 %v2497
      %v2882 = vunpack.c.l.b16 %v2498
      %v2883 = vunpack.c.h.b16 %v2498
      %v2884 = vunpack.c.l.b16 %v2499
      %v2885 = vunpack.c.h.b16 %v2499
      %v2886 = vunpack.c.l.b16 %v2500
      %v2887 = vunpack.c.h.b16 %v2500
      %v2888 = vunpack.c.l.b16 %v2501
      %v2889 = vunpack.c.h.b16 %v2501
      %v2890 = vpack.c.b16 %v2642, %v2634
      %v2891 = vpack.c.b16 %v2643, %v2635
      %v2892 = vpack.c.b16 %v2644, %v2636
      %v2893 = vpack.c.b16 %v2645, %v2637
      %v2894 = vpack.c.b16 %v2646, %v2638
      %v2895 = vpack.c.b16 %v2647, %v2639
      %v2896 = vpack.c.b16 %v2648, %v2640
      %v2897 = vpack.c.b16 %v2649, %v2641
      %v2898 = vpack.c.b16 %v2658, %v2650
      %v2899 = vpack.c.b16 %v2659, %v2651
      %v2900 = vpack.c.b16 %v2660, %v2652
      %v2901 = vpack.c.b16 %v2661, %v2653
      %v2902 = vpack.c.b16 %v2662, %v2654
      %v2903 = vpack.c.b16 %v2663, %v2655
      %v2904 = vpack.c.b16 %v2664, %v2656
      %v2905 = vpack.c.b16 %v2665, %v2657
      %v2906 = vpack.c.b16 %v2674, %v2666
      %v2907 = vpack.c.b16 %v2675, %v2667
      %v2908 = vpack.c.b16 %v2676, %v2668
      %v2909 = vpack.c.b16 %v2677, %v2669
      %v2910 = vpack.c.b16 %v2678, %v2670
      %v2911 = vpack.c.b16 %v2679, %v2671
      %v2912 = vpack.c.b16 %v2680, %v2672
      %v2913 = vpack.c.b16 %v2681, %v2673
      %v2914 = vpack.c.b16 %v2690, %v2682
      %v2915 = vpack.c.b16 %v2691, %v2683
      %v2916 = vpack.c.b16 %v2692, %v2684
      %v2917 = vpack.c.b16 %v2693, %v2685
      %v2918 = vpack.c.b16 %v2694, %v2686
      %v2919 = vpack.c.b16 %v2695, %v2687
      %v2920 = vpack.c.b16 %v2696, %v2688
      %v2921 = vpack.c.b16 %v2697, %v2689
      %v2922 = vpack.c.b16 %v2706, %v2698
      %v2923 = vpack.c.b16 %v2707, %v2699
      %v2924 = vpack.c.b16 %v2708, %v2700
      %v2925 = vpack.c.b16 %v2709, %v2701
      %v2926 = vpack.c.b16 %v2710, %v2702
      %v2927 = vpack.c.b16 %v2711, %v2703
      %v2928 = vpack.c.b16 %v2712, %v2704
      %v2929 = vpack.c.b16 %v2713, %v2705
      %v2930 = vpack.c.b16 %v2722, %v2714
      %v2931 = vpack.c.b16 %v2723, %v2715
      %v2932 = vpack.c.b16 %v2724, %v2716
      %v2933 = vpack.c.b16 %v2725, %v2717
      %v2934 = vpack.c.b16 %v2726, %v2718
      %v2935 = vpack.c.b16 %v2727, %v2719
      %v2936 = vpack.c.b16 %v2728, %v2720
      %v2937 = vpack.c.b16 %v2729, %v2721
      %v2938 = vpack.c.b16 %v2738, %v2730
      %v2939 = vpack.c.b16 %v2739, %v2731
      %v2940 = vpack.c.b16 %v2740, %v2732
      %v2941 = vpack.c.b16 %v2741, %v2733
      %v2942 = vpack.c.b16 %v2742, %v2734
      %v2943 = vpack.c.b16 %v2743, %v2735
      %v2944 = vpack.c.b16 %v2744, %v2736
      %v2945 = vpack.c.b16 %v2745, %v2737
      %v2946 = vpack.c.b16 %v2754, %v2746
      %v2947 = vpack.c.b16 %v2755, %v2747
      %v2948 = vpack.c.b16 %v2756, %v2748
      %v2949 = vpack.c.b16 %v2757, %v2749
      %v2950 = vpack.c.b16 %v2758, %v2750
      %v2951 = vpack.c.b16 %v2759, %v2751
      %v2952 = vpack.c.b16 %v2760, %v2752
      %v2953 = vpack.c.b16 %v2761, %v2753
      %v2954 = vpack.c.b16 %v2770, %v2762
      %v2955 = vpack.c.b16 %v2771, %v2763
      %v2956 = vpack.c.b16 %v2772, %v2764
      %v2957 = vpack.c.b16 %v2773, %v2765
      %v2958 = vpack.c.b16 %v2774, %v2766
      %v2959 = vpack.c.b16 %v2775, %v2767
      %v2960 = vpack.c.b16 %v2776, %v2768
      %v2961 = vpack.c.b16 %v2777, %v2769
      %v2962 = vpack.c.b16 %v2786, %v2778
      %v2963 = vpack.c.b16 %v2787, %v2779
      %v2964 = vpack.c.b16 %v2788, %v2780
      %v2965 = vpack.c.b16 %v2789, %v2781
      %v2966 = vpack.c.b16 %v2790, %v2782
      %v2967 = vpack.c.b16 %v2791, %v2783
      %v2968 = vpack.c.b16 %v2792, %v2784
      %v2969 = vpack.c.b16 %v2793, %v2785
      %v2970 = vpack.c.b16 %v2802, %v2794
      %v2971 = vpack.c.b16 %v2803, %v2795
      %v2972 = vpack.c.b16 %v2804, %v2796
      %v2973 = vpack.c.b16 %v2805, %v2797
      %v2974 = vpack.c.b16 %v2806, %v2798
      %v2975 = vpack.c.b16 %v2807, %v2799
      %v2976 = vpack.c.b16 %v2808, %v2800
      %v2977 = vpack.c.b16 %v2809, %v2801
      %v2978 = vpack.c.b16 %v2818, %v2810
      %v2979 = vpack.c.b16 %v2819, %v2811
      %v2980 = vpack.c.b16 %v2820, %v2812
      %v2981 = vpack.c.b16 %v2821, %v2813
      %v2982 = vpack.c.b16 %v2822, %v2814
      %v2983 = vpack.c.b16 %v2823, %v2815
      %v2984 = vpack.c.b16 %v2824, %v2816
      %v2985 = vpack.c.b16 %v2825, %v2817
      %v2986 = vpack.c.b16 %v2834, %v2826
      %v2987 = vpack.c.b16 %v2835, %v2827
      %v2988 = vpack.c.b16 %v2836, %v2828
      %v2989 = vpack.c.b16 %v2837, %v2829
      %v2990 = vpack.c.b16 %v2838, %v2830
      %v2991 = vpack.c.b16 %v2839, %v2831
      %v2992 = vpack.c.b16 %v2840, %v2832
      %v2993 = vpack.c.b16 %v2841, %v2833
      %v2994 = vpack.c.b16 %v2850, %v2842
      %v2995 = vpack.c.b16 %v2851, %v2843
      %v2996 = vpack.c.b16 %v2852, %v2844
      %v2997 = vpack.c.b16 %v2853, %v2845
      %v2998 = vpack.c.b16 %v2854, %v2846
      %v2999 = vpack.c.b16 %v2855, %v2847
      %v3000 = vpack.c.b16 %v2856, %v2848
      %v3001 = vpack.c.b16 %v2857, %v2849
      %v3002 = vpack.c.b16 %v2866, %v2858
      %v3003 = vpack.c.b16 %v2867, %v2859
      %v3004 = vpack.c.b16 %v2868, %v2860
      %v3005 = vpack.c.b16 %v2869, %v2861
      %v3006 = vpack.c.b16 %v2870, %v2862
      %v3007 = vpack.c.b16 %v2871, %v2863
      %v3008 = vpack.c.b16 %v2872, %v2864
      %v3009 = vpack.c.b16 %v2873, %v2865
      %v3010 = vpack.c.b16 %v2882, %v2874
      %v3011 = vpack.c.b16 %v2883, %v2875
      %v3012 = vpack.c.b16 %v2884, %v2876
      %v3013 = vpack.c.b16 %v2885, %v2877
      %v3014 = vpack.c.b16 %v2886, %v2878
      %v3015 = vpack.c.b16 %v2887, %v2879
      %v3016 = vpack.c.b16 %v2888, %v2880
      %v3017 = vpack.c.b16 %v2889, %v2881
      %v3147 = vlaneseq
      %v3148 = vshrl.u32 %v3147, 7
      %v3149 = vsub.s32 0, %v3148
      %v3150 = vrot.slane %v2505, %v3149
      %v3151 = vlaneseq
      %v3152 = vshrl.u32 %v3151, 7
      %v3153 = vsub.s32 1, %v3152
      %v3154 = vrot.slane %v2505, %v3153
      %v3155 = vlaneseq
      %v3156 = vshrl.u32 %v3155, 7
      %v3157 = vsub.s32 2, %v3156
      %v3158 = vrot.slane %v2505, %v3157
      %v3159 = vlaneseq
      %v3160 = vshrl.u32 %v3159, 7
      %v3161 = vsub.s32 3, %v3160
      %v3162 = vrot.slane %v2505, %v3161
      %v3163 = vlaneseq
      %v3164 = vshrl.u32 %v3163, 7
      %v3165 = vsub.s32 4, %v3164
      %v3166 = vrot.slane %v2505, %v3165
      %v3167 = vlaneseq
      %v3168 = vshrl.u32 %v3167, 7
      %v3169 = vsub.s32 5, %v3168
      %v3170 = vrot.slane %v2505, %v3169
      %v3171 = vlaneseq
      %v3172 = vshrl.u32 %v3171, 7
      %v3173 = vsub.s32 6, %v3172
      %v3174 = vrot.slane %v2505, %v3173
      %v3175 = vlaneseq
      %v3176 = vshrl.u32 %v3175, 7
      %v3177 = vsub.s32 7, %v3176
      %v3178 = vrot.slane %v2505, %v3177
      %3187 = vmatprep.subr.bf16.mxu0 %v2891
      %3188 = vmatpush1.bf16.msra.mxu0 %v2890
      %3189 = vmatprep.subr.bf16.mxu0 %v2899
      %3190 = vmatpush1.bf16.msra.mxu0 %v2898
      %3191 = vmatprep.subr.bf16.mxu0 %v2907
      %3192 = vmatpush1.bf16.msra.mxu0 %v2906
      %3193 = vmatprep.subr.bf16.mxu0 %v2915
      %3194 = vmatpush1.bf16.msra.mxu0 %v2914
      %3195 = vmatprep.subr.bf16.mxu0 %v2923
      %3196 = vmatpush1.bf16.msra.mxu0 %v2922
      %3197 = vmatprep.subr.bf16.mxu0 %v2931
      %3198 = vmatpush1.bf16.msra.mxu0 %v2930
      %3199 = vmatprep.subr.bf16.mxu0 %v2939
      %3200 = vmatpush1.bf16.msra.mxu0 %v2938
      %3201 = vmatprep.subr.bf16.mxu0 %v2947
      %3202 = vmatpush1.bf16.msra.mxu0 %v2946
      %3203 = vmatprep.subr.bf16.mxu0 %v2955
      %3204 = vmatpush1.bf16.msra.mxu0 %v2954
      %3205 = vmatprep.subr.bf16.mxu0 %v2963
      %3206 = vmatpush1.bf16.msra.mxu0 %v2962
      %3207 = vmatprep.subr.bf16.mxu0 %v2971
      %3208 = vmatpush1.bf16.msra.mxu0 %v2970
      %3209 = vmatprep.subr.bf16.mxu0 %v2979
      %3210 = vmatpush1.bf16.msra.mxu0 %v2978
      %3211 = vmatprep.subr.bf16.mxu0 %v2987
      %3212 = vmatpush1.bf16.msra.mxu0 %v2986
      %3213 = vmatprep.subr.bf16.mxu0 %v2995
      %3214 = vmatpush1.bf16.msra.mxu0 %v2994
      %3215 = vmatprep.subr.bf16.mxu0 %v3003
      %3216 = vmatpush1.bf16.msra.mxu0 %v3002
      %3217 = vmatprep.subr.bf16.mxu0 %v3011
      %3218 = vmatpush1.bf16.msra.mxu0 %v3010
      %3219 = vmatprep.mubr.bf16.mxu0 %v2373
      %3220 = vmatmul.mubr.bf16.gmra.mrb[0].mxu0 %v2372
      %v3221 = vpop.f32.mrb[0].mxu0
      %v3222 = vadd.f32 %v3150, %v3221
      %v3223 = vpop.f32.mrb[0].mxu0
      %v3224 = vadd.f32 %v3154, %v3223
      %v3225 = vpop.f32.mrb[0].mxu0
      %v3226 = vpop.f32.mrb[0].mxu0
      %3227 = vdwg.mxu0
      %3228 = vmatprep.subr.bf16.mxu0 %v2893
      %3229 = vmatpush1.bf16.msra.mxu0 %v2892
      %3230 = vmatprep.subr.bf16.mxu0 %v2901
      %3231 = vmatpush1.bf16.msra.mxu0 %v2900
      %3232 = vmatprep.subr.bf16.mxu0 %v2909
      %3233 = vmatpush1.bf16.msra.mxu0 %v2908
      %3234 = vmatprep.subr.bf16.mxu0 %v2917
      %3235 = vmatpush1.bf16.msra.mxu0 %v2916
      %3236 = vmatprep.subr.bf16.mxu0 %v2925
      %3237 = vmatpush1.bf16.msra.mxu0 %v2924
      %3238 = vmatprep.subr.bf16.mxu0 %v2933
      %3239 = vmatpush1.bf16.msra.mxu0 %v2932
      %3240 = vmatprep.subr.bf16.mxu0 %v2941
      %3241 = vmatpush1.bf16.msra.mxu0 %v2940
      %3242 = vmatprep.subr.bf16.mxu0 %v2949
      %3243 = vmatpush1.bf16.msra.mxu0 %v2948
      %3244 = vmatprep.subr.bf16.mxu0 %v2957
      %3245 = vmatpush1.bf16.msra.mxu0 %v2956
      %3246 = vmatprep.subr.bf16.mxu0 %v2965
      %3247 = vmatpush1.bf16.msra.mxu0 %v2964
      %3248 = vmatprep.subr.bf16.mxu0 %v2973
      %3249 = vmatpush1.bf16.msra.mxu0 %v2972
      %3250 = vmatprep.subr.bf16.mxu0 %v2981
      %3251 = vmatpush1.bf16.msra.mxu0 %v2980
      %3252 = vmatprep.subr.bf16.mxu0 %v2989
      %3253 = vmatpush1.bf16.msra.mxu0 %v2988
      %3254 = vmatprep.subr.bf16.mxu0 %v2997
      %3255 = vmatpush1.bf16.msra.mxu0 %v2996
      %3256 = vmatprep.subr.bf16.mxu0 %v3005
      %3257 = vmatpush1.bf16.msra.mxu0 %v3004
      %3258 = vmatprep.subr.bf16.mxu0 %v3013
      %3259 = vmatpush1.bf16.msra.mxu0 %v3012
      %3260 = vmatprep.mubr.bf16.mxu0 %v2373
      %3261 = vmatmul.mubr.bf16.gmra.mrb[0].mxu0 %v2372
      %v3262 = vpop.f32.mrb[0].mxu0
      %v3263 = vadd.f32 %v3158, %v3262
      %v3264 = vpop.f32.mrb[0].mxu0
      %v3265 = vadd.f32 %v3162, %v3264
      %v3266 = vpop.f32.mrb[0].mxu0
      %v3267 = vpop.f32.mrb[0].mxu0
      %3268 = vdwg.mxu0
      %3269 = vmatprep.subr.bf16.mxu0 %v2895
      %3270 = vmatpush1.bf16.msra.mxu0 %v2894
      %3271 = vmatprep.subr.bf16.mxu0 %v2903
      %3272 = vmatpush1.bf16.msra.mxu0 %v2902
      %3273 = vmatprep.subr.bf16.mxu0 %v2911
      %3274 = vmatpush1.bf16.msra.mxu0 %v2910
      %3275 = vmatprep.subr.bf16.mxu0 %v2919
      %3276 = vmatpush1.bf16.msra.mxu0 %v2918
      %3277 = vmatprep.subr.bf16.mxu0 %v2927
      %3278 = vmatpush1.bf16.msra.mxu0 %v2926
      %3279 = vmatprep.subr.bf16.mxu0 %v2935
      %3280 = vmatpush1.bf16.msra.mxu0 %v2934
      %3281 = vmatprep.subr.bf16.mxu0 %v2943
      %3282 = vmatpush1.bf16.msra.mxu0 %v2942
      %3283 = vmatprep.subr.bf16.mxu0 %v2951
      %3284 = vmatpush1.bf16.msra.mxu0 %v2950
      %3285 = vmatprep.subr.bf16.mxu0 %v2959
      %3286 = vmatpush1.bf16.msra.mxu0 %v2958
      %3287 = vmatprep.subr.bf16.mxu0 %v2967
      %3288 = vmatpush1.bf16.msra.mxu0 %v2966
      %3289 = vmatprep.subr.bf16.mxu0 %v2975
      %3290 = vmatpush1.bf16.msra.mxu0 %v2974
      %3291 = vmatprep.subr.bf16.mxu0 %v2983
      %3292 = vmatpush1.bf16.msra.mxu0 %v2982
      %3293 = vmatprep.subr.bf16.mxu0 %v2991
      %3294 = vmatpush1.bf16.msra.mxu0 %v2990
      %3295 = vmatprep.subr.bf16.mxu0 %v2999
      %3296 = vmatpush1.bf16.msra.mxu0 %v2998
      %3297 = vmatprep.subr.bf16.mxu0 %v3007
      %3298 = vmatpush1.bf16.msra.mxu0 %v3006
      %3299 = vmatprep.subr.bf16.mxu0 %v3015
      %3300 = vmatpush1.bf16.msra.mxu0 %v3014
      %3301 = vmatprep.mubr.bf16.mxu0 %v2373
      %3302 = vmatmul.mubr.bf16.gmra.mrb[0].mxu0 %v2372
      %v3303 = vpop.f32.mrb[0].mxu0
      %v3304 = vadd.f32 %v3166, %v3303
      %v3305 = vpop.f32.mrb[0].mxu0
      %v3306 = vadd.f32 %v3170, %v3305
      %v3307 = vpop.f32.mrb[0].mxu0
      %v3308 = vpop.f32.mrb[0].mxu0
      %3309 = vdwg.mxu0
      %3310 = vmatprep.subr.bf16.mxu0 %v2897
      %3311 = vmatpush1.bf16.msra.mxu0 %v2896
      %3312 = vmatprep.subr.bf16.mxu0 %v2905
      %3313 = vmatpush1.bf16.msra.mxu0 %v2904
      %3314 = vmatprep.subr.bf16.mxu0 %v2913
      %3315 = vmatpush1.bf16.msra.mxu0 %v2912
      %3316 = vmatprep.subr.bf16.mxu0 %v2921
      %3317 = vmatpush1.bf16.msra.mxu0 %v2920
      %3318 = vmatprep.subr.bf16.mxu0 %v2929
      %3319 = vmatpush1.bf16.msra.mxu0 %v2928
      %3320 = vmatprep.subr.bf16.mxu0 %v2937
      %3321 = vmatpush1.bf16.msra.mxu0 %v2936
      %3322 = vmatprep.subr.bf16.mxu0 %v2945
      %3323 = vmatpush1.bf16.msra.mxu0 %v2944
      %3324 = vmatprep.subr.bf16.mxu0 %v2953
      %3325 = vmatpush1.bf16.msra.mxu0 %v2952
      %3326 = vmatprep.subr.bf16.mxu0 %v2961
      %3327 = vmatpush1.bf16.msra.mxu0 %v2960
      %3328 = vmatprep.subr.bf16.mxu0 %v2969
      %3329 = vmatpush1.bf16.msra.mxu0 %v2968
      %3330 = vmatprep.subr.bf16.mxu0 %v2977
      %3331 = vmatpush1.bf16.msra.mxu0 %v2976
      %3332 = vmatprep.subr.bf16.mxu0 %v2985
      %3333 = vmatpush1.bf16.msra.mxu0 %v2984
      %3334 = vmatprep.subr.bf16.mxu0 %v2993
      %3335 = vmatpush1.bf16.msra.mxu0 %v2992
      %3336 = vmatprep.subr.bf16.mxu0 %v3001
      %3337 = vmatpush1.bf16.msra.mxu0 %v3000
      %3338 = vmatprep.subr.bf16.mxu0 %v3009
      %3339 = vmatpush1.bf16.msra.mxu0 %v3008
      %3340 = vmatprep.subr.bf16.mxu0 %v3017
      %3341 = vmatpush1.bf16.msra.mxu0 %v3016
      %3342 = vmatprep.mubr.bf16.mxu0 %v2373
      %3343 = vmatmul.mubr.bf16.gmra.mrb[0].mxu0 %v2372
      %v3344 = vpop.f32.mrb[0].mxu0
      %v3345 = vadd.f32 %v3174, %v3344
      %v3346 = vpop.f32.mrb[0].mxu0
      %v3347 = vadd.f32 %v3178, %v3346
      %v3348 = vpop.f32.mrb[0].mxu0
      %v3349 = vpop.f32.mrb[0].mxu0
      %3350 = vdwg.mxu0
      %vm3351 = vcmp.ge.f32.partialorder %v3222, 0.0
      %vm3352 = vcmp.ge.f32.partialorder %v3224, 0.0
      %vm3353 = vcmp.ge.f32.partialorder %v3263, 0.0
      %vm3354 = vcmp.ge.f32.partialorder %v3265, 0.0
      %vm3355 = vcmp.ge.f32.partialorder %v3304, 0.0
      %vm3356 = vcmp.ge.f32.partialorder %v3306, 0.0
      %vm3357 = vcmp.ge.f32.partialorder %v3345, 0.0
      %vm3358 = vcmp.ge.f32.partialorder %v3347, 0.0
      %v3359 = vmul.f32 %v3222, 0.01
      %v3360 = vmul.f32 %v3224, 0.01
      %v3361 = vmul.f32 %v3263, 0.01
      %v3362 = vmul.f32 %v3265, 0.01
      %v3363 = vmul.f32 %v3304, 0.01
      %v3364 = vmul.f32 %v3306, 0.01
      %v3365 = vmul.f32 %v3345, 0.01
      %v3366 = vmul.f32 %v3347, 0.01
      %v3367 = vsel %vm3351, %v3222, %v3359
      %v3368 = vsel %vm3352, %v3224, %v3360
      %v3369 = vsel %vm3353, %v3263, %v3361
      %v3370 = vsel %vm3354, %v3265, %v3362
      %v3371 = vsel %vm3355, %v3304, %v3363
      %v3372 = vsel %vm3356, %v3306, %v3364
      %v3373 = vsel %vm3357, %v3345, %v3365
      %v3374 = vsel %vm3358, %v3347, %v3366
      %v3375 = vpack.c.bf16 %v3367, %v3367
      %v3376 = vpack.c.bf16 %v3368, %v3368
      %v3377 = vpack.c.bf16 %v3369, %v3369
      %v3378 = vpack.c.bf16 %v3370, %v3370
      %v3379 = vpack.c.bf16 %v3371, %v3371
      %v3380 = vpack.c.bf16 %v3372, %v3372
      %v3381 = vpack.c.bf16 %v3373, %v3373
      %v3382 = vpack.c.bf16 %v3374, %v3374
      %v3383 = vld [vmem:[%s10] sm:$0xff]
      %v3384 = vld [vmem:[%s10 + $0x8] sm:$0xff]
      %v3385 = vld [vmem:[%s10 + $0x10] sm:$0xff]
      %v3386 = vld [vmem:[%s10 + $0x18] sm:$0xff]
      %v3387 = vld [vmem:[%s10 + $0x20] sm:$0xff]
      %v3388 = vld [vmem:[%s10 + $0x28] sm:$0xff]
      %v3389 = vld [vmem:[%s10 + $0x30] sm:$0xff]
      %v3390 = vld [vmem:[%s10 + $0x38] sm:$0xff]
      %v3391 = vld [vmem:[%s10 + $0x40] sm:$0xff]
      %v3392 = vld [vmem:[%s10 + $0x48] sm:$0xff]
      %v3393 = vld [vmem:[%s10 + $0x50] sm:$0xff]
      %v3394 = vld [vmem:[%s10 + $0x58] sm:$0xff]
      %v3395 = vld [vmem:[%s10 + $0x60] sm:$0xff]
      %v3396 = vld [vmem:[%s10 + $0x68] sm:$0xff]
      %v3397 = vld [vmem:[%s10 + $0x70] sm:$0xff]
      %v3398 = vld [vmem:[%s10 + $0x78] sm:$0xff]
      %v3399 = vld [vmem:[%s10 + $0x80] sm:$0xff]
      %v3400 = vld [vmem:[%s10 + $0x88] sm:$0xff]
      %v3401 = vld [vmem:[%s10 + $0x90] sm:$0xff]
      %v3402 = vld [vmem:[%s10 + $0x98] sm:$0xff]
      %v3403 = vld [vmem:[%s10 + $0xa0] sm:$0xff]
      %v3404 = vld [vmem:[%s10 + $0xa8] sm:$0xff]
      %v3405 = vld [vmem:[%s10 + $0xb0] sm:$0xff]
      %v3406 = vld [vmem:[%s10 + $0xb8] sm:$0xff]
      %v3407 = vld [vmem:[%s10 + $0xc0] sm:$0xff]
      %v3408 = vld [vmem:[%s10 + $0xc8] sm:$0xff]
      %v3409 = vld [vmem:[%s10 + $0xd0] sm:$0xff]
      %v3410 = vld [vmem:[%s10 + $0xd8] sm:$0xff]
      %v3411 = vld [vmem:[%s10 + $0xe0] sm:$0xff]
      %v3412 = vld [vmem:[%s10 + $0xe8] sm:$0xff]
      %v3413 = vld [vmem:[%s10 + $0xf0] sm:$0xff]
      %v3414 = vld [vmem:[%s10 + $0xf8] sm:$0xff]
      %v3415 = vld [vmem:[%s10 + $0x100] sm:$0xff]
      %v3416 = vld [vmem:[%s10 + $0x108] sm:$0xff]
      %v3417 = vld [vmem:[%s10 + $0x110] sm:$0xff]
      %v3418 = vld [vmem:[%s10 + $0x118] sm:$0xff]
      %v3419 = vld [vmem:[%s10 + $0x120] sm:$0xff]
      %v3420 = vld [vmem:[%s10 + $0x128] sm:$0xff]
      %v3421 = vld [vmem:[%s10 + $0x130] sm:$0xff]
      %v3422 = vld [vmem:[%s10 + $0x138] sm:$0xff]
      %v3423 = vld [vmem:[%s10 + $0x140] sm:$0xff]
      %v3424 = vld [vmem:[%s10 + $0x148] sm:$0xff]
      %v3425 = vld [vmem:[%s10 + $0x150] sm:$0xff]
      %v3426 = vld [vmem:[%s10 + $0x158] sm:$0xff]
      %v3427 = vld [vmem:[%s10 + $0x160] sm:$0xff]
      %v3428 = vld [vmem:[%s10 + $0x168] sm:$0xff]
      %v3429 = vld [vmem:[%s10 + $0x170] sm:$0xff]
      %v3430 = vld [vmem:[%s10 + $0x178] sm:$0xff]
      %v3431 = vld [vmem:[%s10 + $0x180] sm:$0xff]
      %v3432 = vld [vmem:[%s10 + $0x188] sm:$0xff]
      %v3433 = vld [vmem:[%s10 + $0x190] sm:$0xff]
      %v3434 = vld [vmem:[%s10 + $0x198] sm:$0xff]
      %v3435 = vld [vmem:[%s10 + $0x1a0] sm:$0xff]
      %v3436 = vld [vmem:[%s10 + $0x1a8] sm:$0xff]
      %v3437 = vld [vmem:[%s10 + $0x1b0] sm:$0xff]
      %v3438 = vld [vmem:[%s10 + $0x1b8] sm:$0xff]
      %v3439 = vld [vmem:[%s10 + $0x1c0] sm:$0xff]
      %v3440 = vld [vmem:[%s10 + $0x1c8] sm:$0xff]
      %v3441 = vld [vmem:[%s10 + $0x1d0] sm:$0xff]
      %v3442 = vld [vmem:[%s10 + $0x1d8] sm:$0xff]
      %v3443 = vld [vmem:[%s10 + $0x1e0] sm:$0xff]
      %v3444 = vld [vmem:[%s10 + $0x1e8] sm:$0xff]
      %v3445 = vld [vmem:[%s10 + $0x1f0] sm:$0xff]
      %v3446 = vld [vmem:[%s10 + $0x1f8] sm:$0xff]
      %v3447 = vld [vmem:[%s10 + $0x200] sm:$0xff]
      %v3448 = vld [vmem:[%s10 + $0x208] sm:$0xff]
      %v3449 = vld [vmem:[%s10 + $0x210] sm:$0xff]
      %v3450 = vld [vmem:[%s10 + $0x218] sm:$0xff]
      %v3451 = vld [vmem:[%s10 + $0x220] sm:$0xff]
      %v3452 = vld [vmem:[%s10 + $0x228] sm:$0xff]
      %v3453 = vld [vmem:[%s10 + $0x230] sm:$0xff]
      %v3454 = vld [vmem:[%s10 + $0x238] sm:$0xff]
      %v3455 = vld [vmem:[%s10 + $0x240] sm:$0xff]
      %v3456 = vld [vmem:[%s10 + $0x248] sm:$0xff]
      %v3457 = vld [vmem:[%s10 + $0x250] sm:$0xff]
      %v3458 = vld [vmem:[%s10 + $0x258] sm:$0xff]
      %v3459 = vld [vmem:[%s10 + $0x260] sm:$0xff]
      %v3460 = vld [vmem:[%s10 + $0x268] sm:$0xff]
      %v3461 = vld [vmem:[%s10 + $0x270] sm:$0xff]
      %v3462 = vld [vmem:[%s10 + $0x278] sm:$0xff]
      %v3463 = vld [vmem:[%s10 + $0x280] sm:$0xff]
      %v3464 = vld [vmem:[%s10 + $0x288] sm:$0xff]
      %v3465 = vld [vmem:[%s10 + $0x290] sm:$0xff]
      %v3466 = vld [vmem:[%s10 + $0x298] sm:$0xff]
      %v3467 = vld [vmem:[%s10 + $0x2a0] sm:$0xff]
      %v3468 = vld [vmem:[%s10 + $0x2a8] sm:$0xff]
      %v3469 = vld [vmem:[%s10 + $0x2b0] sm:$0xff]
      %v3470 = vld [vmem:[%s10 + $0x2b8] sm:$0xff]
      %v3471 = vld [vmem:[%s10 + $0x2c0] sm:$0xff]
      %v3472 = vld [vmem:[%s10 + $0x2c8] sm:$0xff]
      %v3473 = vld [vmem:[%s10 + $0x2d0] sm:$0xff]
      %v3474 = vld [vmem:[%s10 + $0x2d8] sm:$0xff]
      %v3475 = vld [vmem:[%s10 + $0x2e0] sm:$0xff]
      %v3476 = vld [vmem:[%s10 + $0x2e8] sm:$0xff]
      %v3477 = vld [vmem:[%s10 + $0x2f0] sm:$0xff]
      %v3478 = vld [vmem:[%s10 + $0x2f8] sm:$0xff]
      %v3479 = vld [vmem:[%s10 + $0x300] sm:$0xff]
      %v3480 = vld [vmem:[%s10 + $0x308] sm:$0xff]
      %v3481 = vld [vmem:[%s10 + $0x310] sm:$0xff]
      %v3482 = vld [vmem:[%s10 + $0x318] sm:$0xff]
      %v3483 = vld [vmem:[%s10 + $0x320] sm:$0xff]
      %v3484 = vld [vmem:[%s10 + $0x328] sm:$0xff]
      %v3485 = vld [vmem:[%s10 + $0x330] sm:$0xff]
      %v3486 = vld [vmem:[%s10 + $0x338] sm:$0xff]
      %v3487 = vld [vmem:[%s10 + $0x340] sm:$0xff]
      %v3488 = vld [vmem:[%s10 + $0x348] sm:$0xff]
      %v3489 = vld [vmem:[%s10 + $0x350] sm:$0xff]
      %v3490 = vld [vmem:[%s10 + $0x358] sm:$0xff]
      %v3491 = vld [vmem:[%s10 + $0x360] sm:$0xff]
      %v3492 = vld [vmem:[%s10 + $0x368] sm:$0xff]
      %v3493 = vld [vmem:[%s10 + $0x370] sm:$0xff]
      %v3494 = vld [vmem:[%s10 + $0x378] sm:$0xff]
      %v3495 = vld [vmem:[%s10 + $0x380] sm:$0xff]
      %v3496 = vld [vmem:[%s10 + $0x388] sm:$0xff]
      %v3497 = vld [vmem:[%s10 + $0x390] sm:$0xff]
      %v3498 = vld [vmem:[%s10 + $0x398] sm:$0xff]
      %v3499 = vld [vmem:[%s10 + $0x3a0] sm:$0xff]
      %v3500 = vld [vmem:[%s10 + $0x3a8] sm:$0xff]
      %v3501 = vld [vmem:[%s10 + $0x3b0] sm:$0xff]
      %v3502 = vld [vmem:[%s10 + $0x3b8] sm:$0xff]
      %v3503 = vld [vmem:[%s10 + $0x3c0] sm:$0xff]
      %v3504 = vld [vmem:[%s10 + $0x3c8] sm:$0xff]
      %v3505 = vld [vmem:[%s10 + $0x3d0] sm:$0xff]
      %v3506 = vld [vmem:[%s10 + $0x3d8] sm:$0xff]
      %v3507 = vld [vmem:[%s10 + $0x3e0] sm:$0xff]
      %v3508 = vld [vmem:[%s10 + $0x3e8] sm:$0xff]
      %v3509 = vld [vmem:[%s10 + $0x3f0] sm:$0xff]
      %v3510 = vld [vmem:[%s10 + $0x3f8] sm:$0xff]
      %s3511 = scalar_lea.vmem %s12, 64
      %v3512 = vld [vmem:[%s3511] ss:$8 sm:$0x3]
      %v3641 = vunpack.c.l.b16 %v3383
      %v3642 = vunpack.c.h.b16 %v3383
      %v3643 = vunpack.c.l.b16 %v3384
      %v3644 = vunpack.c.h.b16 %v3384
      %v3645 = vunpack.c.l.b16 %v3385
      %v3646 = vunpack.c.h.b16 %v3385
      %v3647 = vunpack.c.l.b16 %v3386
      %v3648 = vunpack.c.h.b16 %v3386
      %v3649 = vunpack.c.l.b16 %v3387
      %v3650 = vunpack.c.h.b16 %v3387
      %v3651 = vunpack.c.l.b16 %v3388
      %v3652 = vunpack.c.h.b16 %v3388
      %v3653 = vunpack.c.l.b16 %v3389
      %v3654 = vunpack.c.h.b16 %v3389
      %v3655 = vunpack.c.l.b16 %v3390
      %v3656 = vunpack.c.h.b16 %v3390
      %v3657 = vunpack.c.l.b16 %v3391
      %v3658 = vunpack.c.h.b16 %v3391
      %v3659 = vunpack.c.l.b16 %v3392
      %v3660 = vunpack.c.h.b16 %v3392
      %v3661 = vunpack.c.l.b16 %v3393
      %v3662 = vunpack.c.h.b16 %v3393
      %v3663 = vunpack.c.l.b16 %v3394
      %v3664 = vunpack.c.h.b16 %v3394
      %v3665 = vunpack.c.l.b16 %v3395
      %v3666 = vunpack.c.h.b16 %v3395
      %v3667 = vunpack.c.l.b16 %v3396
      %v3668 = vunpack.c.h.b16 %v3396
      %v3669 = vunpack.c.l.b16 %v3397
      %v3670 = vunpack.c.h.b16 %v3397
      %v3671 = vunpack.c.l.b16 %v3398
      %v3672 = vunpack.c.h.b16 %v3398
      %v3673 = vunpack.c.l.b16 %v3399
      %v3674 = vunpack.c.h.b16 %v3399
      %v3675 = vunpack.c.l.b16 %v3400
      %v3676 = vunpack.c.h.b16 %v3400
      %v3677 = vunpack.c.l.b16 %v3401
      %v3678 = vunpack.c.h.b16 %v3401
      %v3679 = vunpack.c.l.b16 %v3402
      %v3680 = vunpack.c.h.b16 %v3402
      %v3681 = vunpack.c.l.b16 %v3403
      %v3682 = vunpack.c.h.b16 %v3403
      %v3683 = vunpack.c.l.b16 %v3404
      %v3684 = vunpack.c.h.b16 %v3404
      %v3685 = vunpack.c.l.b16 %v3405
      %v3686 = vunpack.c.h.b16 %v3405
      %v3687 = vunpack.c.l.b16 %v3406
      %v3688 = vunpack.c.h.b16 %v3406
      %v3689 = vunpack.c.l.b16 %v3407
      %v3690 = vunpack.c.h.b16 %v3407
      %v3691 = vunpack.c.l.b16 %v3408
      %v3692 = vunpack.c.h.b16 %v3408
      %v3693 = vunpack.c.l.b16 %v3409
      %v3694 = vunpack.c.h.b16 %v3409
      %v3695 = vunpack.c.l.b16 %v3410
      %v3696 = vunpack.c.h.b16 %v3410
      %v3697 = vunpack.c.l.b16 %v3411
      %v3698 = vunpack.c.h.b16 %v3411
      %v3699 = vunpack.c.l.b16 %v3412
      %v3700 = vunpack.c.h.b16 %v3412
      %v3701 = vunpack.c.l.b16 %v3413
      %v3702 = vunpack.c.h.b16 %v3413
      %v3703 = vunpack.c.l.b16 %v3414
      %v3704 = vunpack.c.h.b16 %v3414
      %v3705 = vunpack.c.l.b16 %v3415
      %v3706 = vunpack.c.h.b16 %v3415
      %v3707 = vunpack.c.l.b16 %v3416
      %v3708 = vunpack.c.h.b16 %v3416
      %v3709 = vunpack.c.l.b16 %v3417
      %v3710 = vunpack.c.h.b16 %v3417
      %v3711 = vunpack.c.l.b16 %v3418
      %v3712 = vunpack.c.h.b16 %v3418
      %v3713 = vunpack.c.l.b16 %v3419
      %v3714 = vunpack.c.h.b16 %v3419
      %v3715 = vunpack.c.l.b16 %v3420
      %v3716 = vunpack.c.h.b16 %v3420
      %v3717 = vunpack.c.l.b16 %v3421
      %v3718 = vunpack.c.h.b16 %v3421
      %v3719 = vunpack.c.l.b16 %v3422
      %v3720 = vunpack.c.h.b16 %v3422
      %v3721 = vunpack.c.l.b16 %v3423
      %v3722 = vunpack.c.h.b16 %v3423
      %v3723 = vunpack.c.l.b16 %v3424
      %v3724 = vunpack.c.h.b16 %v3424
      %v3725 = vunpack.c.l.b16 %v3425
      %v3726 = vunpack.c.h.b16 %v3425
      %v3727 = vunpack.c.l.b16 %v3426
      %v3728 = vunpack.c.h.b16 %v3426
      %v3729 = vunpack.c.l.b16 %v3427
      %v3730 = vunpack.c.h.b16 %v3427
      %v3731 = vunpack.c.l.b16 %v3428
      %v3732 = vunpack.c.h.b16 %v3428
      %v3733 = vunpack.c.l.b16 %v3429
      %v3734 = vunpack.c.h.b16 %v3429
      %v3735 = vunpack.c.l.b16 %v3430
      %v3736 = vunpack.c.h.b16 %v3430
      %v3737 = vunpack.c.l.b16 %v3431
      %v3738 = vunpack.c.h.b16 %v3431
      %v3739 = vunpack.c.l.b16 %v3432
      %v3740 = vunpack.c.h.b16 %v3432
      %v3741 = vunpack.c.l.b16 %v3433
      %v3742 = vunpack.c.h.b16 %v3433
      %v3743 = vunpack.c.l.b16 %v3434
      %v3744 = vunpack.c.h.b16 %v3434
      %v3745 = vunpack.c.l.b16 %v3435
      %v3746 = vunpack.c.h.b16 %v3435
      %v3747 = vunpack.c.l.b16 %v3436
      %v3748 = vunpack.c.h.b16 %v3436
      %v3749 = vunpack.c.l.b16 %v3437
      %v3750 = vunpack.c.h.b16 %v3437
      %v3751 = vunpack.c.l.b16 %v3438
      %v3752 = vunpack.c.h.b16 %v3438
      %v3753 = vunpack.c.l.b16 %v3439
      %v3754 = vunpack.c.h.b16 %v3439
      %v3755 = vunpack.c.l.b16 %v3440
      %v3756 = vunpack.c.h.b16 %v3440
      %v3757 = vunpack.c.l.b16 %v3441
      %v3758 = vunpack.c.h.b16 %v3441
      %v3759 = vunpack.c.l.b16 %v3442
      %v3760 = vunpack.c.h.b16 %v3442
      %v3761 = vunpack.c.l.b16 %v3443
      %v3762 = vunpack.c.h.b16 %v3443
      %v3763 = vunpack.c.l.b16 %v3444
      %v3764 = vunpack.c.h.b16 %v3444
      %v3765 = vunpack.c.l.b16 %v3445
      %v3766 = vunpack.c.h.b16 %v3445
      %v3767 = vunpack.c.l.b16 %v3446
      %v3768 = vunpack.c.h.b16 %v3446
      %v3769 = vunpack.c.l.b16 %v3447
      %v3770 = vunpack.c.h.b16 %v3447
      %v3771 = vunpack.c.l.b16 %v3448
      %v3772 = vunpack.c.h.b16 %v3448
      %v3773 = vunpack.c.l.b16 %v3449
      %v3774 = vunpack.c.h.b16 %v3449
      %v3775 = vunpack.c.l.b16 %v3450
      %v3776 = vunpack.c.h.b16 %v3450
      %v3777 = vunpack.c.l.b16 %v3451
      %v3778 = vunpack.c.h.b16 %v3451
      %v3779 = vunpack.c.l.b16 %v3452
      %v3780 = vunpack.c.h.b16 %v3452
      %v3781 = vunpack.c.l.b16 %v3453
      %v3782 = vunpack.c.h.b16 %v3453
      %v3783 = vunpack.c.l.b16 %v3454
      %v3784 = vunpack.c.h.b16 %v3454
      %v3785 = vunpack.c.l.b16 %v3455
      %v3786 = vunpack.c.h.b16 %v3455
      %v3787 = vunpack.c.l.b16 %v3456
      %v3788 = vunpack.c.h.b16 %v3456
      %v3789 = vunpack.c.l.b16 %v3457
      %v3790 = vunpack.c.h.b16 %v3457
      %v3791 = vunpack.c.l.b16 %v3458
      %v3792 = vunpack.c.h.b16 %v3458
      %v3793 = vunpack.c.l.b16 %v3459
      %v3794 = vunpack.c.h.b16 %v3459
      %v3795 = vunpack.c.l.b16 %v3460
      %v3796 = vunpack.c.h.b16 %v3460
      %v3797 = vunpack.c.l.b16 %v3461
      %v3798 = vunpack.c.h.b16 %v3461
      %v3799 = vunpack.c.l.b16 %v3462
      %v3800 = vunpack.c.h.b16 %v3462
      %v3801 = vunpack.c.l.b16 %v3463
      %v3802 = vunpack.c.h.b16 %v3463
      %v3803 = vunpack.c.l.b16 %v3464
      %v3804 = vunpack.c.h.b16 %v3464
      %v3805 = vunpack.c.l.b16 %v3465
      %v3806 = vunpack.c.h.b16 %v3465
      %v3807 = vunpack.c.l.b16 %v3466
      %v3808 = vunpack.c.h.b16 %v3466
      %v3809 = vunpack.c.l.b16 %v3467
      %v3810 = vunpack.c.h.b16 %v3467
      %v3811 = vunpack.c.l.b16 %v3468
      %v3812 = vunpack.c.h.b16 %v3468
      %v3813 = vunpack.c.l.b16 %v3469
      %v3814 = vunpack.c.h.b16 %v3469
      %v3815 = vunpack.c.l.b16 %v3470
      %v3816 = vunpack.c.h.b16 %v3470
      %v3817 = vunpack.c.l.b16 %v3471
      %v3818 = vunpack.c.h.b16 %v3471
      %v3819 = vunpack.c.l.b16 %v3472
      %v3820 = vunpack.c.h.b16 %v3472
      %v3821 = vunpack.c.l.b16 %v3473
      %v3822 = vunpack.c.h.b16 %v3473
      %v3823 = vunpack.c.l.b16 %v3474
      %v3824 = vunpack.c.h.b16 %v3474
      %v3825 = vunpack.c.l.b16 %v3475
      %v3826 = vunpack.c.h.b16 %v3475
      %v3827 = vunpack.c.l.b16 %v3476
      %v3828 = vunpack.c.h.b16 %v3476
      %v3829 = vunpack.c.l.b16 %v3477
      %v3830 = vunpack.c.h.b16 %v3477
      %v3831 = vunpack.c.l.b16 %v3478
      %v3832 = vunpack.c.h.b16 %v3478
      %v3833 = vunpack.c.l.b16 %v3479
      %v3834 = vunpack.c.h.b16 %v3479
      %v3835 = vunpack.c.l.b16 %v3480
      %v3836 = vunpack.c.h.b16 %v3480
      %v3837 = vunpack.c.l.b16 %v3481
      %v3838 = vunpack.c.h.b16 %v3481
      %v3839 = vunpack.c.l.b16 %v3482
      %v3840 = vunpack.c.h.b16 %v3482
      %v3841 = vunpack.c.l.b16 %v3483
      %v3842 = vunpack.c.h.b16 %v3483
      %v3843 = vunpack.c.l.b16 %v3484
      %v3844 = vunpack.c.h.b16 %v3484
      %v3845 = vunpack.c.l.b16 %v3485
      %v3846 = vunpack.c.h.b16 %v3485
      %v3847 = vunpack.c.l.b16 %v3486
      %v3848 = vunpack.c.h.b16 %v3486
      %v3849 = vunpack.c.l.b16 %v3487
      %v3850 = vunpack.c.h.b16 %v3487
      %v3851 = vunpack.c.l.b16 %v3488
      %v3852 = vunpack.c.h.b16 %v3488
      %v3853 = vunpack.c.l.b16 %v3489
      %v3854 = vunpack.c.h.b16 %v3489
      %v3855 = vunpack.c.l.b16 %v3490
      %v3856 = vunpack.c.h.b16 %v3490
      %v3857 = vunpack.c.l.b16 %v3491
      %v3858 = vunpack.c.h.b16 %v3491
      %v3859 = vunpack.c.l.b16 %v3492
      %v3860 = vunpack.c.h.b16 %v3492
      %v3861 = vunpack.c.l.b16 %v3493
      %v3862 = vunpack.c.h.b16 %v3493
      %v3863 = vunpack.c.l.b16 %v3494
      %v3864 = vunpack.c.h.b16 %v3494
      %v3865 = vunpack.c.l.b16 %v3495
      %v3866 = vunpack.c.h.b16 %v3495
      %v3867 = vunpack.c.l.b16 %v3496
      %v3868 = vunpack.c.h.b16 %v3496
      %v3869 = vunpack.c.l.b16 %v3497
      %v3870 = vunpack.c.h.b16 %v3497
      %v3871 = vunpack.c.l.b16 %v3498
      %v3872 = vunpack.c.h.b16 %v3498
      %v3873 = vunpack.c.l.b16 %v3499
      %v3874 = vunpack.c.h.b16 %v3499
      %v3875 = vunpack.c.l.b16 %v3500
      %v3876 = vunpack.c.h.b16 %v3500
      %v3877 = vunpack.c.l.b16 %v3501
      %v3878 = vunpack.c.h.b16 %v3501
      %v3879 = vunpack.c.l.b16 %v3502
      %v3880 = vunpack.c.h.b16 %v3502
      %v3881 = vunpack.c.l.b16 %v3503
      %v3882 = vunpack.c.h.b16 %v3503
      %v3883 = vunpack.c.l.b16 %v3504
      %v3884 = vunpack.c.h.b16 %v3504
      %v3885 = vunpack.c.l.b16 %v3505
      %v3886 = vunpack.c.h.b16 %v3505
      %v3887 = vunpack.c.l.b16 %v3506
      %v3888 = vunpack.c.h.b16 %v3506
      %v3889 = vunpack.c.l.b16 %v3507
      %v3890 = vunpack.c.h.b16 %v3507
      %v3891 = vunpack.c.l.b16 %v3508
      %v3892 = vunpack.c.h.b16 %v3508
      %v3893 = vunpack.c.l.b16 %v3509
      %v3894 = vunpack.c.h.b16 %v3509
      %v3895 = vunpack.c.l.b16 %v3510
      %v3896 = vunpack.c.h.b16 %v3510
      %v3897 = vpack.c.b16 %v3643, %v3641
      %v3898 = vpack.c.b16 %v3644, %v3642
      %v3899 = vpack.c.b16 %v3647, %v3645
      %v3900 = vpack.c.b16 %v3648, %v3646
      %v3901 = vpack.c.b16 %v3651, %v3649
      %v3902 = vpack.c.b16 %v3652, %v3650
      %v3903 = vpack.c.b16 %v3655, %v3653
      %v3904 = vpack.c.b16 %v3656, %v3654
      %v3905 = vpack.c.b16 %v3659, %v3657
      %v3906 = vpack.c.b16 %v3660, %v3658
      %v3907 = vpack.c.b16 %v3663, %v3661
      %v3908 = vpack.c.b16 %v3664, %v3662
      %v3909 = vpack.c.b16 %v3667, %v3665
      %v3910 = vpack.c.b16 %v3668, %v3666
      %v3911 = vpack.c.b16 %v3671, %v3669
      %v3912 = vpack.c.b16 %v3672, %v3670
      %v3913 = vpack.c.b16 %v3675, %v3673
      %v3914 = vpack.c.b16 %v3676, %v3674
      %v3915 = vpack.c.b16 %v3679, %v3677
      %v3916 = vpack.c.b16 %v3680, %v3678
      %v3917 = vpack.c.b16 %v3683, %v3681
      %v3918 = vpack.c.b16 %v3684, %v3682
      %v3919 = vpack.c.b16 %v3687, %v3685
      %v3920 = vpack.c.b16 %v3688, %v3686
      %v3921 = vpack.c.b16 %v3691, %v3689
      %v3922 = vpack.c.b16 %v3692, %v3690
      %v3923 = vpack.c.b16 %v3695, %v3693
      %v3924 = vpack.c.b16 %v3696, %v3694
      %v3925 = vpack.c.b16 %v3699, %v3697
      %v3926 = vpack.c.b16 %v3700, %v3698
      %v3927 = vpack.c.b16 %v3703, %v3701
      %v3928 = vpack.c.b16 %v3704, %v3702
      %v3929 = vpack.c.b16 %v3707, %v3705
      %v3930 = vpack.c.b16 %v3708, %v3706
      %v3931 = vpack.c.b16 %v3711, %v3709
      %v3932 = vpack.c.b16 %v3712, %v3710
      %v3933 = vpack.c.b16 %v3715, %v3713
      %v3934 = vpack.c.b16 %v3716, %v3714
      %v3935 = vpack.c.b16 %v3719, %v3717
      %v3936 = vpack.c.b16 %v3720, %v3718
      %v3937 = vpack.c.b16 %v3723, %v3721
      %v3938 = vpack.c.b16 %v3724, %v3722
      %v3939 = vpack.c.b16 %v3727, %v3725
      %v3940 = vpack.c.b16 %v3728, %v3726
      %v3941 = vpack.c.b16 %v3731, %v3729
      %v3942 = vpack.c.b16 %v3732, %v3730
      %v3943 = vpack.c.b16 %v3735, %v3733
      %v3944 = vpack.c.b16 %v3736, %v3734
      %v3945 = vpack.c.b16 %v3739, %v3737
      %v3946 = vpack.c.b16 %v3740, %v3738
      %v3947 = vpack.c.b16 %v3743, %v3741
      %v3948 = vpack.c.b16 %v3744, %v3742
      %v3949 = vpack.c.b16 %v3747, %v3745
      %v3950 = vpack.c.b16 %v3748, %v3746
      %v3951 = vpack.c.b16 %v3751, %v3749
      %v3952 = vpack.c.b16 %v3752, %v3750
      %v3953 = vpack.c.b16 %v3755, %v3753
      %v3954 = vpack.c.b16 %v3756, %v3754
      %v3955 = vpack.c.b16 %v3759, %v3757
      %v3956 = vpack.c.b16 %v3760, %v3758
      %v3957 = vpack.c.b16 %v3763, %v3761
      %v3958 = vpack.c.b16 %v3764, %v3762
      %v3959 = vpack.c.b16 %v3767, %v3765
      %v3960 = vpack.c.b16 %v3768, %v3766
      %v3961 = vpack.c.b16 %v3771, %v3769
      %v3962 = vpack.c.b16 %v3772, %v3770
      %v3963 = vpack.c.b16 %v3775, %v3773
      %v3964 = vpack.c.b16 %v3776, %v3774
      %v3965 = vpack.c.b16 %v3779, %v3777
      %v3966 = vpack.c.b16 %v3780, %v3778
      %v3967 = vpack.c.b16 %v3783, %v3781
      %v3968 = vpack.c.b16 %v3784, %v3782
      %v3969 = vpack.c.b16 %v3787, %v3785
      %v3970 = vpack.c.b16 %v3788, %v3786
      %v3971 = vpack.c.b16 %v3791, %v3789
      %v3972 = vpack.c.b16 %v3792, %v3790
      %v3973 = vpack.c.b16 %v3795, %v3793
      %v3974 = vpack.c.b16 %v3796, %v3794
      %v3975 = vpack.c.b16 %v3799, %v3797
      %v3976 = vpack.c.b16 %v3800, %v3798
      %v3977 = vpack.c.b16 %v3803, %v3801
      %v3978 = vpack.c.b16 %v3804, %v3802
      %v3979 = vpack.c.b16 %v3807, %v3805
      %v3980 = vpack.c.b16 %v3808, %v3806
      %v3981 = vpack.c.b16 %v3811, %v3809
      %v3982 = vpack.c.b16 %v3812, %v3810
      %v3983 = vpack.c.b16 %v3815, %v3813
      %v3984 = vpack.c.b16 %v3816, %v3814
      %v3985 = vpack.c.b16 %v3819, %v3817
      %v3986 = vpack.c.b16 %v3820, %v3818
      %v3987 = vpack.c.b16 %v3823, %v3821
      %v3988 = vpack.c.b16 %v3824, %v3822
      %v3989 = vpack.c.b16 %v3827, %v3825
      %v3990 = vpack.c.b16 %v3828, %v3826
      %v3991 = vpack.c.b16 %v3831, %v3829
      %v3992 = vpack.c.b16 %v3832, %v3830
      %v3993 = vpack.c.b16 %v3835, %v3833
      %v3994 = vpack.c.b16 %v3836, %v3834
      %v3995 = vpack.c.b16 %v3839, %v3837
      %v3996 = vpack.c.b16 %v3840, %v3838
      %v3997 = vpack.c.b16 %v3843, %v3841
      %v3998 = vpack.c.b16 %v3844, %v3842
      %v3999 = vpack.c.b16 %v3847, %v3845
      %v4000 = vpack.c.b16 %v3848, %v3846
      %v4001 = vpack.c.b16 %v3851, %v3849
      %v4002 = vpack.c.b16 %v3852, %v3850
      %v4003 = vpack.c.b16 %v3855, %v3853
      %v4004 = vpack.c.b16 %v3856, %v3854
      %v4005 = vpack.c.b16 %v3859, %v3857
      %v4006 = vpack.c.b16 %v3860, %v3858
      %v4007 = vpack.c.b16 %v3863, %v3861
      %v4008 = vpack.c.b16 %v3864, %v3862
      %v4009 = vpack.c.b16 %v3867, %v3865
      %v4010 = vpack.c.b16 %v3868, %v3866
      %v4011 = vpack.c.b16 %v3871, %v3869
      %v4012 = vpack.c.b16 %v3872, %v3870
      %v4013 = vpack.c.b16 %v3875, %v3873
      %v4014 = vpack.c.b16 %v3876, %v3874
      %v4015 = vpack.c.b16 %v3879, %v3877
      %v4016 = vpack.c.b16 %v3880, %v3878
      %v4017 = vpack.c.b16 %v3883, %v3881
      %v4018 = vpack.c.b16 %v3884, %v3882
      %v4019 = vpack.c.b16 %v3887, %v3885
      %v4020 = vpack.c.b16 %v3888, %v3886
      %v4021 = vpack.c.b16 %v3891, %v3889
      %v4022 = vpack.c.b16 %v3892, %v3890
      %v4023 = vpack.c.b16 %v3895, %v3893
      %v4024 = vpack.c.b16 %v3896, %v3894
      %v4154 = vlaneseq
      %v4155 = vshrl.u32 %v4154, 7
      %v4156 = vsub.s32 0, %v4155
      %v4157 = vrot.slane %v3512, %v4156
      %v4158 = vlaneseq
      %v4159 = vshrl.u32 %v4158, 7
      %v4160 = vsub.s32 1, %v4159
      %v4161 = vrot.slane %v3512, %v4160
      %4164 = vmatprep.subr.bf16.mxu0 %v3898
      %4165 = vmatpush1.bf16.msra.mxu0 %v3897
      %4166 = vmatprep.subr.bf16.mxu0 %v3900
      %4167 = vmatpush1.bf16.msra.mxu0 %v3899
      %4168 = vmatprep.subr.bf16.mxu0 %v3902
      %4169 = vmatpush1.bf16.msra.mxu0 %v3901
      %4170 = vmatprep.subr.bf16.mxu0 %v3904
      %4171 = vmatpush1.bf16.msra.mxu0 %v3903
      %4172 = vmatprep.subr.bf16.mxu0 %v3906
      %4173 = vmatpush1.bf16.msra.mxu0 %v3905
      %4174 = vmatprep.subr.bf16.mxu0 %v3908
      %4175 = vmatpush1.bf16.msra.mxu0 %v3907
      %4176 = vmatprep.subr.bf16.mxu0 %v3910
      %4177 = vmatpush1.bf16.msra.mxu0 %v3909
      %4178 = vmatprep.subr.bf16.mxu0 %v3912
      %4179 = vmatpush1.bf16.msra.mxu0 %v3911
      %4180 = vmatprep.subr.bf16.mxu0 %v3914
      %4181 = vmatpush1.bf16.msra.mxu0 %v3913
      %4182 = vmatprep.subr.bf16.mxu0 %v3916
      %4183 = vmatpush1.bf16.msra.mxu0 %v3915
      %4184 = vmatprep.subr.bf16.mxu0 %v3918
      %4185 = vmatpush1.bf16.msra.mxu0 %v3917
      %4186 = vmatprep.subr.bf16.mxu0 %v3920
      %4187 = vmatpush1.bf16.msra.mxu0 %v3919
      %4188 = vmatprep.subr.bf16.mxu0 %v3922
      %4189 = vmatpush1.bf16.msra.mxu0 %v3921
      %4190 = vmatprep.subr.bf16.mxu0 %v3924
      %4191 = vmatpush1.bf16.msra.mxu0 %v3923
      %4192 = vmatprep.subr.bf16.mxu0 %v3926
      %4193 = vmatpush1.bf16.msra.mxu0 %v3925
      %4194 = vmatprep.subr.bf16.mxu0 %v3928
      %4195 = vmatpush1.bf16.msra.mxu0 %v3927
      %4196 = vmatprep.mubr.bf16.mxu0 %v3376
      %4197 = vmatmul.mubr.bf16.gmra.mrb[0].mxu0 %v3375
      %v4198 = vpop.f32.mrb[0].mxu0
      %v4199 = vadd.f32 %v4157, %v4198
      %v4200 = vpop.f32.mrb[0].mxu0
      %v4201 = vadd.f32 %v4161, %v4200
      %v4202 = vpop.f32.mrb[0].mxu0
      %v4203 = vpop.f32.mrb[0].mxu0
      %4204 = vdwg.mxu0
      %4205 = vmatprep.subr.bf16.mxu0 %v3930
      %4206 = vmatpush1.bf16.msra.mxu0 %v3929
      %4207 = vmatprep.subr.bf16.mxu0 %v3932
      %4208 = vmatpush1.bf16.msra.mxu0 %v3931
      %4209 = vmatprep.subr.bf16.mxu0 %v3934
      %4210 = vmatpush1.bf16.msra.mxu0 %v3933
      %4211 = vmatprep.subr.bf16.mxu0 %v3936
      %4212 = vmatpush1.bf16.msra.mxu0 %v3935
      %4213 = vmatprep.subr.bf16.mxu0 %v3938
      %4214 = vmatpush1.bf16.msra.mxu0 %v3937
      %4215 = vmatprep.subr.bf16.mxu0 %v3940
      %4216 = vmatpush1.bf16.msra.mxu0 %v3939
      %4217 = vmatprep.subr.bf16.mxu0 %v3942
      %4218 = vmatpush1.bf16.msra.mxu0 %v3941
      %4219 = vmatprep.subr.bf16.mxu0 %v3944
      %4220 = vmatpush1.bf16.msra.mxu0 %v3943
      %4221 = vmatprep.subr.bf16.mxu0 %v3946
      %4222 = vmatpush1.bf16.msra.mxu0 %v3945
      %4223 = vmatprep.subr.bf16.mxu0 %v3948
      %4224 = vmatpush1.bf16.msra.mxu0 %v3947
      %4225 = vmatprep.subr.bf16.mxu0 %v3950
      %4226 = vmatpush1.bf16.msra.mxu0 %v3949
      %4227 = vmatprep.subr.bf16.mxu0 %v3952
      %4228 = vmatpush1.bf16.msra.mxu0 %v3951
      %4229 = vmatprep.subr.bf16.mxu0 %v3954
      %4230 = vmatpush1.bf16.msra.mxu0 %v3953
      %4231 = vmatprep.subr.bf16.mxu0 %v3956
      %4232 = vmatpush1.bf16.msra.mxu0 %v3955
      %4233 = vmatprep.subr.bf16.mxu0 %v3958
      %4234 = vmatpush1.bf16.msra.mxu0 %v3957
      %4235 = vmatprep.subr.bf16.mxu0 %v3960
      %4236 = vmatpush1.bf16.msra.mxu0 %v3959
      %4237 = vmatprep.mubr.bf16.mxu0 %v3378
      %4238 = vmatmul.mubr.bf16.gmra.mrb[0].mxu0 %v3377
      %v4239 = vpop.f32.mrb[0].mxu0
      %v4240 = vadd.f32 %v4199, %v4239
      %v4241 = vpop.f32.mrb[0].mxu0
      %v4242 = vadd.f32 %v4201, %v4241
      %v4243 = vpop.f32.mrb[0].mxu0
      %v4244 = vpop.f32.mrb[0].mxu0
      %4245 = vdwg.mxu0
      %4246 = vmatprep.subr.bf16.mxu0 %v3962
      %4247 = vmatpush1.bf16.msra.mxu0 %v3961
      %4248 = vmatprep.subr.bf16.mxu0 %v3964
      %4249 = vmatpush1.bf16.msra.mxu0 %v3963
      %4250 = vmatprep.subr.bf16.mxu0 %v3966
      %4251 = vmatpush1.bf16.msra.mxu0 %v3965
      %4252 = vmatprep.subr.bf16.mxu0 %v3968
      %4253 = vmatpush1.bf16.msra.mxu0 %v3967
      %4254 = vmatprep.subr.bf16.mxu0 %v3970
      %4255 = vmatpush1.bf16.msra.mxu0 %v3969
      %4256 = vmatprep.subr.bf16.mxu0 %v3972
      %4257 = vmatpush1.bf16.msra.mxu0 %v3971
      %4258 = vmatprep.subr.bf16.mxu0 %v3974
      %4259 = vmatpush1.bf16.msra.mxu0 %v3973
      %4260 = vmatprep.subr.bf16.mxu0 %v3976
      %4261 = vmatpush1.bf16.msra.mxu0 %v3975
      %4262 = vmatprep.subr.bf16.mxu0 %v3978
      %4263 = vmatpush1.bf16.msra.mxu0 %v3977
      %4264 = vmatprep.subr.bf16.mxu0 %v3980
      %4265 = vmatpush1.bf16.msra.mxu0 %v3979
      %4266 = vmatprep.subr.bf16.mxu0 %v3982
      %4267 = vmatpush1.bf16.msra.mxu0 %v3981
      %4268 = vmatprep.subr.bf16.mxu0 %v3984
      %4269 = vmatpush1.bf16.msra.mxu0 %v3983
      %4270 = vmatprep.subr.bf16.mxu0 %v3986
      %4271 = vmatpush1.bf16.msra.mxu0 %v3985
      %4272 = vmatprep.subr.bf16.mxu0 %v3988
      %4273 = vmatpush1.bf16.msra.mxu0 %v3987
      %4274 = vmatprep.subr.bf16.mxu0 %v3990
      %4275 = vmatpush1.bf16.msra.mxu0 %v3989
      %4276 = vmatprep.subr.bf16.mxu0 %v3992
      %4277 = vmatpush1.bf16.msra.mxu0 %v3991
      %4278 = vmatprep.mubr.bf16.mxu0 %v3380
      %4279 = vmatmul.mubr.bf16.gmra.mrb[0].mxu0 %v3379
      %v4280 = vpop.f32.mrb[0].mxu0
      %v4281 = vadd.f32 %v4240, %v4280
      %v4282 = vpop.f32.mrb[0].mxu0
      %v4283 = vadd.f32 %v4242, %v4282
      %v4284 = vpop.f32.mrb[0].mxu0
      %v4285 = vpop.f32.mrb[0].mxu0
      %4286 = vdwg.mxu0
      %4287 = vmatprep.subr.bf16.mxu0 %v3994
      %4288 = vmatpush1.bf16.msra.mxu0 %v3993
      %4289 = vmatprep.subr.bf16.mxu0 %v3996
      %4290 = vmatpush1.bf16.msra.mxu0 %v3995
      %4291 = vmatprep.subr.bf16.mxu0 %v3998
      %4292 = vmatpush1.bf16.msra.mxu0 %v3997
      %4293 = vmatprep.subr.bf16.mxu0 %v4000
      %4294 = vmatpush1.bf16.msra.mxu0 %v3999
      %4295 = vmatprep.subr.bf16.mxu0 %v4002
      %4296 = vmatpush1.bf16.msra.mxu0 %v4001
      %4297 = vmatprep.subr.bf16.mxu0 %v4004
      %4298 = vmatpush1.bf16.msra.mxu0 %v4003
      %4299 = vmatprep.subr.bf16.mxu0 %v4006
      %4300 = vmatpush1.bf16.msra.mxu0 %v4005
      %4301 = vmatprep.subr.bf16.mxu0 %v4008
      %4302 = vmatpush1.bf16.msra.mxu0 %v4007
      %4303 = vmatprep.subr.bf16.mxu0 %v4010
      %4304 = vmatpush1.bf16.msra.mxu0 %v4009
      %4305 = vmatprep.subr.bf16.mxu0 %v4012
      %4306 = vmatpush1.bf16.msra.mxu0 %v4011
      %4307 = vmatprep.subr.bf16.mxu0 %v4014
      %4308 = vmatpush1.bf16.msra.mxu0 %v4013
      %4309 = vmatprep.subr.bf16.mxu0 %v4016
      %4310 = vmatpush1.bf16.msra.mxu0 %v4015
      %4311 = vmatprep.subr.bf16.mxu0 %v4018
      %4312 = vmatpush1.bf16.msra.mxu0 %v4017
      %4313 = vmatprep.subr.bf16.mxu0 %v4020
      %4314 = vmatpush1.bf16.msra.mxu0 %v4019
      %4315 = vmatprep.subr.bf16.mxu0 %v4022
      %4316 = vmatpush1.bf16.msra.mxu0 %v4021
      %4317 = vmatprep.subr.bf16.mxu0 %v4024
      %4318 = vmatpush1.bf16.msra.mxu0 %v4023
      %4319 = vmatprep.mubr.bf16.mxu0 %v3382
      %4320 = vmatmul.mubr.bf16.gmra.mrb[0].mxu0 %v3381
      %v4321 = vpop.f32.mrb[0].mxu0
      %v4322 = vadd.f32 %v4281, %v4321
      %v4323 = vpop.f32.mrb[0].mxu0
      %v4324 = vadd.f32 %v4283, %v4323
      %v4325 = vpop.f32.mrb[0].mxu0
      %v4326 = vpop.f32.mrb[0].mxu0
      %4327 = vdwg.mxu0
      %v4328 = vtanh.pop %v4322
      %v4329 = vtanh.pop %v4324
      %v4330 = vpack.c.bf16 %v4328, %v4328
      %v4331 = vpack.c.bf16 %v4329, %v4329
      %v4332 = vld [vmem:[%s11] sm:$0xff]
      %v4333 = vld [vmem:[%s11 + $0x8] sm:$0xff]
      %v4334 = vld [vmem:[%s11 + $0x10] sm:$0xff]
      %v4335 = vld [vmem:[%s11 + $0x18] sm:$0xff]
      %v4336 = vld [vmem:[%s11 + $0x20] sm:$0xff]
      %v4337 = vld [vmem:[%s11 + $0x28] sm:$0xff]
      %v4338 = vld [vmem:[%s11 + $0x30] sm:$0xff]
      %v4339 = vld [vmem:[%s11 + $0x38] sm:$0xff]
      %v4340 = vld [vmem:[%s11 + $0x40] sm:$0xff]
      %v4341 = vld [vmem:[%s11 + $0x48] sm:$0xff]
      %v4342 = vld [vmem:[%s11 + $0x50] sm:$0xff]
      %v4343 = vld [vmem:[%s11 + $0x58] sm:$0xff]
      %v4344 = vld [vmem:[%s11 + $0x60] sm:$0xff]
      %v4345 = vld [vmem:[%s11 + $0x68] sm:$0xff]
      %v4346 = vld [vmem:[%s11 + $0x70] sm:$0xff]
      %v4347 = vld [vmem:[%s11 + $0x78] sm:$0xff]
      %v4348 = vld [vmem:[%s11 + $0x80] sm:$0xff]
      %v4349 = vld [vmem:[%s11 + $0x88] sm:$0xff]
      %v4350 = vld [vmem:[%s11 + $0x90] sm:$0xff]
      %v4351 = vld [vmem:[%s11 + $0x98] sm:$0xff]
      %v4352 = vld [vmem:[%s11 + $0xa0] sm:$0xff]
      %v4353 = vld [vmem:[%s11 + $0xa8] sm:$0xff]
      %v4354 = vld [vmem:[%s11 + $0xb0] sm:$0xff]
      %v4355 = vld [vmem:[%s11 + $0xb8] sm:$0xff]
      %v4356 = vld [vmem:[%s11 + $0xc0] sm:$0xff]
      %v4357 = vld [vmem:[%s11 + $0xc8] sm:$0xff]
      %v4358 = vld [vmem:[%s11 + $0xd0] sm:$0xff]
      %v4359 = vld [vmem:[%s11 + $0xd8] sm:$0xff]
      %v4360 = vld [vmem:[%s11 + $0xe0] sm:$0xff]
      %v4361 = vld [vmem:[%s11 + $0xe8] sm:$0xff]
      %v4362 = vld [vmem:[%s11 + $0xf0] sm:$0xff]
      %v4363 = vld [vmem:[%s11 + $0xf8] sm:$0xff]
      %v4364 = vld [vmem:[%s11 + $0x100] sm:$0xff]
      %v4365 = vld [vmem:[%s11 + $0x108] sm:$0xff]
      %v4366 = vld [vmem:[%s11 + $0x110] sm:$0xff]
      %v4367 = vld [vmem:[%s11 + $0x118] sm:$0xff]
      %v4368 = vld [vmem:[%s11 + $0x120] sm:$0xff]
      %v4369 = vld [vmem:[%s11 + $0x128] sm:$0xff]
      %v4370 = vld [vmem:[%s11 + $0x130] sm:$0xff]
      %v4371 = vld [vmem:[%s11 + $0x138] sm:$0xff]
      %v4372 = vld [vmem:[%s11 + $0x140] sm:$0xff]
      %v4373 = vld [vmem:[%s11 + $0x148] sm:$0xff]
      %v4374 = vld [vmem:[%s11 + $0x150] sm:$0xff]
      %v4375 = vld [vmem:[%s11 + $0x158] sm:$0xff]
      %v4376 = vld [vmem:[%s11 + $0x160] sm:$0xff]
      %v4377 = vld [vmem:[%s11 + $0x168] sm:$0xff]
      %v4378 = vld [vmem:[%s11 + $0x170] sm:$0xff]
      %v4379 = vld [vmem:[%s11 + $0x178] sm:$0xff]
      %v4380 = vld [vmem:[%s11 + $0x180] sm:$0xff]
      %v4381 = vld [vmem:[%s11 + $0x188] sm:$0xff]
      %v4382 = vld [vmem:[%s11 + $0x190] sm:$0xff]
      %v4383 = vld [vmem:[%s11 + $0x198] sm:$0xff]
      %v4384 = vld [vmem:[%s11 + $0x1a0] sm:$0xff]
      %v4385 = vld [vmem:[%s11 + $0x1a8] sm:$0xff]
      %v4386 = vld [vmem:[%s11 + $0x1b0] sm:$0xff]
      %v4387 = vld [vmem:[%s11 + $0x1b8] sm:$0xff]
      %v4388 = vld [vmem:[%s11 + $0x1c0] sm:$0xff]
      %v4389 = vld [vmem:[%s11 + $0x1c8] sm:$0xff]
      %v4390 = vld [vmem:[%s11 + $0x1d0] sm:$0xff]
      %v4391 = vld [vmem:[%s11 + $0x1d8] sm:$0xff]
      %v4392 = vld [vmem:[%s11 + $0x1e0] sm:$0xff]
      %v4393 = vld [vmem:[%s11 + $0x1e8] sm:$0xff]
      %v4394 = vld [vmem:[%s11 + $0x1f0] sm:$0xff]
      %v4395 = vld [vmem:[%s11 + $0x1f8] sm:$0xff]
      %v4396 = vld [vmem:[%s11 + $0x200] sm:$0xff]
      %v4397 = vld [vmem:[%s11 + $0x208] sm:$0xff]
      %v4398 = vld [vmem:[%s11 + $0x210] sm:$0xff]
      %v4399 = vld [vmem:[%s11 + $0x218] sm:$0xff]
      %v4400 = vld [vmem:[%s11 + $0x220] sm:$0xff]
      %v4401 = vld [vmem:[%s11 + $0x228] sm:$0xff]
      %v4402 = vld [vmem:[%s11 + $0x230] sm:$0xff]
      %v4403 = vld [vmem:[%s11 + $0x238] sm:$0xff]
      %v4404 = vld [vmem:[%s11 + $0x240] sm:$0xff]
      %v4405 = vld [vmem:[%s11 + $0x248] sm:$0xff]
      %v4406 = vld [vmem:[%s11 + $0x250] sm:$0xff]
      %v4407 = vld [vmem:[%s11 + $0x258] sm:$0xff]
      %v4408 = vld [vmem:[%s11 + $0x260] sm:$0xff]
      %v4409 = vld [vmem:[%s11 + $0x268] sm:$0xff]
      %v4410 = vld [vmem:[%s11 + $0x270] sm:$0xff]
      %v4411 = vld [vmem:[%s11 + $0x278] sm:$0xff]
      %v4412 = vld [vmem:[%s11 + $0x280] sm:$0xff]
      %v4413 = vld [vmem:[%s11 + $0x288] sm:$0xff]
      %v4414 = vld [vmem:[%s11 + $0x290] sm:$0xff]
      %v4415 = vld [vmem:[%s11 + $0x298] sm:$0xff]
      %v4416 = vld [vmem:[%s11 + $0x2a0] sm:$0xff]
      %v4417 = vld [vmem:[%s11 + $0x2a8] sm:$0xff]
      %v4418 = vld [vmem:[%s11 + $0x2b0] sm:$0xff]
      %v4419 = vld [vmem:[%s11 + $0x2b8] sm:$0xff]
      %v4420 = vld [vmem:[%s11 + $0x2c0] sm:$0xff]
      %v4421 = vld [vmem:[%s11 + $0x2c8] sm:$0xff]
      %v4422 = vld [vmem:[%s11 + $0x2d0] sm:$0xff]
      %v4423 = vld [vmem:[%s11 + $0x2d8] sm:$0xff]
      %v4424 = vld [vmem:[%s11 + $0x2e0] sm:$0xff]
      %v4425 = vld [vmem:[%s11 + $0x2e8] sm:$0xff]
      %v4426 = vld [vmem:[%s11 + $0x2f0] sm:$0xff]
      %v4427 = vld [vmem:[%s11 + $0x2f8] sm:$0xff]
      %v4428 = vld [vmem:[%s11 + $0x300] sm:$0xff]
      %v4429 = vld [vmem:[%s11 + $0x308] sm:$0xff]
      %v4430 = vld [vmem:[%s11 + $0x310] sm:$0xff]
      %v4431 = vld [vmem:[%s11 + $0x318] sm:$0xff]
      %v4432 = vld [vmem:[%s11 + $0x320] sm:$0xff]
      %v4433 = vld [vmem:[%s11 + $0x328] sm:$0xff]
      %v4434 = vld [vmem:[%s11 + $0x330] sm:$0xff]
      %v4435 = vld [vmem:[%s11 + $0x338] sm:$0xff]
      %v4436 = vld [vmem:[%s11 + $0x340] sm:$0xff]
      %v4437 = vld [vmem:[%s11 + $0x348] sm:$0xff]
      %v4438 = vld [vmem:[%s11 + $0x350] sm:$0xff]
      %v4439 = vld [vmem:[%s11 + $0x358] sm:$0xff]
      %v4440 = vld [vmem:[%s11 + $0x360] sm:$0xff]
      %v4441 = vld [vmem:[%s11 + $0x368] sm:$0xff]
      %v4442 = vld [vmem:[%s11 + $0x370] sm:$0xff]
      %v4443 = vld [vmem:[%s11 + $0x378] sm:$0xff]
      %v4444 = vld [vmem:[%s11 + $0x380] sm:$0xff]
      %v4445 = vld [vmem:[%s11 + $0x388] sm:$0xff]
      %v4446 = vld [vmem:[%s11 + $0x390] sm:$0xff]
      %v4447 = vld [vmem:[%s11 + $0x398] sm:$0xff]
      %v4448 = vld [vmem:[%s11 + $0x3a0] sm:$0xff]
      %v4449 = vld [vmem:[%s11 + $0x3a8] sm:$0xff]
      %v4450 = vld [vmem:[%s11 + $0x3b0] sm:$0xff]
      %v4451 = vld [vmem:[%s11 + $0x3b8] sm:$0xff]
      %v4452 = vld [vmem:[%s11 + $0x3c0] sm:$0xff]
      %v4453 = vld [vmem:[%s11 + $0x3c8] sm:$0xff]
      %v4454 = vld [vmem:[%s11 + $0x3d0] sm:$0xff]
      %v4455 = vld [vmem:[%s11 + $0x3d8] sm:$0xff]
      %v4456 = vld [vmem:[%s11 + $0x3e0] sm:$0xff]
      %v4457 = vld [vmem:[%s11 + $0x3e8] sm:$0xff]
      %v4458 = vld [vmem:[%s11 + $0x3f0] sm:$0xff]
      %v4459 = vld [vmem:[%s11 + $0x3f8] sm:$0xff]
      %s4460 = scalar_lea.vmem %s12, 65
      %v4461 = vld [vmem:[%s4460] ss:$8 sm:$0xf]
      %v4462 = vld [vmem:[%s4460] ss:$8 sm:$0xf0]
      %v4463 = vor.u32 %v4461, %v4462
      %v4592 = vunpack.c.l.b16 %v4332
      %v4593 = vunpack.c.h.b16 %v4332
      %v4594 = vunpack.c.l.b16 %v4333
      %v4595 = vunpack.c.h.b16 %v4333
      %v4596 = vunpack.c.l.b16 %v4334
      %v4597 = vunpack.c.h.b16 %v4334
      %v4598 = vunpack.c.l.b16 %v4335
      %v4599 = vunpack.c.h.b16 %v4335
      %v4600 = vunpack.c.l.b16 %v4336
      %v4601 = vunpack.c.h.b16 %v4336
      %v4602 = vunpack.c.l.b16 %v4337
      %v4603 = vunpack.c.h.b16 %v4337
      %v4604 = vunpack.c.l.b16 %v4338
      %v4605 = vunpack.c.h.b16 %v4338
      %v4606 = vunpack.c.l.b16 %v4339
      %v4607 = vunpack.c.h.b16 %v4339
      %v4608 = vunpack.c.l.b16 %v4340
      %v4609 = vunpack.c.h.b16 %v4340
      %v4610 = vunpack.c.l.b16 %v4341
      %v4611 = vunpack.c.h.b16 %v4341
      %v4612 = vunpack.c.l.b16 %v4342
      %v4613 = vunpack.c.h.b16 %v4342
      %v4614 = vunpack.c.l.b16 %v4343
      %v4615 = vunpack.c.h.b16 %v4343
      %v4616 = vunpack.c.l.b16 %v4344
      %v4617 = vunpack.c.h.b16 %v4344
      %v4618 = vunpack.c.l.b16 %v4345
      %v4619 = vunpack.c.h.b16 %v4345
      %v4620 = vunpack.c.l.b16 %v4346
      %v4621 = vunpack.c.h.b16 %v4346
      %v4622 = vunpack.c.l.b16 %v4347
      %v4623 = vunpack.c.h.b16 %v4347
      %v4624 = vunpack.c.l.b16 %v4348
      %v4625 = vunpack.c.h.b16 %v4348
      %v4626 = vunpack.c.l.b16 %v4349
      %v4627 = vunpack.c.h.b16 %v4349
      %v4628 = vunpack.c.l.b16 %v4350
      %v4629 = vunpack.c.h.b16 %v4350
      %v4630 = vunpack.c.l.b16 %v4351
      %v4631 = vunpack.c.h.b16 %v4351
      %v4632 = vunpack.c.l.b16 %v4352
      %v4633 = vunpack.c.h.b16 %v4352
      %v4634 = vunpack.c.l.b16 %v4353
      %v4635 = vunpack.c.h.b16 %v4353
      %v4636 = vunpack.c.l.b16 %v4354
      %v4637 = vunpack.c.h.b16 %v4354
      %v4638 = vunpack.c.l.b16 %v4355
      %v4639 = vunpack.c.h.b16 %v4355
      %v4640 = vunpack.c.l.b16 %v4356
      %v4641 = vunpack.c.h.b16 %v4356
      %v4642 = vunpack.c.l.b16 %v4357
      %v4643 = vunpack.c.h.b16 %v4357
      %v4644 = vunpack.c.l.b16 %v4358
      %v4645 = vunpack.c.h.b16 %v4358
      %v4646 = vunpack.c.l.b16 %v4359
      %v4647 = vunpack.c.h.b16 %v4359
      %v4648 = vunpack.c.l.b16 %v4360
      %v4649 = vunpack.c.h.b16 %v4360
      %v4650 = vunpack.c.l.b16 %v4361
      %v4651 = vunpack.c.h.b16 %v4361
      %v4652 = vunpack.c.l.b16 %v4362
      %v4653 = vunpack.c.h.b16 %v4362
      %v4654 = vunpack.c.l.b16 %v4363
      %v4655 = vunpack.c.h.b16 %v4363
      %v4656 = vunpack.c.l.b16 %v4364
      %v4657 = vunpack.c.h.b16 %v4364
      %v4658 = vunpack.c.l.b16 %v4365
      %v4659 = vunpack.c.h.b16 %v4365
      %v4660 = vunpack.c.l.b16 %v4366
      %v4661 = vunpack.c.h.b16 %v4366
      %v4662 = vunpack.c.l.b16 %v4367
      %v4663 = vunpack.c.h.b16 %v4367
      %v4664 = vunpack.c.l.b16 %v4368
      %v4665 = vunpack.c.h.b16 %v4368
      %v4666 = vunpack.c.l.b16 %v4369
      %v4667 = vunpack.c.h.b16 %v4369
      %v4668 = vunpack.c.l.b16 %v4370
      %v4669 = vunpack.c.h.b16 %v4370
      %v4670 = vunpack.c.l.b16 %v4371
      %v4671 = vunpack.c.h.b16 %v4371
      %v4672 = vunpack.c.l.b16 %v4372
      %v4673 = vunpack.c.h.b16 %v4372
      %v4674 = vunpack.c.l.b16 %v4373
      %v4675 = vunpack.c.h.b16 %v4373
      %v4676 = vunpack.c.l.b16 %v4374
      %v4677 = vunpack.c.h.b16 %v4374
      %v4678 = vunpack.c.l.b16 %v4375
      %v4679 = vunpack.c.h.b16 %v4375
      %v4680 = vunpack.c.l.b16 %v4376
      %v4681 = vunpack.c.h.b16 %v4376
      %v4682 = vunpack.c.l.b16 %v4377
      %v4683 = vunpack.c.h.b16 %v4377
      %v4684 = vunpack.c.l.b16 %v4378
      %v4685 = vunpack.c.h.b16 %v4378
      %v4686 = vunpack.c.l.b16 %v4379
      %v4687 = vunpack.c.h.b16 %v4379
      %v4688 = vunpack.c.l.b16 %v4380
      %v4689 = vunpack.c.h.b16 %v4380
      %v4690 = vunpack.c.l.b16 %v4381
      %v4691 = vunpack.c.h.b16 %v4381
      %v4692 = vunpack.c.l.b16 %v4382
      %v4693 = vunpack.c.h.b16 %v4382
      %v4694 = vunpack.c.l.b16 %v4383
      %v4695 = vunpack.c.h.b16 %v4383
      %v4696 = vunpack.c.l.b16 %v4384
      %v4697 = vunpack.c.h.b16 %v4384
      %v4698 = vunpack.c.l.b16 %v4385
      %v4699 = vunpack.c.h.b16 %v4385
      %v4700 = vunpack.c.l.b16 %v4386
      %v4701 = vunpack.c.h.b16 %v4386
      %v4702 = vunpack.c.l.b16 %v4387
      %v4703 = vunpack.c.h.b16 %v4387
      %v4704 = vunpack.c.l.b16 %v4388
      %v4705 = vunpack.c.h.b16 %v4388
      %v4706 = vunpack.c.l.b16 %v4389
      %v4707 = vunpack.c.h.b16 %v4389
      %v4708 = vunpack.c.l.b16 %v4390
      %v4709 = vunpack.c.h.b16 %v4390
      %v4710 = vunpack.c.l.b16 %v4391
      %v4711 = vunpack.c.h.b16 %v4391
      %v4712 = vunpack.c.l.b16 %v4392
      %v4713 = vunpack.c.h.b16 %v4392
      %v4714 = vunpack.c.l.b16 %v4393
      %v4715 = vunpack.c.h.b16 %v4393
      %v4716 = vunpack.c.l.b16 %v4394
      %v4717 = vunpack.c.h.b16 %v4394
      %v4718 = vunpack.c.l.b16 %v4395
      %v4719 = vunpack.c.h.b16 %v4395
      %v4720 = vunpack.c.l.b16 %v4396
      %v4721 = vunpack.c.h.b16 %v4396
      %v4722 = vunpack.c.l.b16 %v4397
      %v4723 = vunpack.c.h.b16 %v4397
      %v4724 = vunpack.c.l.b16 %v4398
      %v4725 = vunpack.c.h.b16 %v4398
      %v4726 = vunpack.c.l.b16 %v4399
      %v4727 = vunpack.c.h.b16 %v4399
      %v4728 = vunpack.c.l.b16 %v4400
      %v4729 = vunpack.c.h.b16 %v4400
      %v4730 = vunpack.c.l.b16 %v4401
      %v4731 = vunpack.c.h.b16 %v4401
      %v4732 = vunpack.c.l.b16 %v4402
      %v4733 = vunpack.c.h.b16 %v4402
      %v4734 = vunpack.c.l.b16 %v4403
      %v4735 = vunpack.c.h.b16 %v4403
      %v4736 = vunpack.c.l.b16 %v4404
      %v4737 = vunpack.c.h.b16 %v4404
      %v4738 = vunpack.c.l.b16 %v4405
      %v4739 = vunpack.c.h.b16 %v4405
      %v4740 = vunpack.c.l.b16 %v4406
      %v4741 = vunpack.c.h.b16 %v4406
      %v4742 = vunpack.c.l.b16 %v4407
      %v4743 = vunpack.c.h.b16 %v4407
      %v4744 = vunpack.c.l.b16 %v4408
      %v4745 = vunpack.c.h.b16 %v4408
      %v4746 = vunpack.c.l.b16 %v4409
      %v4747 = vunpack.c.h.b16 %v4409
      %v4748 = vunpack.c.l.b16 %v4410
      %v4749 = vunpack.c.h.b16 %v4410
      %v4750 = vunpack.c.l.b16 %v4411
      %v4751 = vunpack.c.h.b16 %v4411
      %v4752 = vunpack.c.l.b16 %v4412
      %v4753 = vunpack.c.h.b16 %v4412
      %v4754 = vunpack.c.l.b16 %v4413
      %v4755 = vunpack.c.h.b16 %v4413
      %v4756 = vunpack.c.l.b16 %v4414
      %v4757 = vunpack.c.h.b16 %v4414
      %v4758 = vunpack.c.l.b16 %v4415
      %v4759 = vunpack.c.h.b16 %v4415
      %v4760 = vunpack.c.l.b16 %v4416
      %v4761 = vunpack.c.h.b16 %v4416
      %v4762 = vunpack.c.l.b16 %v4417
      %v4763 = vunpack.c.h.b16 %v4417
      %v4764 = vunpack.c.l.b16 %v4418
      %v4765 = vunpack.c.h.b16 %v4418
      %v4766 = vunpack.c.l.b16 %v4419
      %v4767 = vunpack.c.h.b16 %v4419
      %v4768 = vunpack.c.l.b16 %v4420
      %v4769 = vunpack.c.h.b16 %v4420
      %v4770 = vunpack.c.l.b16 %v4421
      %v4771 = vunpack.c.h.b16 %v4421
      %v4772 = vunpack.c.l.b16 %v4422
      %v4773 = vunpack.c.h.b16 %v4422
      %v4774 = vunpack.c.l.b16 %v4423
      %v4775 = vunpack.c.h.b16 %v4423
      %v4776 = vunpack.c.l.b16 %v4424
      %v4777 = vunpack.c.h.b16 %v4424
      %v4778 = vunpack.c.l.b16 %v4425
      %v4779 = vunpack.c.h.b16 %v4425
      %v4780 = vunpack.c.l.b16 %v4426
      %v4781 = vunpack.c.h.b16 %v4426
      %v4782 = vunpack.c.l.b16 %v4427
      %v4783 = vunpack.c.h.b16 %v4427
      %v4784 = vunpack.c.l.b16 %v4428
      %v4785 = vunpack.c.h.b16 %v4428
      %v4786 = vunpack.c.l.b16 %v4429
      %v4787 = vunpack.c.h.b16 %v4429
      %v4788 = vunpack.c.l.b16 %v4430
      %v4789 = vunpack.c.h.b16 %v4430
      %v4790 = vunpack.c.l.b16 %v4431
      %v4791 = vunpack.c.h.b16 %v4431
      %v4792 = vunpack.c.l.b16 %v4432
      %v4793 = vunpack.c.h.b16 %v4432
      %v4794 = vunpack.c.l.b16 %v4433
      %v4795 = vunpack.c.h.b16 %v4433
      %v4796 = vunpack.c.l.b16 %v4434
      %v4797 = vunpack.c.h.b16 %v4434
      %v4798 = vunpack.c.l.b16 %v4435
      %v4799 = vunpack.c.h.b16 %v4435
      %v4800 = vunpack.c.l.b16 %v4436
      %v4801 = vunpack.c.h.b16 %v4436
      %v4802 = vunpack.c.l.b16 %v4437
      %v4803 = vunpack.c.h.b16 %v4437
      %v4804 = vunpack.c.l.b16 %v4438
      %v4805 = vunpack.c.h.b16 %v4438
      %v4806 = vunpack.c.l.b16 %v4439
      %v4807 = vunpack.c.h.b16 %v4439
      %v4808 = vunpack.c.l.b16 %v4440
      %v4809 = vunpack.c.h.b16 %v4440
      %v4810 = vunpack.c.l.b16 %v4441
      %v4811 = vunpack.c.h.b16 %v4441
      %v4812 = vunpack.c.l.b16 %v4442
      %v4813 = vunpack.c.h.b16 %v4442
      %v4814 = vunpack.c.l.b16 %v4443
      %v4815 = vunpack.c.h.b16 %v4443
      %v4816 = vunpack.c.l.b16 %v4444
      %v4817 = vunpack.c.h.b16 %v4444
      %v4818 = vunpack.c.l.b16 %v4445
      %v4819 = vunpack.c.h.b16 %v4445
      %v4820 = vunpack.c.l.b16 %v4446
      %v4821 = vunpack.c.h.b16 %v4446
      %v4822 = vunpack.c.l.b16 %v4447
      %v4823 = vunpack.c.h.b16 %v4447
      %v4824 = vunpack.c.l.b16 %v4448
      %v4825 = vunpack.c.h.b16 %v4448
      %v4826 = vunpack.c.l.b16 %v4449
      %v4827 = vunpack.c.h.b16 %v4449
      %v4828 = vunpack.c.l.b16 %v4450
      %v4829 = vunpack.c.h.b16 %v4450
      %v4830 = vunpack.c.l.b16 %v4451
      %v4831 = vunpack.c.h.b16 %v4451
      %v4832 = vunpack.c.l.b16 %v4452
      %v4833 = vunpack.c.h.b16 %v4452
      %v4834 = vunpack.c.l.b16 %v4453
      %v4835 = vunpack.c.h.b16 %v4453
      %v4836 = vunpack.c.l.b16 %v4454
      %v4837 = vunpack.c.h.b16 %v4454
      %v4838 = vunpack.c.l.b16 %v4455
      %v4839 = vunpack.c.h.b16 %v4455
      %v4840 = vunpack.c.l.b16 %v4456
      %v4841 = vunpack.c.h.b16 %v4456
      %v4842 = vunpack.c.l.b16 %v4457
      %v4843 = vunpack.c.h.b16 %v4457
      %v4844 = vunpack.c.l.b16 %v4458
      %v4845 = vunpack.c.h.b16 %v4458
      %v4846 = vunpack.c.l.b16 %v4459
      %v4847 = vunpack.c.h.b16 %v4459
      %v4848 = vpack.c.b16 %v4600, %v4592
      %v4849 = vpack.c.b16 %v4601, %v4593
      %v4850 = vpack.c.b16 %v4602, %v4594
      %v4851 = vpack.c.b16 %v4603, %v4595
      %v4852 = vpack.c.b16 %v4604, %v4596
      %v4853 = vpack.c.b16 %v4605, %v4597
      %v4854 = vpack.c.b16 %v4606, %v4598
      %v4855 = vpack.c.b16 %v4607, %v4599
      %v4856 = vpack.c.b16 %v4616, %v4608
      %v4857 = vpack.c.b16 %v4617, %v4609
      %v4858 = vpack.c.b16 %v4618, %v4610
      %v4859 = vpack.c.b16 %v4619, %v4611
      %v4860 = vpack.c.b16 %v4620, %v4612
      %v4861 = vpack.c.b16 %v4621, %v4613
      %v4862 = vpack.c.b16 %v4622, %v4614
      %v4863 = vpack.c.b16 %v4623, %v4615
      %v4864 = vpack.c.b16 %v4632, %v4624
      %v4865 = vpack.c.b16 %v4633, %v4625
      %v4866 = vpack.c.b16 %v4634, %v4626
      %v4867 = vpack.c.b16 %v4635, %v4627
      %v4868 = vpack.c.b16 %v4636, %v4628
      %v4869 = vpack.c.b16 %v4637, %v4629
      %v4870 = vpack.c.b16 %v4638, %v4630
      %v4871 = vpack.c.b16 %v4639, %v4631
      %v4872 = vpack.c.b16 %v4648, %v4640
      %v4873 = vpack.c.b16 %v4649, %v4641
      %v4874 = vpack.c.b16 %v4650, %v4642
      %v4875 = vpack.c.b16 %v4651, %v4643
      %v4876 = vpack.c.b16 %v4652, %v4644
      %v4877 = vpack.c.b16 %v4653, %v4645
      %v4878 = vpack.c.b16 %v4654, %v4646
      %v4879 = vpack.c.b16 %v4655, %v4647
      %v4880 = vpack.c.b16 %v4664, %v4656
      %v4881 = vpack.c.b16 %v4665, %v4657
      %v4882 = vpack.c.b16 %v4666, %v4658
      %v4883 = vpack.c.b16 %v4667, %v4659
      %v4884 = vpack.c.b16 %v4668, %v4660
      %v4885 = vpack.c.b16 %v4669, %v4661
      %v4886 = vpack.c.b16 %v4670, %v4662
      %v4887 = vpack.c.b16 %v4671, %v4663
      %v4888 = vpack.c.b16 %v4680, %v4672
      %v4889 = vpack.c.b16 %v4681, %v4673
      %v4890 = vpack.c.b16 %v4682, %v4674
      %v4891 = vpack.c.b16 %v4683, %v4675
      %v4892 = vpack.c.b16 %v4684, %v4676
      %v4893 = vpack.c.b16 %v4685, %v4677
      %v4894 = vpack.c.b16 %v4686, %v4678
      %v4895 = vpack.c.b16 %v4687, %v4679
      %v4896 = vpack.c.b16 %v4696, %v4688
      %v4897 = vpack.c.b16 %v4697, %v4689
      %v4898 = vpack.c.b16 %v4698, %v4690
      %v4899 = vpack.c.b16 %v4699, %v4691
      %v4900 = vpack.c.b16 %v4700, %v4692
      %v4901 = vpack.c.b16 %v4701, %v4693
      %v4902 = vpack.c.b16 %v4702, %v4694
      %v4903 = vpack.c.b16 %v4703, %v4695
      %v4904 = vpack.c.b16 %v4712, %v4704
      %v4905 = vpack.c.b16 %v4713, %v4705
      %v4906 = vpack.c.b16 %v4714, %v4706
      %v4907 = vpack.c.b16 %v4715, %v4707
      %v4908 = vpack.c.b16 %v4716, %v4708
      %v4909 = vpack.c.b16 %v4717, %v4709
      %v4910 = vpack.c.b16 %v4718, %v4710
      %v4911 = vpack.c.b16 %v4719, %v4711
      %v4912 = vpack.c.b16 %v4728, %v4720
      %v4913 = vpack.c.b16 %v4729, %v4721
      %v4914 = vpack.c.b16 %v4730, %v4722
      %v4915 = vpack.c.b16 %v4731, %v4723
      %v4916 = vpack.c.b16 %v4732, %v4724
      %v4917 = vpack.c.b16 %v4733, %v4725
      %v4918 = vpack.c.b16 %v4734, %v4726
      %v4919 = vpack.c.b16 %v4735, %v4727
      %v4920 = vpack.c.b16 %v4744, %v4736
      %v4921 = vpack.c.b16 %v4745, %v4737
      %v4922 = vpack.c.b16 %v4746, %v4738
      %v4923 = vpack.c.b16 %v4747, %v4739
      %v4924 = vpack.c.b16 %v4748, %v4740
      %v4925 = vpack.c.b16 %v4749, %v4741
      %v4926 = vpack.c.b16 %v4750, %v4742
      %v4927 = vpack.c.b16 %v4751, %v4743
      %v4928 = vpack.c.b16 %v4760, %v4752
      %v4929 = vpack.c.b16 %v4761, %v4753
      %v4930 = vpack.c.b16 %v4762, %v4754
      %v4931 = vpack.c.b16 %v4763, %v4755
      %v4932 = vpack.c.b16 %v4764, %v4756
      %v4933 = vpack.c.b16 %v4765, %v4757
      %v4934 = vpack.c.b16 %v4766, %v4758
      %v4935 = vpack.c.b16 %v4767, %v4759
      %v4936 = vpack.c.b16 %v4776, %v4768
      %v4937 = vpack.c.b16 %v4777, %v4769
      %v4938 = vpack.c.b16 %v4778, %v4770
      %v4939 = vpack.c.b16 %v4779, %v4771
      %v4940 = vpack.c.b16 %v4780, %v4772
      %v4941 = vpack.c.b16 %v4781, %v4773
      %v4942 = vpack.c.b16 %v4782, %v4774
      %v4943 = vpack.c.b16 %v4783, %v4775
      %v4944 = vpack.c.b16 %v4792, %v4784
      %v4945 = vpack.c.b16 %v4793, %v4785
      %v4946 = vpack.c.b16 %v4794, %v4786
      %v4947 = vpack.c.b16 %v4795, %v4787
      %v4948 = vpack.c.b16 %v4796, %v4788
      %v4949 = vpack.c.b16 %v4797, %v4789
      %v4950 = vpack.c.b16 %v4798, %v4790
      %v4951 = vpack.c.b16 %v4799, %v4791
      %v4952 = vpack.c.b16 %v4808, %v4800
      %v4953 = vpack.c.b16 %v4809, %v4801
      %v4954 = vpack.c.b16 %v4810, %v4802
      %v4955 = vpack.c.b16 %v4811, %v4803
      %v4956 = vpack.c.b16 %v4812, %v4804
      %v4957 = vpack.c.b16 %v4813, %v4805
      %v4958 = vpack.c.b16 %v4814, %v4806
      %v4959 = vpack.c.b16 %v4815, %v4807
      %v4960 = vpack.c.b16 %v4824, %v4816
      %v4961 = vpack.c.b16 %v4825, %v4817
      %v4962 = vpack.c.b16 %v4826, %v4818
      %v4963 = vpack.c.b16 %v4827, %v4819
      %v4964 = vpack.c.b16 %v4828, %v4820
      %v4965 = vpack.c.b16 %v4829, %v4821
      %v4966 = vpack.c.b16 %v4830, %v4822
      %v4967 = vpack.c.b16 %v4831, %v4823
      %v4968 = vpack.c.b16 %v4840, %v4832
      %v4969 = vpack.c.b16 %v4841, %v4833
      %v4970 = vpack.c.b16 %v4842, %v4834
      %v4971 = vpack.c.b16 %v4843, %v4835
      %v4972 = vpack.c.b16 %v4844, %v4836
      %v4973 = vpack.c.b16 %v4845, %v4837
      %v4974 = vpack.c.b16 %v4846, %v4838
      %v4975 = vpack.c.b16 %v4847, %v4839
      %v5105 = vlaneseq
      %v5106 = vshrl.u32 %v5105, 7
      %v5107 = vsub.s32 0, %v5106
      %v5108 = vrot.slane %v4463, %v5107
      %v5109 = vlaneseq
      %v5110 = vshrl.u32 %v5109, 7
      %v5111 = vsub.s32 1, %v5110
      %v5112 = vrot.slane %v4463, %v5111
      %v5113 = vlaneseq
      %v5114 = vshrl.u32 %v5113, 7
      %v5115 = vsub.s32 2, %v5114
      %v5116 = vrot.slane %v4463, %v5115
      %v5117 = vlaneseq
      %v5118 = vshrl.u32 %v5117, 7
      %v5119 = vsub.s32 3, %v5118
      %v5120 = vrot.slane %v4463, %v5119
      %v5121 = vlaneseq
      %v5122 = vshrl.u32 %v5121, 7
      %v5123 = vsub.s32 4, %v5122
      %v5124 = vrot.slane %v4463, %v5123
      %v5125 = vlaneseq
      %v5126 = vshrl.u32 %v5125, 7
      %v5127 = vsub.s32 5, %v5126
      %v5128 = vrot.slane %v4463, %v5127
      %v5129 = vlaneseq
      %v5130 = vshrl.u32 %v5129, 7
      %v5131 = vsub.s32 6, %v5130
      %v5132 = vrot.slane %v4463, %v5131
      %v5133 = vlaneseq
      %v5134 = vshrl.u32 %v5133, 7
      %v5135 = vsub.s32 7, %v5134
      %v5136 = vrot.slane %v4463, %v5135
      %5145 = vmatprep.subr.bf16.mxu0 %v4849
      %5146 = vmatpush1.bf16.msra.mxu0 %v4848
      %5147 = vmatprep.subr.bf16.mxu0 %v4857
      %5148 = vmatpush1.bf16.msra.mxu0 %v4856
      %5149 = vmatprep.subr.bf16.mxu0 %v4865
      %5150 = vmatpush1.bf16.msra.mxu0 %v4864
      %5151 = vmatprep.subr.bf16.mxu0 %v4873
      %5152 = vmatpush1.bf16.msra.mxu0 %v4872
      %5153 = vmatprep.subr.bf16.mxu0 %v4881
      %5154 = vmatpush1.bf16.msra.mxu0 %v4880
      %5155 = vmatprep.subr.bf16.mxu0 %v4889
      %5156 = vmatpush1.bf16.msra.mxu0 %v4888
      %5157 = vmatprep.subr.bf16.mxu0 %v4897
      %5158 = vmatpush1.bf16.msra.mxu0 %v4896
      %5159 = vmatprep.subr.bf16.mxu0 %v4905
      %5160 = vmatpush1.bf16.msra.mxu0 %v4904
      %5161 = vmatprep.subr.bf16.mxu0 %v4913
      %5162 = vmatpush1.bf16.msra.mxu0 %v4912
      %5163 = vmatprep.subr.bf16.mxu0 %v4921
      %5164 = vmatpush1.bf16.msra.mxu0 %v4920
      %5165 = vmatprep.subr.bf16.mxu0 %v4929
      %5166 = vmatpush1.bf16.msra.mxu0 %v4928
      %5167 = vmatprep.subr.bf16.mxu0 %v4937
      %5168 = vmatpush1.bf16.msra.mxu0 %v4936
      %5169 = vmatprep.subr.bf16.mxu0 %v4945
      %5170 = vmatpush1.bf16.msra.mxu0 %v4944
      %5171 = vmatprep.subr.bf16.mxu0 %v4953
      %5172 = vmatpush1.bf16.msra.mxu0 %v4952
      %5173 = vmatprep.subr.bf16.mxu0 %v4961
      %5174 = vmatpush1.bf16.msra.mxu0 %v4960
      %5175 = vmatprep.subr.bf16.mxu0 %v4969
      %5176 = vmatpush1.bf16.msra.mxu0 %v4968
      %5177 = vmatprep.mubr.bf16.mxu0 %v4331
      %5178 = vmatmul.mubr.bf16.gmra.mrb[0].mxu0 %v4330
      %v5179 = vpop.f32.mrb[0].mxu0
      %v5180 = vadd.f32 %v5108, %v5179
      %v5181 = vpop.f32.mrb[0].mxu0
      %v5182 = vadd.f32 %v5112, %v5181
      %v5183 = vpop.f32.mrb[0].mxu0
      %v5184 = vpop.f32.mrb[0].mxu0
      %5185 = vdwg.mxu0
      %5186 = vmatprep.subr.bf16.mxu0 %v4851
      %5187 = vmatpush1.bf16.msra.mxu0 %v4850
      %5188 = vmatprep.subr.bf16.mxu0 %v4859
      %5189 = vmatpush1.bf16.msra.mxu0 %v4858
      %5190 = vmatprep.subr.bf16.mxu0 %v4867
      %5191 = vmatpush1.bf16.msra.mxu0 %v4866
      %5192 = vmatprep.subr.bf16.mxu0 %v4875
      %5193 = vmatpush1.bf16.msra.mxu0 %v4874
      %5194 = vmatprep.subr.bf16.mxu0 %v4883
      %5195 = vmatpush1.bf16.msra.mxu0 %v4882
      %5196 = vmatprep.subr.bf16.mxu0 %v4891
      %5197 = vmatpush1.bf16.msra.mxu0 %v4890
      %5198 = vmatprep.subr.bf16.mxu0 %v4899
      %5199 = vmatpush1.bf16.msra.mxu0 %v4898
      %5200 = vmatprep.subr.bf16.mxu0 %v4907
      %5201 = vmatpush1.bf16.msra.mxu0 %v4906
      %5202 = vmatprep.subr.bf16.mxu0 %v4915
      %5203 = vmatpush1.bf16.msra.mxu0 %v4914
      %5204 = vmatprep.subr.bf16.mxu0 %v4923
      %5205 = vmatpush1.bf16.msra.mxu0 %v4922
      %5206 = vmatprep.subr.bf16.mxu0 %v4931
      %5207 = vmatpush1.bf16.msra.mxu0 %v4930
      %5208 = vmatprep.subr.bf16.mxu0 %v4939
      %5209 = vmatpush1.bf16.msra.mxu0 %v4938
      %5210 = vmatprep.subr.bf16.mxu0 %v4947
      %5211 = vmatpush1.bf16.msra.mxu0 %v4946
      %5212 = vmatprep.subr.bf16.mxu0 %v4955
      %5213 = vmatpush1.bf16.msra.mxu0 %v4954
      %5214 = vmatprep.subr.bf16.mxu0 %v4963
      %5215 = vmatpush1.bf16.msra.mxu0 %v4962
      %5216 = vmatprep.subr.bf16.mxu0 %v4971
      %5217 = vmatpush1.bf16.msra.mxu0 %v4970
      %5218 = vmatprep.mubr.bf16.mxu0 %v4331
      %5219 = vmatmul.mubr.bf16.gmra.mrb[0].mxu0 %v4330
      %v5220 = vpop.f32.mrb[0].mxu0
      %v5221 = vadd.f32 %v5116, %v5220
      %v5222 = vpop.f32.mrb[0].mxu0
      %v5223 = vadd.f32 %v5120, %v5222
      %v5224 = vpop.f32.mrb[0].mxu0
      %v5225 = vpop.f32.mrb[0].mxu0
      %5226 = vdwg.mxu0
      %5227 = vmatprep.subr.bf16.mxu0 %v4853
      %5228 = vmatpush1.bf16.msra.mxu0 %v4852
      %5229 = vmatprep.subr.bf16.mxu0 %v4861
      %5230 = vmatpush1.bf16.msra.mxu0 %v4860
      %5231 = vmatprep.subr.bf16.mxu0 %v4869
      %5232 = vmatpush1.bf16.msra.mxu0 %v4868
      %5233 = vmatprep.subr.bf16.mxu0 %v4877
      %5234 = vmatpush1.bf16.msra.mxu0 %v4876
      %5235 = vmatprep.subr.bf16.mxu0 %v4885
      %5236 = vmatpush1.bf16.msra.mxu0 %v4884
      %5237 = vmatprep.subr.bf16.mxu0 %v4893
      %5238 = vmatpush1.bf16.msra.mxu0 %v4892
      %5239 = vmatprep.subr.bf16.mxu0 %v4901
      %5240 = vmatpush1.bf16.msra.mxu0 %v4900
      %5241 = vmatprep.subr.bf16.mxu0 %v4909
      %5242 = vmatpush1.bf16.msra.mxu0 %v4908
      %5243 = vmatprep.subr.bf16.mxu0 %v4917
      %5244 = vmatpush1.bf16.msra.mxu0 %v4916
      %5245 = vmatprep.subr.bf16.mxu0 %v4925
      %5246 = vmatpush1.bf16.msra.mxu0 %v4924
      %5247 = vmatprep.subr.bf16.mxu0 %v4933
      %5248 = vmatpush1.bf16.msra.mxu0 %v4932
      %5249 = vmatprep.subr.bf16.mxu0 %v4941
      %5250 = vmatpush1.bf16.msra.mxu0 %v4940
      %5251 = vmatprep.subr.bf16.mxu0 %v4949
      %5252 = vmatpush1.bf16.msra.mxu0 %v4948
      %5253 = vmatprep.subr.bf16.mxu0 %v4957
      %5254 = vmatpush1.bf16.msra.mxu0 %v4956
      %5255 = vmatprep.subr.bf16.mxu0 %v4965
      %5256 = vmatpush1.bf16.msra.mxu0 %v4964
      %5257 = vmatprep.subr.bf16.mxu0 %v4973
      %5258 = vmatpush1.bf16.msra.mxu0 %v4972
      %5259 = vmatprep.mubr.bf16.mxu0 %v4331
      %5260 = vmatmul.mubr.bf16.gmra.mrb[0].mxu0 %v4330
      %v5261 = vpop.f32.mrb[0].mxu0
      %v5262 = vadd.f32 %v5124, %v5261
      %v5263 = vpop.f32.mrb[0].mxu0
      %v5264 = vadd.f32 %v5128, %v5263
      %v5265 = vpop.f32.mrb[0].mxu0
      %v5266 = vpop.f32.mrb[0].mxu0
      %5267 = vdwg.mxu0
      %5268 = vmatprep.subr.bf16.mxu0 %v4855
      %5269 = vmatpush1.bf16.msra.mxu0 %v4854
      %5270 = vmatprep.subr.bf16.mxu0 %v4863
      %5271 = vmatpush1.bf16.msra.mxu0 %v4862
      %5272 = vmatprep.subr.bf16.mxu0 %v4871
      %5273 = vmatpush1.bf16.msra.mxu0 %v4870
      %5274 = vmatprep.subr.bf16.mxu0 %v4879
      %5275 = vmatpush1.bf16.msra.mxu0 %v4878
      %5276 = vmatprep.subr.bf16.mxu0 %v4887
      %5277 = vmatpush1.bf16.msra.mxu0 %v4886
      %5278 = vmatprep.subr.bf16.mxu0 %v4895
      %5279 = vmatpush1.bf16.msra.mxu0 %v4894
      %5280 = vmatprep.subr.bf16.mxu0 %v4903
      %5281 = vmatpush1.bf16.msra.mxu0 %v4902
      %5282 = vmatprep.subr.bf16.mxu0 %v4911
      %5283 = vmatpush1.bf16.msra.mxu0 %v4910
      %5284 = vmatprep.subr.bf16.mxu0 %v4919
      %5285 = vmatpush1.bf16.msra.mxu0 %v4918
      %5286 = vmatprep.subr.bf16.mxu0 %v4927
      %5287 = vmatpush1.bf16.msra.mxu0 %v4926
      %5288 = vmatprep.subr.bf16.mxu0 %v4935
      %5289 = vmatpush1.bf16.msra.mxu0 %v4934
      %5290 = vmatprep.subr.bf16.mxu0 %v4943
      %5291 = vmatpush1.bf16.msra.mxu0 %v4942
      %5292 = vmatprep.subr.bf16.mxu0 %v4951
      %5293 = vmatpush1.bf16.msra.mxu0 %v4950
      %5294 = vmatprep.subr.bf16.mxu0 %v4959
      %5295 = vmatpush1.bf16.msra.mxu0 %v4958
      %5296 = vmatprep.subr.bf16.mxu0 %v4967
      %5297 = vmatpush1.bf16.msra.mxu0 %v4966
      %5298 = vmatprep.subr.bf16.mxu0 %v4975
      %5299 = vmatpush1.bf16.msra.mxu0 %v4974
      %5300 = vmatprep.mubr.bf16.mxu0 %v4331
      %5301 = vmatmul.mubr.bf16.gmra.mrb[0].mxu0 %v4330
      %v5302 = vpop.f32.mrb[0].mxu0
      %v5303 = vadd.f32 %v5132, %v5302
      %v5304 = vpop.f32.mrb[0].mxu0
      %v5305 = vadd.f32 %v5136, %v5304
      %v5306 = vpop.f32.mrb[0].mxu0
      %v5307 = vpop.f32.mrb[0].mxu0
      %5308 = vdwg.mxu0
      %v5317 = vcombine.low %v5180, %v5182
      %v5318 = vcombine.low %v5221, %v5223
      %v5319 = vcombine.low %v5262, %v5264
      %v5320 = vcombine.low %v5303, %v5305
      %v5322 = vunpack.c.l.s4 1966171168
      %v5323 = vunpack.c.0.s8 %v5322
      %v5324 = vlaneseq
      %v5325 = vshrl.u32 %v5324, 7
      %v5326 = vsub.s32 %v5323, %v5325
      %v5327 = vrot.slane %v5317, %v5326
      %v5329 = vunpack.c.l.s4 1966171168
      %v5330 = vunpack.c.0.s8 %v5329
      %v5331 = vlaneseq
      %v5332 = vshrl.u32 %v5331, 7
      %v5333 = vsub.s32 %v5330, %v5332
      %v5334 = vrot.slane %v5318, %v5333
      %v5336 = vunpack.c.l.s4 1966171168
      %v5337 = vunpack.c.0.s8 %v5336
      %v5338 = vlaneseq
      %v5339 = vshrl.u32 %v5338, 7
      %v5340 = vsub.s32 %v5337, %v5339
      %v5341 = vrot.slane %v5319, %v5340
      %v5343 = vunpack.c.l.s4 1966171168
      %v5344 = vunpack.c.0.s8 %v5343
      %v5345 = vlaneseq
      %v5346 = vshrl.u32 %v5345, 7
      %v5347 = vsub.s32 %v5344, %v5346
      %v5348 = vrot.slane %v5320, %v5347
      %v5349 = vcombine.low %v5327, %v5334
      %v5350 = vcombine.low %v5341, %v5348
      %v5352 = vunpack.c.l.s4 1966171168
      %v5353 = vunpack.c.0.s8 %v5352
      %v5354 = vlaneseq
      %v5355 = vshrl.u32 %v5354, 7
      %v5356 = vsub.s32 %v5353, %v5355
      %v5357 = vrot.slane %v5349, %v5356
      %v5359 = vunpack.c.l.s4 1966171168
      %v5360 = vunpack.c.0.s8 %v5359
      %v5361 = vlaneseq
      %v5362 = vshrl.u32 %v5361, 7
      %v5363 = vsub.s32 %v5360, %v5362
      %v5364 = vrot.slane %v5350, %v5363
      %v5365 = vcombine.low %v5357, %v5364
      %5367 = vst [vmem:[%s482] sm:$0xff] %v5365
      %5369 = vrot.lane.b32.xlu0 %v2130, 64
      %v5370 = vpop.permute.xlu0 %5369
      %v5372 = vsel %vm2171, %v2019, %v5370
      %5373 = vst [vmem:[%s485] sm:$0x1] %v5372
      %p5374 = scmp.lt.s32.totalorder %s26, 1
      %s5375 = scalar_select %p5374, %s26, 1
      %s5376 = smul.addr %s5375, 8
      %s5377 = scalar_lea.vmem %s13, %s5376
      %p5378 = scmp.lt.s32.totalorder %s26, 1
      %s5379 = scalar_select %p5378, %s26, 1
      %s5380 = scalar_lea.vmem %s14, %s5379
      // Predicated region
      $region73: #{_lambda_.1} parent=71 // pred_check
        %p5381 = pneg %p327
      $region74: #{_lambda_.1} parent=71 // pred_check_branch
        %5383 = sbr.rel (%p5381) target = $region76
      $region75: #{_lambda_.1} parent=71 // pred_region
        _
      $region76: #{_lambda_.1} parent=71 // pred_fallthru
        _
      // Predicated region
      $region77: #{_lambda_.1} parent=71 // pred_check
        %p5384 = pneg %p353
      $region78: #{_lambda_.1} parent=71 // pred_check_branch
        %5386 = sbr.rel (%p5384) target = $region80
      $region79: #{_lambda_.1} parent=71 // pred_region
        _
      $region80: #{_lambda_.1} parent=71 // pred_fallthru
        _
    $region72: #{_lambda_.1} parent=5 // pred_fallthru
      _
    %p5387 = scmp.le.s32.totalorder 2, %s21
    // Predicated region
    $region81: #{_lambda_.1} parent=5 // pred_check
      %p5388 = pneg %p5387
    $region82: #{_lambda_.1} parent=5 // pred_check_branch
      %5390 = sbr.rel (%p5388) target = $region84
    $region83: #{_lambda_.1} parent=5 // pred_region
      %s5391 = ssub.s32 %s21, 2
      // Predicated region
      $region85: #{_lambda_.1} parent=83 // pred_check
        %p5392 = pneg %p333
      $region86: #{_lambda_.1} parent=83 // pred_check_branch
        %5394 = sbr.rel (%p5392) target = $region88
      $region87: #{_lambda_.1} parent=83 // pred_region
        %p5395 = scmp.lt.s32.totalorder %s27, 1
        %s5396 = scalar_select %p5395, %s27, 1
        %s5397 = smul.addr %s5396, 8
        %s5398 = scalar_lea.vmem %s13, %s5397
      $region88: #{_lambda_.1} parent=83 // pred_fallthru
        _
      // Predicated region
      $region89: #{_lambda_.1} parent=83 // pred_check
        %p5399 = pneg %p359
      $region90: #{_lambda_.1} parent=83 // pred_check_branch
        %5401 = sbr.rel (%p5399) target = $region92
      $region91: #{_lambda_.1} parent=83 // pred_region
        %p5402 = scmp.lt.s32.totalorder %s27, 1
        %s5403 = scalar_select %p5402, %s27, 1
        %s5404 = scalar_lea.vmem %s14, %s5403
      $region92: #{_lambda_.1} parent=83 // pred_fallthru
        _
    $region84: #{_lambda_.1} parent=5 // pred_fallthru
      _
  $region6: #{_lambda_.1} parent=0 // loop_footer
    %s25 = sadd.s32 1, %s21
  $region7: #{_lambda_.1} parent=0 // loop_footer_branch
    %20 = sbr.rel target = $region3
  $region8: #{_lambda_.1} parent=0 // loop_exit
    _

</llo_original>
